<compile_context>
chip_gen: v7x
topology: tpu7x:2x2x1
jax: 0.10.0
libtpu: 0.0.40
codegen_flags: <defaults>
</compile_context>

<pallas_src>
import functools
import math

import jax
import jax.numpy as jnp
from jax.experimental import pallas as pl
from jax.experimental.pallas import tpu as pltpu

# Hyper-parameters matching the PyTorch module defaults.
NUM_LAYERS = 3
NUM_NEIGHBORS = 12
CUTOFF = 5.0
MUL = 16                      # every irrep block is 16x  (16x0e, 16x1o)
DIM_0E = MUL                  # 16
DIM_1O = 3 * MUL              # 48
LANE = 128                    # node axis padded to a multiple of this


def _outer(a, b):
    """P[u*MUL + v, n] = a[u, n] * b[v, n];  a, b: (MUL, N) f32 -> (MUL*MUL, N) bf16.

    Lane-dense outer product (sublane broadcasts only); emitted in bf16 so the
    fused tensor-product MXU operands are built without f32 temporaries."""
    n = a.shape[-1]
    p = (a[:, None, :] * b[None, :, :]).reshape(MUL * MUL, n)
    return p.astype(jnp.bfloat16)


def e3gnn_kernel(pos_ref, oh_ref, xt_ref, wproj_ref, wsg_ref, wv_ref, wread_ref,
                 energy_ref, *, num_layers, cutoff, max_neighbors):
    f32 = jnp.float32
    bf16 = jnp.bfloat16
    pos = pos_ref[...]                     # (N, 3)
    oh = oh_ref[...]                       # (N, G) one-hot of `batch` (zero rows = padding)
    xt = xt_ref[...]                       # (16, N) channel-major input scalars
    n = pos.shape[0]

    # ---------------- radius_graph: dense adjacency, built transposed ----------------
    # dist2 on the MXU: r2_i + r2_j - 2 * (pos . pos^T); r2 straight from pos (no
    # (N,N) diag mask / full reductions).
    nt = (((1,), (1,)), ((), ()))          # contract last dims (A @ B^T)
    gram = jax.lax.dot_general(pos, pos, dimension_numbers=nt,
                               preferred_element_type=f32)           # (N, N)
    ri = jax.lax.broadcasted_iota(jnp.int32, (n, n), 0)
    ci = jax.lax.broadcasted_iota(jnp.int32, (n, n), 1)

    pos_sq = pos * pos                                               # (N, 3)
    ones3 = jnp.ones((1, 3), f32)
    r2_col = jax.lax.dot_general(pos_sq, ones3, dimension_numbers=nt,
                                 preferred_element_type=f32)         # (N, 1)
    r2_row = jax.lax.dot_general(ones3, pos_sq, dimension_numbers=nt,
                                 preferred_element_type=f32)         # (1, N)
    dist2 = r2_col + r2_row - 2.0 * gram

    same_batch = jax.lax.dot_general(oh, oh, dimension_numbers=nt,
                                     preferred_element_type=f32)     # (N, N) in {0,1}
    in_range = (dist2 <= cutoff * cutoff) & (ri != ci)
    within = jnp.where(in_range, same_batch, 0.0).astype(bf16)       # {0,1}, symmetric

    # Per-aggregating-node neighbor cap, keeping neighbors in ascending index
    # order: inclusive prefix count as ONE bf16 lower-triangular MXU matmul
    # ({0,1} operands, f32 accumulation -> exact counts; MXU is idle here anyway).
    # TODO(synk): torch_cluster's radius_graph keeps an implementation-defined
    # subset when more than max_num_neighbors are in range; index order is used.
    tril = (ci <= ri).astype(bf16)
    cum = jnp.dot(tril, within, preferred_element_type=f32)          # (N, N) exact counts
    # adj_t[j, i] = 1 iff node i aggregates from neighbor j; {0,1} exact in bf16.
    adj_t = jnp.where(cum <= float(max_neighbors), within, 0)        # (N, N) bf16

    # ---------------- input projection: 16x0e -> 16x0e + 16x1o ----------------
    # Only the 0e->0e path has weights (1/sqrt(16) folded in); 1o block starts at 0.
    sT = jnp.dot(wproj_ref[...], xt, preferred_element_type=f32)     # (16, N)
    vT = jnp.zeros((DIM_1O, n), f32)                                 # (48, N)

    # ---------------- message-passing layers ----------------
    # agg_i = sum_j A_ij TP(x_i, x_j) = TP(x_i, (A @ x)_i) by bilinearity, so each
    # layer is: one aggregation matmul + two fused tensor-product matmuls.
    for l in range(num_layers):
        wsg = wsg_ref[l]                   # (32, 1024) bf16: scalars+gates paths
        wv = wv_ref[l]                     # (16, 512)  bf16: vector-output paths

        # aggregation: one bf16 (64, N) x (N, N) MXU matmul of all features at once.
        feat = jnp.concatenate([sT.astype(bf16), vT.astype(bf16)], axis=0)   # (64, N)
        agg = jnp.dot(feat, adj_t, preferred_element_type=f32)               # (64, N)
        saggT = agg[0:MUL, :]                                                # (16, N)
        vaggT = agg[MUL:, :]                                                 # (48, N)

        # fused tensor product operands (bf16, built block-wise).
        # scalars+gates operand: [P_ss ; P_vv_x ; P_vv_y ; P_vv_z] -> the per-
        # component 1o x 1o -> 0e sum is folded into the K=1024 contraction.
        p_sg = jnp.concatenate(
            [_outer(sT, saggT)] +
            [_outer(vT[k * MUL:(k + 1) * MUL, :], vaggT[k * MUL:(k + 1) * MUL, :])
             for k in range(3)],
            axis=0)                                                  # (1024, N) bf16

        # vector-output operand: [P_sv_k ; P_vs_k] per component k=x,y,z along lanes.
        p_v = jnp.concatenate(
            [jnp.concatenate(
                [_outer(sT, vaggT[k * MUL:(k + 1) * MUL, :]),        # 0e x 1o -> 1o
                 _outer(vT[k * MUL:(k + 1) * MUL, :], saggT)],       # 1o x 0e -> 1o
                axis=0)
             for k in range(3)], axis=1)                             # (512, 3N) bf16

        out_sg = jnp.dot(wsg, p_sg, preferred_element_type=f32)      # (32, N)
        out_v = jnp.dot(wv, p_v, preferred_element_type=f32)         # (16, 3N)

        # Gate: sigmoid(scalars) ++ sigmoid(gates) * gated 1o vectors, per component.
        sT = jax.nn.sigmoid(out_sg[0:MUL, :])                        # (16, N)
        gates = jax.nn.sigmoid(out_sg[MUL:, :])                      # (16, N)
        vT = jnp.concatenate(
            [gates * out_v[:, k * n:(k + 1) * n] for k in range(3)], axis=0)  # (48, N)

    # ---------------- readout + per-graph pooling (MXU matmuls) ----------------
    # readout Linear(16x0e + 16x1o -> 1x0e): only the 0e path has weights;
    # 1/sqrt(16) and the final *1000 are folded into w_read.
    yT = jnp.dot(wread_ref[...], sT, preferred_element_type=f32)     # (1, N)
    energy_ref[...] = jnp.dot(yT, oh, preferred_element_type=f32)    # (1, G)


def _tp_weight(w_flat):
    """(L, 16, 256) with w[l, v, u*16+w] = W[u,v,w]  ->  Wt (L, 16, 256) with
    Wt[l, w, u*16+v] = W[u,v,w], matching P rows (u*16+v) of the fused matmul."""
    num_l = w_flat.shape[0]
    w = w_flat.reshape(num_l, MUL, MUL, MUL)          # [l, v, u, w]
    w = jnp.transpose(w, (0, 3, 2, 1))                # [l, w, u, v]
    return w.reshape(num_l, MUL, MUL * MUL)           # [l, w, u*16+v]


def _pack_params(params):
    """Rearrange / fuse weights into the layouts the kernel consumes."""
    # TODO(synk): e3nn path_normalization/normalize2mom constants approximated;
    # with synthetic weights these only amount to a rescaling of the weights.
    inv_sqrt3 = 1.0 / math.sqrt(3.0)                  # CG norm of 1o x 1o -> 0e
    alpha = 1.0 / math.sqrt(2.0 * MUL * MUL)          # 2 paths of fan-in 16*16

    wt_ss_s = _tp_weight(params["w_ss_s"]); wt_vv_s = _tp_weight(params["w_vv_s"])
    wt_ss_g = _tp_weight(params["w_ss_g"]); wt_vv_g = _tp_weight(params["w_vv_g"])
    wt_sv_v = _tp_weight(params["w_sv_v"]); wt_vs_v = _tp_weight(params["w_vs_v"])

    # scalars+gates: rows [scalars(16); gates(16)],
    # cols [P_ss(256); P_vv_x(256); P_vv_y(256); P_vv_z(256)] -- the vv weight
    # columns are replicated 3x so the component sum happens inside the K=1024
    # MXU contraction (no VPU adds in the kernel).
    vv_s = inv_sqrt3 * wt_vv_s
    vv_g = inv_sqrt3 * wt_vv_g
    wt_sg = alpha * jnp.concatenate(
        [jnp.concatenate([wt_ss_s, vv_s, vv_s, vv_s], axis=2),
         jnp.concatenate([wt_ss_g, vv_g, vv_g, vv_g], axis=2)], axis=1)   # (L, 32, 1024)
    # vector outputs: cols [P_sv(256); P_vs(256)] (same weights reused for x/y/z)
    wt_v = alpha * jnp.concatenate([wt_sv_v, wt_vs_v], axis=2)            # (L, 16, 512)

    return {
        "w_proj_t": params["w_proj"].T / 4.0,                      # (16, 16)  f32
        "wt_sg": wt_sg.astype(jnp.bfloat16),                       # (L, 32, 1024)
        "wt_v": wt_v.astype(jnp.bfloat16),                         # (L, 16, 512)
        "w_read": params["w_read"] * (1000.0 / 4.0),               # (1, 16)   f32
    }


def _vmem_limit_bytes(n):
    """Scoped VMEM limit from the actual chip capacity + a per-buffer estimate."""
    try:
        cap = int(pltpu.get_tpu_info().vmem_capacity_bytes)
    except Exception:                                  # fallback: smallest current part
        cap = 64 * 2**20
    nn = n * n
    est = (5 * nn * 4                                  # gram, dist2, same_batch, cum + slack (f32)
           + 2 * nn * 4                                # ri / ci int32 iotas
           + 3 * nn * 2                                # within, tril, adj_t (bf16)
           + (1024 * n + 3 * 512 * n) * 2              # p_sg, p_v bf16 operands
           + (64 * n) * (2 + 4)                        # feat bf16 + agg f32
           + (32 * n + 48 * n) * 4                     # out_sg, out_v f32
           + (16 * n + 48 * n) * 4                     # sT, vT f32
           + 4 * 2**20)                                # packed weights, I/O buffers, headroom
    return int(min(0.85 * cap, max(est, 32 * 2**20)))


def e3gnn_forward(pos, x, batch_onehot, params):
    n = pos.shape[0]
    g = batch_onehot.shape[1]

    # Pad the node axis to a multiple of 128 so every lane-axis buffer/slice is
    # tile-aligned. Zero one-hot rows for padded nodes kill both their edges
    # (same_batch == 0) and their contribution to the per-graph pooling.
    n_pad = max(LANE, ((n + LANE - 1) // LANE) * LANE)
    if n_pad != n:
        pad = n_pad - n
        pos = jnp.pad(pos, ((0, pad), (0, 0)))
        x = jnp.pad(x, ((0, pad), (0, 0)))
        batch_onehot = jnp.pad(batch_onehot, ((0, pad), (0, 0)))

    packed = _pack_params(params)

    inputs = (pos, batch_onehot, x.T,      # x passed channel-major (16, N)
              packed["w_proj_t"], packed["wt_sg"], packed["wt_v"],
              packed["w_read"])

    kernel = functools.partial(e3gnn_kernel,
                               num_layers=NUM_LAYERS,
                               cutoff=CUTOFF,
                               max_neighbors=NUM_NEIGHBORS)

    # TODO(synk): for large N on v7x (64 MiB VMEM, 2 TCs) the adjacency /
    # aggregation should be tiled over node column blocks with a parallel grid
    # and streamed adj_t tiles; at these sizes a single resident call is faster.
    vmem_limit = _vmem_limit_bytes(n_pad)

    energy = pl.pallas_call(
        kernel,
        out_shape=jax.ShapeDtypeStruct((1, g), jnp.float32),
        in_specs=[pl.BlockSpec(memory_space=pltpu.MemorySpace.VMEM)
                  for _ in inputs],
        out_specs=pl.BlockSpec(memory_space=pltpu.MemorySpace.VMEM),
        compiler_params=pltpu.CompilerParams(vmem_limit_bytes=vmem_limit),
    )(*inputs)
    return energy[0]        # (G,) per-graph energies


def init_params(key):
    ks = jax.random.split(key, 8)
    f32 = jnp.float32
    return {
        # e3nn Linear(16x0e -> 16x0e+16x1o): only the 0e path has weights (16,16)
        "w_proj": jax.random.normal(ks[0], (MUL, MUL), f32),
        # per-layer FullyConnectedTensorProduct weights, flattened (L, 16, 256)
        # with W_mat[v, u*16 + w] == W[u, v, w]
        "w_ss_s": jax.random.normal(ks[1], (NUM_LAYERS, MUL, MUL * MUL), f32),
        "w_vv_s": jax.random.normal(ks[2], (NUM_LAYERS, MUL, MUL * MUL), f32),
        "w_ss_g": jax.random.normal(ks[3], (NUM_LAYERS, MUL, MUL * MUL), f32),
        "w_vv_g": jax.random.normal(ks[4], (NUM_LAYERS, MUL, MUL * MUL), f32),
        "w_sv_v": jax.random.normal(ks[5], (NUM_LAYERS, MUL, MUL * MUL), f32),
        "w_vs_v": jax.random.normal(ks[6], (NUM_LAYERS, MUL, MUL * MUL), f32),
        # readout Linear(16x0e+16x1o -> 1x0e): only 0e path, stored as (1,16)
        "w_read": jax.random.normal(ks[7], (1, MUL), f32),
    }


if __name__ == "__main__":
    key = jax.random.PRNGKey(0)
    k_pos, k_x, k_params = jax.random.split(key, 3)

    N = 16                 # total nodes
    G = 2                  # number of graphs in the batch (8 nodes each)
    pos = jax.random.uniform(k_pos, (N, 3), jnp.float32, minval=0.0, maxval=3.0)
    x = jax.random.normal(k_x, (N, DIM_0E), jnp.float32)       # 16x0e node features
    batch = jnp.concatenate([jnp.zeros((N // 2,), jnp.int32),
                             jnp.ones((N // 2,), jnp.int32)])
    batch_onehot = jax.nn.one_hot(batch, G, dtype=jnp.float32)

    params = init_params(k_params)

    energy = e3gnn_forward(pos, x, batch_onehot, params)
    energy = jax.block_until_ready(energy)
    assert energy.shape == (G,)
    assert bool(jnp.all(jnp.isfinite(energy)))
    print("KERNEL_OK")
</pallas_src>

<mosaic_0001>
module attributes {stable_mosaic.version = 11 : i64} {
  func.func @e3gnn_kernel(%arg0: memref<128x3xf32, #tpu.memory_space<vmem>>, %arg1: memref<128x2xf32, #tpu.memory_space<vmem>>, %arg2: memref<16x128xf32, #tpu.memory_space<vmem>>, %arg3: memref<16x16xf32, #tpu.memory_space<vmem>>, %arg4: memref<3x32x1024xbf16, #tpu.memory_space<vmem>>, %arg5: memref<3x16x512xbf16, #tpu.memory_space<vmem>>, %arg6: memref<1x16xf32, #tpu.memory_space<vmem>>, %arg7: memref<1x2xf32, #tpu.memory_space<vmem>>) attributes {dimension_semantics = [], scalar_prefetch = 0 : i64, scratch_operands = 0 : i64, tpu.core_type = #tpu.core_type<tc>} {
    %c0 = arith.constant 0 : index
    %c0_0 = arith.constant 0 : index
    %0 = vector.load %arg0[%c0, %c0_0] : memref<128x3xf32, #tpu.memory_space<vmem>>, vector<128x3xf32>
    %c0_1 = arith.constant 0 : index
    %c0_2 = arith.constant 0 : index
    %1 = vector.load %arg1[%c0_1, %c0_2] : memref<128x2xf32, #tpu.memory_space<vmem>>, vector<128x2xf32>
    %c0_3 = arith.constant 0 : index
    %c0_4 = arith.constant 0 : index
    %2 = vector.load %arg2[%c0_3, %c0_4] : memref<16x128xf32, #tpu.memory_space<vmem>>, vector<16x128xf32>
    %cst = arith.constant dense<0.000000e+00> : vector<128x128xf32>
    %3 = tpu.matmul %0, %0, %cst {dimension_numbers = #tpu.dot_dimension_numbers<[1], [1], [0], [0], [0, 0, 1, 0], [], []>} : vector<128x3xf32>, vector<128x3xf32>, vector<128x128xf32> -> vector<128x128xf32>
    %4 = tpu.iota {dimensions = array<i32: 0>} : vector<128x128xi32>
    %5 = tpu.iota {dimensions = array<i32: 1>} : vector<128x128xi32>
    %6 = arith.mulf %0, %0 : vector<128x3xf32>
    %cst_5 = arith.constant 1.000000e+00 : f32
    %7 = vector.broadcast %cst_5 : f32 to vector<1x3xf32>
    %cst_6 = arith.constant dense<0.000000e+00> : vector<128x1xf32>
    %8 = tpu.matmul %6, %7, %cst_6 {dimension_numbers = #tpu.dot_dimension_numbers<[1], [1], [0], [0], [0, 0, 1, 0], [], []>} : vector<128x3xf32>, vector<1x3xf32>, vector<128x1xf32> -> vector<128x1xf32>
    %cst_7 = arith.constant dense<0.000000e+00> : vector<1x128xf32>
    %9 = tpu.matmul %7, %6, %cst_7 {dimension_numbers = #tpu.dot_dimension_numbers<[1], [1], [0], [0], [0, 0, 1, 0], [], []>} : vector<1x3xf32>, vector<128x3xf32>, vector<1x128xf32> -> vector<1x128xf32>
    %10 = vector.broadcast %8 : vector<128x1xf32> to vector<128x128xf32>
    %11 = vector.broadcast %9 : vector<1x128xf32> to vector<128x128xf32>
    %12 = arith.addf %10, %11 : vector<128x128xf32>
    %cst_8 = arith.constant 2.000000e+00 : f32
    %13 = vector.broadcast %cst_8 : f32 to vector<128x128xf32>
    %14 = arith.mulf %13, %3 : vector<128x128xf32>
    %15 = arith.subf %12, %14 : vector<128x128xf32>
    %cst_9 = arith.constant dense<0.000000e+00> : vector<128x128xf32>
    %16 = tpu.matmul %1, %1, %cst_9 {dimension_numbers = #tpu.dot_dimension_numbers<[1], [1], [0], [0], [0, 0, 1, 0], [], []>} : vector<128x2xf32>, vector<128x2xf32>, vector<128x128xf32> -> vector<128x128xf32>
    %cst_10 = arith.constant 2.500000e+01 : f32
    %17 = vector.broadcast %cst_10 : f32 to vector<128x128xf32>
    %18 = arith.cmpf ole, %15, %17 : vector<128x128xf32>
    %19 = arith.cmpi ne, %4, %5 : vector<128x128xi32>
    %20 = arith.andi %18, %19 : vector<128x128xi1>
    %cst_11 = arith.constant 0.000000e+00 : f32
    %21 = vector.broadcast %cst_11 : f32 to vector<128x128xf32>
    %22 = arith.select %20, %16, %21 : vector<128x128xi1>, vector<128x128xf32>
    %23 = arith.truncf %22 : vector<128x128xf32> to vector<128x128xbf16>
    %24 = arith.cmpi sle, %5, %4 : vector<128x128xi32>
    %25 = arith.extui %24 : vector<128x128xi1> to vector<128x128xi32>
    %26 = arith.sitofp %25 : vector<128x128xi32> to vector<128x128xf32>
    %27 = arith.truncf %26 : vector<128x128xf32> to vector<128x128xbf16>
    %cst_12 = arith.constant dense<0.000000e+00> : vector<128x128xf32>
    %28 = tpu.matmul %27, %23, %cst_12 {dimension_numbers = #tpu.dot_dimension_numbers<[1], [0], [0], [1], [0, 0, 1, 1], [], []>} : vector<128x128xbf16>, vector<128x128xbf16>, vector<128x128xf32> -> vector<128x128xf32>
    %cst_13 = arith.constant 1.200000e+01 : f32
    %29 = vector.broadcast %cst_13 : f32 to vector<128x128xf32>
    %30 = arith.cmpf ole, %28, %29 : vector<128x128xf32>
    %c0_i32 = arith.constant 0 : i32
    %31 = arith.sitofp %c0_i32 : i32 to bf16
    %32 = vector.broadcast %31 : bf16 to vector<128x128xbf16>
    %33 = arith.select %30, %23, %32 : vector<128x128xi1>, vector<128x128xbf16>
    %c0_14 = arith.constant 0 : index
    %c0_15 = arith.constant 0 : index
    %34 = vector.load %arg3[%c0_14, %c0_15] : memref<16x16xf32, #tpu.memory_space<vmem>>, vector<16x16xf32>
    %cst_16 = arith.constant dense<0.000000e+00> : vector<16x128xf32>
    %35 = tpu.matmul %34, %2, %cst_16 {dimension_numbers = #tpu.dot_dimension_numbers<[1], [0], [0], [1], [0, 0, 1, 1], [], []>} : vector<16x16xf32>, vector<16x128xf32>, vector<16x128xf32> -> vector<16x128xf32>
    %cst_17 = arith.constant 0.000000e+00 : f32
    %36 = vector.broadcast %cst_17 : f32 to vector<48x128xf32>
    %c0_18 = arith.constant 0 : index
    %c0_19 = arith.constant 0 : index
    %c0_20 = arith.constant 0 : index
    %37 = vector.load %arg4[%c0_18, %c0_19, %c0_20] : memref<3x32x1024xbf16, #tpu.memory_space<vmem>>, vector<1x32x1024xbf16>
    %38 = vector.shape_cast %37 : vector<1x32x1024xbf16> to vector<32x1024xbf16>
    %c0_21 = arith.constant 0 : index
    %c0_22 = arith.constant 0 : index
    %c0_23 = arith.constant 0 : index
    %39 = vector.load %arg5[%c0_21, %c0_22, %c0_23] : memref<3x16x512xbf16, #tpu.memory_space<vmem>>, vector<1x16x512xbf16>
    %40 = vector.shape_cast %39 : vector<1x16x512xbf16> to vector<16x512xbf16>
    %41 = arith.truncf %35 : vector<16x128xf32> to vector<16x128xbf16>
    %42 = arith.truncf %36 : vector<48x128xf32> to vector<48x128xbf16>
    %43 = tpu.concatenate %41, %42 in 0 : vector<16x128xbf16>, vector<48x128xbf16> -> vector<64x128xbf16>
    %cst_24 = arith.constant dense<0.000000e+00> : vector<64x128xf32>
    %44 = tpu.matmul %43, %33, %cst_24 {dimension_numbers = #tpu.dot_dimension_numbers<[1], [0], [0], [1], [0, 0, 1, 1], [], []>} : vector<64x128xbf16>, vector<128x128xbf16>, vector<64x128xf32> -> vector<64x128xf32>
    %45 = vector.extract_strided_slice %44 {offsets = [0, 0], sizes = [16, 128], strides = [1, 1]} : vector<64x128xf32> to vector<16x128xf32>
    %46 = vector.extract_strided_slice %44 {offsets = [16, 0], sizes = [48, 128], strides = [1, 1]} : vector<64x128xf32> to vector<48x128xf32>
    %47 = vector.shape_cast %35 : vector<16x128xf32> to vector<16x1x128xf32>
    %48 = vector.shape_cast %45 : vector<16x128xf32> to vector<1x16x128xf32>
    %49 = vector.broadcast %47 : vector<16x1x128xf32> to vector<16x16x128xf32>
    %50 = vector.broadcast %48 : vector<1x16x128xf32> to vector<16x16x128xf32>
    %51 = arith.mulf %49, %50 : vector<16x16x128xf32>
    %52 = vector.shape_cast %51 : vector<16x16x128xf32> to vector<256x128xf32>
    %53 = arith.truncf %52 : vector<256x128xf32> to vector<256x128xbf16>
    %54 = vector.extract_strided_slice %36 {offsets = [0, 0], sizes = [16, 128], strides = [1, 1]} : vector<48x128xf32> to vector<16x128xf32>
    %55 = vector.extract_strided_slice %46 {offsets = [0, 0], sizes = [16, 128], strides = [1, 1]} : vector<48x128xf32> to vector<16x128xf32>
    %56 = vector.shape_cast %54 : vector<16x128xf32> to vector<16x1x128xf32>
    %57 = vector.shape_cast %55 : vector<16x128xf32> to vector<1x16x128xf32>
    %58 = vector.broadcast %56 : vector<16x1x128xf32> to vector<16x16x128xf32>
    %59 = vector.broadcast %57 : vector<1x16x128xf32> to vector<16x16x128xf32>
    %60 = arith.mulf %58, %59 : vector<16x16x128xf32>
    %61 = vector.shape_cast %60 : vector<16x16x128xf32> to vector<256x128xf32>
    %62 = arith.truncf %61 : vector<256x128xf32> to vector<256x128xbf16>
    %63 = vector.extract_strided_slice %36 {offsets = [16, 0], sizes = [16, 128], strides = [1, 1]} : vector<48x128xf32> to vector<16x128xf32>
    %64 = vector.extract_strided_slice %46 {offsets = [16, 0], sizes = [16, 128], strides = [1, 1]} : vector<48x128xf32> to vector<16x128xf32>
    %65 = vector.shape_cast %63 : vector<16x128xf32> to vector<16x1x128xf32>
    %66 = vector.shape_cast %64 : vector<16x128xf32> to vector<1x16x128xf32>
    %67 = vector.broadcast %65 : vector<16x1x128xf32> to vector<16x16x128xf32>
    %68 = vector.broadcast %66 : vector<1x16x128xf32> to vector<16x16x128xf32>
    %69 = arith.mulf %67, %68 : vector<16x16x128xf32>
    %70 = vector.shape_cast %69 : vector<16x16x128xf32> to vector<256x128xf32>
    %71 = arith.truncf %70 : vector<256x128xf32> to vector<256x128xbf16>
    %72 = vector.extract_strided_slice %36 {offsets = [32, 0], sizes = [16, 128], strides = [1, 1]} : vector<48x128xf32> to vector<16x128xf32>
    %73 = vector.extract_strided_slice %46 {offsets = [32, 0], sizes = [16, 128], strides = [1, 1]} : vector<48x128xf32> to vector<16x128xf32>
    %74 = vector.shape_cast %72 : vector<16x128xf32> to vector<16x1x128xf32>
    %75 = vector.shape_cast %73 : vector<16x128xf32> to vector<1x16x128xf32>
    %76 = vector.broadcast %74 : vector<16x1x128xf32> to vector<16x16x128xf32>
    %77 = vector.broadcast %75 : vector<1x16x128xf32> to vector<16x16x128xf32>
    %78 = arith.mulf %76, %77 : vector<16x16x128xf32>
    %79 = vector.shape_cast %78 : vector<16x16x128xf32> to vector<256x128xf32>
    %80 = arith.truncf %79 : vector<256x128xf32> to vector<256x128xbf16>
    %81 = tpu.concatenate %53, %62, %71, %80 in 0 : vector<256x128xbf16>, vector<256x128xbf16>, vector<256x128xbf16>, vector<256x128xbf16> -> vector<1024x128xbf16>
    %82 = vector.extract_strided_slice %46 {offsets = [0, 0], sizes = [16, 128], strides = [1, 1]} : vector<48x128xf32> to vector<16x128xf32>
    %83 = vector.shape_cast %35 : vector<16x128xf32> to vector<16x1x128xf32>
    %84 = vector.shape_cast %82 : vector<16x128xf32> to vector<1x16x128xf32>
    %85 = vector.broadcast %83 : vector<16x1x128xf32> to vector<16x16x128xf32>
    %86 = vector.broadcast %84 : vector<1x16x128xf32> to vector<16x16x128xf32>
    %87 = arith.mulf %85, %86 : vector<16x16x128xf32>
    %88 = vector.shape_cast %87 : vector<16x16x128xf32> to vector<256x128xf32>
    %89 = arith.truncf %88 : vector<256x128xf32> to vector<256x128xbf16>
    %90 = vector.extract_strided_slice %36 {offsets = [0, 0], sizes = [16, 128], strides = [1, 1]} : vector<48x128xf32> to vector<16x128xf32>
    %91 = vector.shape_cast %90 : vector<16x128xf32> to vector<16x1x128xf32>
    %92 = vector.shape_cast %45 : vector<16x128xf32> to vector<1x16x128xf32>
    %93 = vector.broadcast %91 : vector<16x1x128xf32> to vector<16x16x128xf32>
    %94 = vector.broadcast %92 : vector<1x16x128xf32> to vector<16x16x128xf32>
    %95 = arith.mulf %93, %94 : vector<16x16x128xf32>
    %96 = vector.shape_cast %95 : vector<16x16x128xf32> to vector<256x128xf32>
    %97 = arith.truncf %96 : vector<256x128xf32> to vector<256x128xbf16>
    %98 = tpu.concatenate %89, %97 in 0 : vector<256x128xbf16>, vector<256x128xbf16> -> vector<512x128xbf16>
    %99 = vector.extract_strided_slice %46 {offsets = [16, 0], sizes = [16, 128], strides = [1, 1]} : vector<48x128xf32> to vector<16x128xf32>
    %100 = vector.shape_cast %35 : vector<16x128xf32> to vector<16x1x128xf32>
    %101 = vector.shape_cast %99 : vector<16x128xf32> to vector<1x16x128xf32>
    %102 = vector.broadcast %100 : vector<16x1x128xf32> to vector<16x16x128xf32>
    %103 = vector.broadcast %101 : vector<1x16x128xf32> to vector<16x16x128xf32>
    %104 = arith.mulf %102, %103 : vector<16x16x128xf32>
    %105 = vector.shape_cast %104 : vector<16x16x128xf32> to vector<256x128xf32>
    %106 = arith.truncf %105 : vector<256x128xf32> to vector<256x128xbf16>
    %107 = vector.extract_strided_slice %36 {offsets = [16, 0], sizes = [16, 128], strides = [1, 1]} : vector<48x128xf32> to vector<16x128xf32>
    %108 = vector.shape_cast %107 : vector<16x128xf32> to vector<16x1x128xf32>
    %109 = vector.shape_cast %45 : vector<16x128xf32> to vector<1x16x128xf32>
    %110 = vector.broadcast %108 : vector<16x1x128xf32> to vector<16x16x128xf32>
    %111 = vector.broadcast %109 : vector<1x16x128xf32> to vector<16x16x128xf32>
    %112 = arith.mulf %110, %111 : vector<16x16x128xf32>
    %113 = vector.shape_cast %112 : vector<16x16x128xf32> to vector<256x128xf32>
    %114 = arith.truncf %113 : vector<256x128xf32> to vector<256x128xbf16>
    %115 = tpu.concatenate %106, %114 in 0 : vector<256x128xbf16>, vector<256x128xbf16> -> vector<512x128xbf16>
    %116 = vector.extract_strided_slice %46 {offsets = [32, 0], sizes = [16, 128], strides = [1, 1]} : vector<48x128xf32> to vector<16x128xf32>
    %117 = vector.shape_cast %35 : vector<16x128xf32> to vector<16x1x128xf32>
    %118 = vector.shape_cast %116 : vector<16x128xf32> to vector<1x16x128xf32>
    %119 = vector.broadcast %117 : vector<16x1x128xf32> to vector<16x16x128xf32>
    %120 = vector.broadcast %118 : vector<1x16x128xf32> to vector<16x16x128xf32>
    %121 = arith.mulf %119, %120 : vector<16x16x128xf32>
    %122 = vector.shape_cast %121 : vector<16x16x128xf32> to vector<256x128xf32>
    %123 = arith.truncf %122 : vector<256x128xf32> to vector<256x128xbf16>
    %124 = vector.extract_strided_slice %36 {offsets = [32, 0], sizes = [16, 128], strides = [1, 1]} : vector<48x128xf32> to vector<16x128xf32>
    %125 = vector.shape_cast %124 : vector<16x128xf32> to vector<16x1x128xf32>
    %126 = vector.shape_cast %45 : vector<16x128xf32> to vector<1x16x128xf32>
    %127 = vector.broadcast %125 : vector<16x1x128xf32> to vector<16x16x128xf32>
    %128 = vector.broadcast %126 : vector<1x16x128xf32> to vector<16x16x128xf32>
    %129 = arith.mulf %127, %128 : vector<16x16x128xf32>
    %130 = vector.shape_cast %129 : vector<16x16x128xf32> to vector<256x128xf32>
    %131 = arith.truncf %130 : vector<256x128xf32> to vector<256x128xbf16>
    %132 = tpu.concatenate %123, %131 in 0 : vector<256x128xbf16>, vector<256x128xbf16> -> vector<512x128xbf16>
    %133 = tpu.concatenate %98, %115, %132 in 1 : vector<512x128xbf16>, vector<512x128xbf16>, vector<512x128xbf16> -> vector<512x384xbf16>
    %cst_25 = arith.constant dense<0.000000e+00> : vector<32x128xf32>
    %134 = tpu.matmul %38, %81, %cst_25 {dimension_numbers = #tpu.dot_dimension_numbers<[1], [0], [0], [1], [0, 0, 1, 1], [], []>} : vector<32x1024xbf16>, vector<1024x128xbf16>, vector<32x128xf32> -> vector<32x128xf32>
    %cst_26 = arith.constant dense<0.000000e+00> : vector<16x384xf32>
    %135 = tpu.matmul %40, %133, %cst_26 {dimension_numbers = #tpu.dot_dimension_numbers<[1], [0], [0], [1], [0, 0, 1, 1], [], []>} : vector<16x512xbf16>, vector<512x384xbf16>, vector<16x384xf32> -> vector<16x384xf32>
    %136 = vector.extract_strided_slice %134 {offsets = [0, 0], sizes = [16, 128], strides = [1, 1]} : vector<32x128xf32> to vector<16x128xf32>
    %137 = arith.negf %136 : vector<16x128xf32>
    %138 = math.exp %137 : vector<16x128xf32>
    %cst_27 = arith.constant 1.000000e+00 : f32
    %139 = vector.broadcast %cst_27 : f32 to vector<16x128xf32>
    %140 = arith.addf %139, %138 : vector<16x128xf32>
    %141 = arith.divf %139, %140 : vector<16x128xf32>
    %142 = vector.extract_strided_slice %134 {offsets = [16, 0], sizes = [16, 128], strides = [1, 1]} : vector<32x128xf32> to vector<16x128xf32>
    %143 = arith.negf %142 : vector<16x128xf32>
    %144 = math.exp %143 : vector<16x128xf32>
    %cst_28 = arith.constant 1.000000e+00 : f32
    %145 = vector.broadcast %cst_28 : f32 to vector<16x128xf32>
    %146 = arith.addf %145, %144 : vector<16x128xf32>
    %147 = arith.divf %145, %146 : vector<16x128xf32>
    %148 = vector.extract_strided_slice %135 {offsets = [0, 0], sizes = [16, 128], strides = [1, 1]} : vector<16x384xf32> to vector<16x128xf32>
    %149 = arith.mulf %147, %148 : vector<16x128xf32>
    %150 = vector.extract_strided_slice %135 {offsets = [0, 128], sizes = [16, 128], strides = [1, 1]} : vector<16x384xf32> to vector<16x128xf32>
    %151 = arith.mulf %147, %150 : vector<16x128xf32>
    %152 = vector.extract_strided_slice %135 {offsets = [0, 256], sizes = [16, 128], strides = [1, 1]} : vector<16x384xf32> to vector<16x128xf32>
    %153 = arith.mulf %147, %152 : vector<16x128xf32>
    %154 = tpu.concatenate %149, %151, %153 in 0 : vector<16x128xf32>, vector<16x128xf32>, vector<16x128xf32> -> vector<48x128xf32>
    %c1 = arith.constant 1 : index
    %c0_29 = arith.constant 0 : index
    %c0_30 = arith.constant 0 : index
    %155 = vector.load %arg4[%c1, %c0_29, %c0_30] : memref<3x32x1024xbf16, #tpu.memory_space<vmem>>, vector<1x32x1024xbf16>
    %156 = vector.shape_cast %155 : vector<1x32x1024xbf16> to vector<32x1024xbf16>
    %c1_31 = arith.constant 1 : index
    %c0_32 = arith.constant 0 : index
    %c0_33 = arith.constant 0 : index
    %157 = vector.load %arg5[%c1_31, %c0_32, %c0_33] : memref<3x16x512xbf16, #tpu.memory_space<vmem>>, vector<1x16x512xbf16>
    %158 = vector.shape_cast %157 : vector<1x16x512xbf16> to vector<16x512xbf16>
    %159 = arith.truncf %141 : vector<16x128xf32> to vector<16x128xbf16>
    %160 = arith.truncf %154 : vector<48x128xf32> to vector<48x128xbf16>
    %161 = tpu.concatenate %159, %160 in 0 : vector<16x128xbf16>, vector<48x128xbf16> -> vector<64x128xbf16>
    %cst_34 = arith.constant dense<0.000000e+00> : vector<64x128xf32>
    %162 = tpu.matmul %161, %33, %cst_34 {dimension_numbers = #tpu.dot_dimension_numbers<[1], [0], [0], [1], [0, 0, 1, 1], [], []>} : vector<64x128xbf16>, vector<128x128xbf16>, vector<64x128xf32> -> vector<64x128xf32>
    %163 = vector.extract_strided_slice %162 {offsets = [0, 0], sizes = [16, 128], strides = [1, 1]} : vector<64x128xf32> to vector<16x128xf32>
    %164 = vector.extract_strided_slice %162 {offsets = [16, 0], sizes = [48, 128], strides = [1, 1]} : vector<64x128xf32> to vector<48x128xf32>
    %165 = vector.shape_cast %141 : vector<16x128xf32> to vector<16x1x128xf32>
    %166 = vector.shape_cast %163 : vector<16x128xf32> to vector<1x16x128xf32>
    %167 = vector.broadcast %165 : vector<16x1x128xf32> to vector<16x16x128xf32>
    %168 = vector.broadcast %166 : vector<1x16x128xf32> to vector<16x16x128xf32>
    %169 = arith.mulf %167, %168 : vector<16x16x128xf32>
    %170 = vector.shape_cast %169 : vector<16x16x128xf32> to vector<256x128xf32>
    %171 = arith.truncf %170 : vector<256x128xf32> to vector<256x128xbf16>
    %172 = vector.extract_strided_slice %154 {offsets = [0, 0], sizes = [16, 128], strides = [1, 1]} : vector<48x128xf32> to vector<16x128xf32>
    %173 = vector.extract_strided_slice %164 {offsets = [0, 0], sizes = [16, 128], strides = [1, 1]} : vector<48x128xf32> to vector<16x128xf32>
    %174 = vector.shape_cast %172 : vector<16x128xf32> to vector<16x1x128xf32>
    %175 = vector.shape_cast %173 : vector<16x128xf32> to vector<1x16x128xf32>
    %176 = vector.broadcast %174 : vector<16x1x128xf32> to vector<16x16x128xf32>
    %177 = vector.broadcast %175 : vector<1x16x128xf32> to vector<16x16x128xf32>
    %178 = arith.mulf %176, %177 : vector<16x16x128xf32>
    %179 = vector.shape_cast %178 : vector<16x16x128xf32> to vector<256x128xf32>
    %180 = arith.truncf %179 : vector<256x128xf32> to vector<256x128xbf16>
    %181 = vector.extract_strided_slice %154 {offsets = [16, 0], sizes = [16, 128], strides = [1, 1]} : vector<48x128xf32> to vector<16x128xf32>
    %182 = vector.extract_strided_slice %164 {offsets = [16, 0], sizes = [16, 128], strides = [1, 1]} : vector<48x128xf32> to vector<16x128xf32>
    %183 = vector.shape_cast %181 : vector<16x128xf32> to vector<16x1x128xf32>
    %184 = vector.shape_cast %182 : vector<16x128xf32> to vector<1x16x128xf32>
    %185 = vector.broadcast %183 : vector<16x1x128xf32> to vector<16x16x128xf32>
    %186 = vector.broadcast %184 : vector<1x16x128xf32> to vector<16x16x128xf32>
    %187 = arith.mulf %185, %186 : vector<16x16x128xf32>
    %188 = vector.shape_cast %187 : vector<16x16x128xf32> to vector<256x128xf32>
    %189 = arith.truncf %188 : vector<256x128xf32> to vector<256x128xbf16>
    %190 = vector.extract_strided_slice %154 {offsets = [32, 0], sizes = [16, 128], strides = [1, 1]} : vector<48x128xf32> to vector<16x128xf32>
    %191 = vector.extract_strided_slice %164 {offsets = [32, 0], sizes = [16, 128], strides = [1, 1]} : vector<48x128xf32> to vector<16x128xf32>
    %192 = vector.shape_cast %190 : vector<16x128xf32> to vector<16x1x128xf32>
    %193 = vector.shape_cast %191 : vector<16x128xf32> to vector<1x16x128xf32>
    %194 = vector.broadcast %192 : vector<16x1x128xf32> to vector<16x16x128xf32>
    %195 = vector.broadcast %193 : vector<1x16x128xf32> to vector<16x16x128xf32>
    %196 = arith.mulf %194, %195 : vector<16x16x128xf32>
    %197 = vector.shape_cast %196 : vector<16x16x128xf32> to vector<256x128xf32>
    %198 = arith.truncf %197 : vector<256x128xf32> to vector<256x128xbf16>
    %199 = tpu.concatenate %171, %180, %189, %198 in 0 : vector<256x128xbf16>, vector<256x128xbf16>, vector<256x128xbf16>, vector<256x128xbf16> -> vector<1024x128xbf16>
    %200 = vector.extract_strided_slice %164 {offsets = [0, 0], sizes = [16, 128], strides = [1, 1]} : vector<48x128xf32> to vector<16x128xf32>
    %201 = vector.shape_cast %141 : vector<16x128xf32> to vector<16x1x128xf32>
    %202 = vector.shape_cast %200 : vector<16x128xf32> to vector<1x16x128xf32>
    %203 = vector.broadcast %201 : vector<16x1x128xf32> to vector<16x16x128xf32>
    %204 = vector.broadcast %202 : vector<1x16x128xf32> to vector<16x16x128xf32>
    %205 = arith.mulf %203, %204 : vector<16x16x128xf32>
    %206 = vector.shape_cast %205 : vector<16x16x128xf32> to vector<256x128xf32>
    %207 = arith.truncf %206 : vector<256x128xf32> to vector<256x128xbf16>
    %208 = vector.extract_strided_slice %154 {offsets = [0, 0], sizes = [16, 128], strides = [1, 1]} : vector<48x128xf32> to vector<16x128xf32>
    %209 = vector.shape_cast %208 : vector<16x128xf32> to vector<16x1x128xf32>
    %210 = vector.shape_cast %163 : vector<16x128xf32> to vector<1x16x128xf32>
    %211 = vector.broadcast %209 : vector<16x1x128xf32> to vector<16x16x128xf32>
    %212 = vector.broadcast %210 : vector<1x16x128xf32> to vector<16x16x128xf32>
    %213 = arith.mulf %211, %212 : vector<16x16x128xf32>
    %214 = vector.shape_cast %213 : vector<16x16x128xf32> to vector<256x128xf32>
    %215 = arith.truncf %214 : vector<256x128xf32> to vector<256x128xbf16>
    %216 = tpu.concatenate %207, %215 in 0 : vector<256x128xbf16>, vector<256x128xbf16> -> vector<512x128xbf16>
    %217 = vector.extract_strided_slice %164 {offsets = [16, 0], sizes = [16, 128], strides = [1, 1]} : vector<48x128xf32> to vector<16x128xf32>
    %218 = vector.shape_cast %141 : vector<16x128xf32> to vector<16x1x128xf32>
    %219 = vector.shape_cast %217 : vector<16x128xf32> to vector<1x16x128xf32>
    %220 = vector.broadcast %218 : vector<16x1x128xf32> to vector<16x16x128xf32>
    %221 = vector.broadcast %219 : vector<1x16x128xf32> to vector<16x16x128xf32>
    %222 = arith.mulf %220, %221 : vector<16x16x128xf32>
    %223 = vector.shape_cast %222 : vector<16x16x128xf32> to vector<256x128xf32>
    %224 = arith.truncf %223 : vector<256x128xf32> to vector<256x128xbf16>
    %225 = vector.extract_strided_slice %154 {offsets = [16, 0], sizes = [16, 128], strides = [1, 1]} : vector<48x128xf32> to vector<16x128xf32>
    %226 = vector.shape_cast %225 : vector<16x128xf32> to vector<16x1x128xf32>
    %227 = vector.shape_cast %163 : vector<16x128xf32> to vector<1x16x128xf32>
    %228 = vector.broadcast %226 : vector<16x1x128xf32> to vector<16x16x128xf32>
    %229 = vector.broadcast %227 : vector<1x16x128xf32> to vector<16x16x128xf32>
    %230 = arith.mulf %228, %229 : vector<16x16x128xf32>
    %231 = vector.shape_cast %230 : vector<16x16x128xf32> to vector<256x128xf32>
    %232 = arith.truncf %231 : vector<256x128xf32> to vector<256x128xbf16>
    %233 = tpu.concatenate %224, %232 in 0 : vector<256x128xbf16>, vector<256x128xbf16> -> vector<512x128xbf16>
    %234 = vector.extract_strided_slice %164 {offsets = [32, 0], sizes = [16, 128], strides = [1, 1]} : vector<48x128xf32> to vector<16x128xf32>
    %235 = vector.shape_cast %141 : vector<16x128xf32> to vector<16x1x128xf32>
    %236 = vector.shape_cast %234 : vector<16x128xf32> to vector<1x16x128xf32>
    %237 = vector.broadcast %235 : vector<16x1x128xf32> to vector<16x16x128xf32>
    %238 = vector.broadcast %236 : vector<1x16x128xf32> to vector<16x16x128xf32>
    %239 = arith.mulf %237, %238 : vector<16x16x128xf32>
    %240 = vector.shape_cast %239 : vector<16x16x128xf32> to vector<256x128xf32>
    %241 = arith.truncf %240 : vector<256x128xf32> to vector<256x128xbf16>
    %242 = vector.extract_strided_slice %154 {offsets = [32, 0], sizes = [16, 128], strides = [1, 1]} : vector<48x128xf32> to vector<16x128xf32>
    %243 = vector.shape_cast %242 : vector<16x128xf32> to vector<16x1x128xf32>
    %244 = vector.shape_cast %163 : vector<16x128xf32> to vector<1x16x128xf32>
    %245 = vector.broadcast %243 : vector<16x1x128xf32> to vector<16x16x128xf32>
    %246 = vector.broadcast %244 : vector<1x16x128xf32> to vector<16x16x128xf32>
    %247 = arith.mulf %245, %246 : vector<16x16x128xf32>
    %248 = vector.shape_cast %247 : vector<16x16x128xf32> to vector<256x128xf32>
    %249 = arith.truncf %248 : vector<256x128xf32> to vector<256x128xbf16>
    %250 = tpu.concatenate %241, %249 in 0 : vector<256x128xbf16>, vector<256x128xbf16> -> vector<512x128xbf16>
    %251 = tpu.concatenate %216, %233, %250 in 1 : vector<512x128xbf16>, vector<512x128xbf16>, vector<512x128xbf16> -> vector<512x384xbf16>
    %cst_35 = arith.constant dense<0.000000e+00> : vector<32x128xf32>
    %252 = tpu.matmul %156, %199, %cst_35 {dimension_numbers = #tpu.dot_dimension_numbers<[1], [0], [0], [1], [0, 0, 1, 1], [], []>} : vector<32x1024xbf16>, vector<1024x128xbf16>, vector<32x128xf32> -> vector<32x128xf32>
    %cst_36 = arith.constant dense<0.000000e+00> : vector<16x384xf32>
    %253 = tpu.matmul %158, %251, %cst_36 {dimension_numbers = #tpu.dot_dimension_numbers<[1], [0], [0], [1], [0, 0, 1, 1], [], []>} : vector<16x512xbf16>, vector<512x384xbf16>, vector<16x384xf32> -> vector<16x384xf32>
    %254 = vector.extract_strided_slice %252 {offsets = [0, 0], sizes = [16, 128], strides = [1, 1]} : vector<32x128xf32> to vector<16x128xf32>
    %255 = arith.negf %254 : vector<16x128xf32>
    %256 = math.exp %255 : vector<16x128xf32>
    %cst_37 = arith.constant 1.000000e+00 : f32
    %257 = vector.broadcast %cst_37 : f32 to vector<16x128xf32>
    %258 = arith.addf %257, %256 : vector<16x128xf32>
    %259 = arith.divf %257, %258 : vector<16x128xf32>
    %260 = vector.extract_strided_slice %252 {offsets = [16, 0], sizes = [16, 128], strides = [1, 1]} : vector<32x128xf32> to vector<16x128xf32>
    %261 = arith.negf %260 : vector<16x128xf32>
    %262 = math.exp %261 : vector<16x128xf32>
    %cst_38 = arith.constant 1.000000e+00 : f32
    %263 = vector.broadcast %cst_38 : f32 to vector<16x128xf32>
    %264 = arith.addf %263, %262 : vector<16x128xf32>
    %265 = arith.divf %263, %264 : vector<16x128xf32>
    %266 = vector.extract_strided_slice %253 {offsets = [0, 0], sizes = [16, 128], strides = [1, 1]} : vector<16x384xf32> to vector<16x128xf32>
    %267 = arith.mulf %265, %266 : vector<16x128xf32>
    %268 = vector.extract_strided_slice %253 {offsets = [0, 128], sizes = [16, 128], strides = [1, 1]} : vector<16x384xf32> to vector<16x128xf32>
    %269 = arith.mulf %265, %268 : vector<16x128xf32>
    %270 = vector.extract_strided_slice %253 {offsets = [0, 256], sizes = [16, 128], strides = [1, 1]} : vector<16x384xf32> to vector<16x128xf32>
    %271 = arith.mulf %265, %270 : vector<16x128xf32>
    %272 = tpu.concatenate %267, %269, %271 in 0 : vector<16x128xf32>, vector<16x128xf32>, vector<16x128xf32> -> vector<48x128xf32>
    %c2 = arith.constant 2 : index
    %c0_39 = arith.constant 0 : index
    %c0_40 = arith.constant 0 : index
    %273 = vector.load %arg4[%c2, %c0_39, %c0_40] : memref<3x32x1024xbf16, #tpu.memory_space<vmem>>, vector<1x32x1024xbf16>
    %274 = vector.shape_cast %273 : vector<1x32x1024xbf16> to vector<32x1024xbf16>
    %275 = arith.truncf %259 : vector<16x128xf32> to vector<16x128xbf16>
    %276 = arith.truncf %272 : vector<48x128xf32> to vector<48x128xbf16>
    %277 = tpu.concatenate %275, %276 in 0 : vector<16x128xbf16>, vector<48x128xbf16> -> vector<64x128xbf16>
    %cst_41 = arith.constant dense<0.000000e+00> : vector<64x128xf32>
    %278 = tpu.matmul %277, %33, %cst_41 {dimension_numbers = #tpu.dot_dimension_numbers<[1], [0], [0], [1], [0, 0, 1, 1], [], []>} : vector<64x128xbf16>, vector<128x128xbf16>, vector<64x128xf32> -> vector<64x128xf32>
    %279 = vector.extract_strided_slice %278 {offsets = [0, 0], sizes = [16, 128], strides = [1, 1]} : vector<64x128xf32> to vector<16x128xf32>
    %280 = vector.extract_strided_slice %278 {offsets = [16, 0], sizes = [48, 128], strides = [1, 1]} : vector<64x128xf32> to vector<48x128xf32>
    %281 = vector.shape_cast %259 : vector<16x128xf32> to vector<16x1x128xf32>
    %282 = vector.shape_cast %279 : vector<16x128xf32> to vector<1x16x128xf32>
    %283 = vector.broadcast %281 : vector<16x1x128xf32> to vector<16x16x128xf32>
    %284 = vector.broadcast %282 : vector<1x16x128xf32> to vector<16x16x128xf32>
    %285 = arith.mulf %283, %284 : vector<16x16x128xf32>
    %286 = vector.shape_cast %285 : vector<16x16x128xf32> to vector<256x128xf32>
    %287 = arith.truncf %286 : vector<256x128xf32> to vector<256x128xbf16>
    %288 = vector.extract_strided_slice %272 {offsets = [0, 0], sizes = [16, 128], strides = [1, 1]} : vector<48x128xf32> to vector<16x128xf32>
    %289 = vector.extract_strided_slice %280 {offsets = [0, 0], sizes = [16, 128], strides = [1, 1]} : vector<48x128xf32> to vector<16x128xf32>
    %290 = vector.shape_cast %288 : vector<16x128xf32> to vector<16x1x128xf32>
    %291 = vector.shape_cast %289 : vector<16x128xf32> to vector<1x16x128xf32>
    %292 = vector.broadcast %290 : vector<16x1x128xf32> to vector<16x16x128xf32>
    %293 = vector.broadcast %291 : vector<1x16x128xf32> to vector<16x16x128xf32>
    %294 = arith.mulf %292, %293 : vector<16x16x128xf32>
    %295 = vector.shape_cast %294 : vector<16x16x128xf32> to vector<256x128xf32>
    %296 = arith.truncf %295 : vector<256x128xf32> to vector<256x128xbf16>
    %297 = vector.extract_strided_slice %272 {offsets = [16, 0], sizes = [16, 128], strides = [1, 1]} : vector<48x128xf32> to vector<16x128xf32>
    %298 = vector.extract_strided_slice %280 {offsets = [16, 0], sizes = [16, 128], strides = [1, 1]} : vector<48x128xf32> to vector<16x128xf32>
    %299 = vector.shape_cast %297 : vector<16x128xf32> to vector<16x1x128xf32>
    %300 = vector.shape_cast %298 : vector<16x128xf32> to vector<1x16x128xf32>
    %301 = vector.broadcast %299 : vector<16x1x128xf32> to vector<16x16x128xf32>
    %302 = vector.broadcast %300 : vector<1x16x128xf32> to vector<16x16x128xf32>
    %303 = arith.mulf %301, %302 : vector<16x16x128xf32>
    %304 = vector.shape_cast %303 : vector<16x16x128xf32> to vector<256x128xf32>
    %305 = arith.truncf %304 : vector<256x128xf32> to vector<256x128xbf16>
    %306 = vector.extract_strided_slice %272 {offsets = [32, 0], sizes = [16, 128], strides = [1, 1]} : vector<48x128xf32> to vector<16x128xf32>
    %307 = vector.extract_strided_slice %280 {offsets = [32, 0], sizes = [16, 128], strides = [1, 1]} : vector<48x128xf32> to vector<16x128xf32>
    %308 = vector.shape_cast %306 : vector<16x128xf32> to vector<16x1x128xf32>
    %309 = vector.shape_cast %307 : vector<16x128xf32> to vector<1x16x128xf32>
    %310 = vector.broadcast %308 : vector<16x1x128xf32> to vector<16x16x128xf32>
    %311 = vector.broadcast %309 : vector<1x16x128xf32> to vector<16x16x128xf32>
    %312 = arith.mulf %310, %311 : vector<16x16x128xf32>
    %313 = vector.shape_cast %312 : vector<16x16x128xf32> to vector<256x128xf32>
    %314 = arith.truncf %313 : vector<256x128xf32> to vector<256x128xbf16>
    %315 = tpu.concatenate %287, %296, %305, %314 in 0 : vector<256x128xbf16>, vector<256x128xbf16>, vector<256x128xbf16>, vector<256x128xbf16> -> vector<1024x128xbf16>
    %cst_42 = arith.constant dense<0.000000e+00> : vector<32x128xf32>
    %316 = tpu.matmul %274, %315, %cst_42 {dimension_numbers = #tpu.dot_dimension_numbers<[1], [0], [0], [1], [0, 0, 1, 1], [], []>} : vector<32x1024xbf16>, vector<1024x128xbf16>, vector<32x128xf32> -> vector<32x128xf32>
    %317 = vector.extract_strided_slice %316 {offsets = [0, 0], sizes = [16, 128], strides = [1, 1]} : vector<32x128xf32> to vector<16x128xf32>
    %318 = arith.negf %317 : vector<16x128xf32>
    %319 = math.exp %318 : vector<16x128xf32>
    %cst_43 = arith.constant 1.000000e+00 : f32
    %320 = vector.broadcast %cst_43 : f32 to vector<16x128xf32>
    %321 = arith.addf %320, %319 : vector<16x128xf32>
    %322 = arith.divf %320, %321 : vector<16x128xf32>
    %c0_44 = arith.constant 0 : index
    %c0_45 = arith.constant 0 : index
    %323 = vector.load %arg6[%c0_44, %c0_45] : memref<1x16xf32, #tpu.memory_space<vmem>>, vector<1x16xf32>
    %cst_46 = arith.constant dense<0.000000e+00> : vector<1x128xf32>
    %324 = tpu.matmul %323, %322, %cst_46 {dimension_numbers = #tpu.dot_dimension_numbers<[1], [0], [0], [1], [0, 0, 1, 1], [], []>} : vector<1x16xf32>, vector<16x128xf32>, vector<1x128xf32> -> vector<1x128xf32>
    %cst_47 = arith.constant dense<0.000000e+00> : vector<1x2xf32>
    %325 = tpu.matmul %324, %1, %cst_47 {dimension_numbers = #tpu.dot_dimension_numbers<[1], [0], [0], [1], [0, 0, 1, 1], [], []>} : vector<1x128xf32>, vector<128x2xf32>, vector<1x2xf32> -> vector<1x2xf32>
    %c0_48 = arith.constant 0 : index
    %c0_49 = arith.constant 0 : index
    %326 = vector.load %arg7[%c0_48, %c0_49] : memref<1x2xf32, #tpu.memory_space<vmem>>, vector<1x2xf32>
    tpu.vector_store %arg7[%c0_48, %c0_49], %325 {strides = array<i32>} : memref<1x2xf32, #tpu.memory_space<vmem>>, vector<1x2xf32>,
    return
  }
}

</mosaic_0001>

<llo_original>
// kernel: tpu_custom_call.1
$region0: #{tpu_custom_call.1}
  #allocation0 [shape = 'u32[]', space=smem, size = 0x4, offset = 0x4, fixed_abs, tag = 'smem constant byte address 0x4 - core index']
  #allocation1 [shape = 'u32[144,128]{1,0:T(1,128)}', space=vmem, size = 0x12000, scoped, tag = 'internal scratch']
  %s0 = inlined_call_operand.vmem [shape: f32[128,3], index: 0, kind: input, shape index: {}]
  %s1 = inlined_call_operand.vmem [shape: f32[128,2], index: 1, kind: input, shape index: {}]
  %s2 = inlined_call_operand.vmem [shape: f32[16,128], index: 2, kind: input, shape index: {}]
  %s3 = inlined_call_operand.vmem [shape: f32[16,16], index: 3, kind: input, shape index: {}]
  %s4 = inlined_call_operand.hbm [shape: bf16[3,32,1024], index: 4, kind: input, shape index: {}]
  %s5 = inlined_call_operand.vmem [shape: bf16[3,16,512], index: 5, kind: input, shape index: {}]
  %s6 = inlined_call_operand.vmem [shape: f32[1,16], index: 6, kind: input, shape index: {}]
  %s7 = inlined_call_operand.hbm [shape: f32[1,2], index: 7, kind: output, shape index: {}]
  %s8 = sld [smem:[#allocation0]]
  $region42: #{tpu_custom_call.1} parent=0
    _
  %s10 = ssub.s32 1, %s8
  %s11 = scalar_select 0, %s10, %s8
  $region1: #{tpu_custom_call.1} parent=0
    #allocation2 [shape = 'u8[196608]{0}', space=vmem, size = 0x30000, scoped, tag = 'input window, operand 4, single buffered']
    #allocation3 [shape = 's32[1]{0}', space=sflag, size = 0x4, scoped, tag = 'scoped memory for tpu_custom_call.1']
    #allocation4 [shape = 's32[1]{0}', space=sflag, size = 0x4, scoped, tag = 'scoped memory for tpu_custom_call.1']
    #allocation5 [shape = 'u8[512]{0}', space=vmem, size = 0x400, scoped, tag = 'output window, operand 0, single buffered']
    %12 = vsyncpa [#allocation3], 0
    %13 = vsyncpa [#allocation4], 0
    // Predicated region
    $region2: #{tpu_custom_call.1} parent=1 // pred_check
      _
    $region3: #{tpu_custom_call.1} parent=1 // pred_check_branch
      %15 = sbr.rel (0) target = $region5
    $region4: #{tpu_custom_call.1} parent=1 // pred_region
      _
    $region5: #{tpu_custom_call.1} parent=1 // pred_fallthru
      _
    // Predicated region
    $region6: #{tpu_custom_call.1} parent=1 // pred_check
      _
    $region7: #{tpu_custom_call.1} parent=1 // pred_check_branch
      %17 = sbr.rel (0) target = $region9
    $region8: #{tpu_custom_call.1} parent=1 // pred_region
      _
    $region9: #{tpu_custom_call.1} parent=1 // pred_fallthru
      _
    // Predicated region
    $region10: #{tpu_custom_call.1} parent=1 // pred_check
      _
    $region11: #{tpu_custom_call.1} parent=1 // pred_check_branch
      %19 = sbr.rel (0) target = $region13
    $region12: #{tpu_custom_call.1} parent=1 // pred_region
      _
    $region13: #{tpu_custom_call.1} parent=1 // pred_fallthru
      _
    // Predicated region
    $region14: #{tpu_custom_call.1} parent=1 // pred_check
      _
    $region15: #{tpu_custom_call.1} parent=1 // pred_check_branch
      %21 = sbr.rel (0) target = $region17
    $region16: #{tpu_custom_call.1} parent=1 // pred_region
      _
    $region17: #{tpu_custom_call.1} parent=1 // pred_fallthru
      _
    // Predicated region
    $region18: #{tpu_custom_call.1} parent=1 // pred_check
      _
    $region19: #{tpu_custom_call.1} parent=1 // pred_check_branch
      %23 = sbr.rel (0) target = $region21
    $region20: #{tpu_custom_call.1} parent=1 // pred_region
      %s25 = ssub.s32 6144, 6144
      %26 = vsyncadd [#allocation3], %s25
      %s27 = sshll.u32 [#allocation2], 4
      %s28 = int_to_ptr.vmem [resolvable:$true] %s27
      %33 = dma.hbm_to_vmem [thread:$0]  %s4, 6144, %s28, [#allocation3], 512, 512, 32
    $region21: #{tpu_custom_call.1} parent=1 // pred_fallthru
      _
    // Predicated region
    $region22: #{tpu_custom_call.1} parent=1 // pred_check
      _
    $region23: #{tpu_custom_call.1} parent=1 // pred_check_branch
      %35 = sbr.rel (0) target = $region25
    $region24: #{tpu_custom_call.1} parent=1 // pred_region
      _
    $region25: #{tpu_custom_call.1} parent=1 // pred_fallthru
      _
    // Predicated region
    $region26: #{tpu_custom_call.1} parent=1 // pred_check
      _
    $region27: #{tpu_custom_call.1} parent=1 // pred_check_branch
      %37 = sbr.rel (0) target = $region29
    $region28: #{tpu_custom_call.1} parent=1 // pred_region
      _
    $region29: #{tpu_custom_call.1} parent=1 // pred_fallthru
      _
    // Predicated region
    $region30: #{tpu_custom_call.1} parent=1 // pred_check
      _
    $region31: #{tpu_custom_call.1} parent=1 // pred_check_branch
      %39 = sbr.rel (0) target = $region33
    $region32: #{tpu_custom_call.1} parent=1 // pred_region
      %40 = dma.done [#allocation3], 6144
    $region33: #{tpu_custom_call.1} parent=1 // pred_fallthru
      _
    %v42 = vld [vmem:[%s0] sm:$0xff]
    %v43 = vld [vmem:[%s0 + $0x8] sm:$0xff]
    %v44 = vld [vmem:[%s0 + $0x10] sm:$0xff]
    %v45 = vld [vmem:[%s0 + $0x18] sm:$0xff]
    %v46 = vld [vmem:[%s0 + $0x20] sm:$0xff]
    %v47 = vld [vmem:[%s0 + $0x28] sm:$0xff]
    %v48 = vld [vmem:[%s0 + $0x30] sm:$0xff]
    %v49 = vld [vmem:[%s0 + $0x38] sm:$0xff]
    %v50 = vld [vmem:[%s0 + $0x40] sm:$0xff]
    %v51 = vld [vmem:[%s0 + $0x48] sm:$0xff]
    %v52 = vld [vmem:[%s0 + $0x50] sm:$0xff]
    %v53 = vld [vmem:[%s0 + $0x58] sm:$0xff]
    %v54 = vld [vmem:[%s0 + $0x60] sm:$0xff]
    %v55 = vld [vmem:[%s0 + $0x68] sm:$0xff]
    %v56 = vld [vmem:[%s0 + $0x70] sm:$0xff]
    %v57 = vld [vmem:[%s0 + $0x78] sm:$0xff]
    %v58 = vld [vmem:[%s1] sm:$0xff]
    %v59 = vld [vmem:[%s1 + $0x8] sm:$0xff]
    %v60 = vld [vmem:[%s1 + $0x10] sm:$0xff]
    %v61 = vld [vmem:[%s1 + $0x18] sm:$0xff]
    %v62 = vld [vmem:[%s1 + $0x20] sm:$0xff]
    %v63 = vld [vmem:[%s1 + $0x28] sm:$0xff]
    %v64 = vld [vmem:[%s1 + $0x30] sm:$0xff]
    %v65 = vld [vmem:[%s1 + $0x38] sm:$0xff]
    %v66 = vld [vmem:[%s1 + $0x40] sm:$0xff]
    %v67 = vld [vmem:[%s1 + $0x48] sm:$0xff]
    %v68 = vld [vmem:[%s1 + $0x50] sm:$0xff]
    %v69 = vld [vmem:[%s1 + $0x58] sm:$0xff]
    %v70 = vld [vmem:[%s1 + $0x60] sm:$0xff]
    %v71 = vld [vmem:[%s1 + $0x68] sm:$0xff]
    %v72 = vld [vmem:[%s1 + $0x70] sm:$0xff]
    %v73 = vld [vmem:[%s1 + $0x78] sm:$0xff]
    %v74 = vld [vmem:[%s2] sm:$0xff]
    %v75 = vld [vmem:[%s2 + $0x8] sm:$0xff]
    %vm76 = vcmask 23552
    %v78 = vsel %vm76, %v42, 0
    %v81 = vsel %vm76, %v43, 0
    %v84 = vsel %vm76, %v44, 0
    %v87 = vsel %vm76, %v45, 0
    %v90 = vsel %vm76, %v46, 0
    %v93 = vsel %vm76, %v47, 0
    %v96 = vsel %vm76, %v48, 0
    %v99 = vsel %vm76, %v49, 0
    %v102 = vsel %vm76, %v50, 0
    %v105 = vsel %vm76, %v51, 0
    %v108 = vsel %vm76, %v52, 0
    %v111 = vsel %vm76, %v53, 0
    %v114 = vsel %vm76, %v54, 0
    %v117 = vsel %vm76, %v55, 0
    %v120 = vsel %vm76, %v56, 0
    %v123 = vsel %vm76, %v57, 0
    %125 = vmatprep.subr.mxu0 0.0
    %126 = vmatpush1.xpose.msra.mxu0 %v78
    %127 = vmatprep.subr.mxu0 0.0
    %128 = vmatpush1.xpose.msra.mxu0 %v81
    %129 = vmatprep.subr.mxu0 0.0
    %130 = vmatpush1.xpose.msra.mxu0 %v84
    %131 = vmatprep.subr.mxu0 0.0
    %132 = vmatpush1.xpose.msra.mxu0 %v87
    %133 = vmatprep.subr.mxu0 0.0
    %134 = vmatpush1.xpose.msra.mxu0 %v90
    %135 = vmatprep.subr.mxu0 0.0
    %136 = vmatpush1.xpose.msra.mxu0 %v93
    %137 = vmatprep.subr.mxu0 0.0
    %138 = vmatpush1.xpose.msra.mxu0 %v96
    %139 = vmatprep.subr.mxu0 0.0
    %140 = vmatpush1.xpose.msra.mxu0 %v99
    %141 = vmatprep.subr.mxu0 0.0
    %142 = vmatpush1.xpose.msra.mxu0 %v102
    %143 = vmatprep.subr.mxu0 0.0
    %144 = vmatpush1.xpose.msra.mxu0 %v105
    %145 = vmatprep.subr.mxu0 0.0
    %146 = vmatpush1.xpose.msra.mxu0 %v108
    %147 = vmatprep.subr.mxu0 0.0
    %148 = vmatpush1.xpose.msra.mxu0 %v111
    %149 = vmatprep.subr.mxu0 0.0
    %150 = vmatpush1.xpose.msra.mxu0 %v114
    %151 = vmatprep.subr.mxu0 0.0
    %152 = vmatpush1.xpose.msra.mxu0 %v117
    %153 = vmatprep.subr.mxu0 0.0
    %154 = vmatpush1.xpose.msra.mxu0 %v120
    %155 = vmatprep.subr.mxu0 0.0
    %156 = vmatpush1.xpose.msra.mxu0 %v123
    %157 = vmatprep.subr.mxu0 0.0
    %158 = vmatpush1.xpose.msra.mxu0 0.0
    %159 = vmatprep.subr.mxu0 0.0
    %160 = vmatpush1.xpose.msra.mxu0 0.0
    %161 = vmatprep.subr.mxu0 0.0
    %162 = vmatpush1.xpose.msra.mxu0 0.0
    %163 = vmatprep.subr.mxu0 0.0
    %164 = vmatpush1.xpose.msra.mxu0 0.0
    %165 = vmatprep.subr.mxu0 0.0
    %166 = vmatpush1.xpose.msra.mxu0 0.0
    %167 = vmatprep.subr.mxu0 0.0
    %168 = vmatpush1.xpose.msra.mxu0 0.0
    %169 = vmatprep.subr.mxu0 0.0
    %170 = vmatpush1.xpose.msra.mxu0 0.0
    %171 = vmatprep.subr.mxu0 0.0
    %172 = vmatpush1.xpose.msra.mxu0 0.0
    %173 = vmatprep.subr.mxu0 0.0
    %174 = vmatpush1.xpose.msra.mxu0 0.0
    %175 = vmatprep.subr.mxu0 0.0
    %176 = vmatpush1.xpose.msra.mxu0 0.0
    %177 = vmatprep.subr.mxu0 0.0
    %178 = vmatpush1.xpose.msra.mxu0 0.0
    %179 = vmatprep.subr.mxu0 0.0
    %180 = vmatpush1.xpose.msra.mxu0 0.0
    %181 = vmatprep.subr.mxu0 0.0
    %182 = vmatpush1.xpose.msra.mxu0 0.0
    %183 = vmatprep.subr.mxu0 0.0
    %184 = vmatpush1.xpose.msra.mxu0 0.0
    %185 = vmatprep.subr.mxu0 0.0
    %186 = vmatpush1.xpose.msra.mxu0 0.0
    %187 = vmatprep.subr.mxu0 0.0
    %188 = vmatpush1.xpose.msra.mxu0 0.0
    %189 = vmatprep.mubr.f32.mxu0 0.0
    %190 = vmatmul.mubr.f32.gmra.mrb[0].mxu0 %v78
    %v191 = vpop.f32.mrb[0].mxu0
    %v192 = vadd.f32 0.0, %v191
    %v193 = vpop.f32.mrb[0].mxu0
    %194 = vmatprep.mubr.f32.mxu0 0.0
    %195 = vmatmul.mubr.f32.gmra.mrb[0].mxu0 %v81
    %v196 = vpop.f32.mrb[0].mxu0
    %v197 = vadd.f32 0.0, %v196
    %v198 = vpop.f32.mrb[0].mxu0
    %199 = vmatprep.mubr.f32.mxu0 0.0
    %200 = vmatmul.mubr.f32.gmra.mrb[0].mxu0 %v84
    %v201 = vpop.f32.mrb[0].mxu0
    %v202 = vadd.f32 0.0, %v201
    %v203 = vpop.f32.mrb[0].mxu0
    %204 = vmatprep.mubr.f32.mxu0 0.0
    %205 = vmatmul.mubr.f32.gmra.mrb[0].mxu0 %v87
    %v206 = vpop.f32.mrb[0].mxu0
    %v207 = vadd.f32 0.0, %v206
    %v208 = vpop.f32.mrb[0].mxu0
    %209 = vmatprep.mubr.f32.mxu0 0.0
    %210 = vmatmul.mubr.f32.gmra.mrb[0].mxu0 %v90
    %v211 = vpop.f32.mrb[0].mxu0
    %v212 = vadd.f32 0.0, %v211
    %v213 = vpop.f32.mrb[0].mxu0
    %214 = vmatprep.mubr.f32.mxu0 0.0
    %215 = vmatmul.mubr.f32.gmra.mrb[0].mxu0 %v93
    %v216 = vpop.f32.mrb[0].mxu0
    %v217 = vadd.f32 0.0, %v216
    %v218 = vpop.f32.mrb[0].mxu0
    %219 = vmatprep.mubr.f32.mxu0 0.0
    %220 = vmatmul.mubr.f32.gmra.mrb[0].mxu0 %v96
    %v221 = vpop.f32.mrb[0].mxu0
    %v222 = vadd.f32 0.0, %v221
    %v223 = vpop.f32.mrb[0].mxu0
    %224 = vmatprep.mubr.f32.mxu0 0.0
    %225 = vmatmul.mubr.f32.gmra.mrb[0].mxu0 %v99
    %v226 = vpop.f32.mrb[0].mxu0
    %v227 = vadd.f32 0.0, %v226
    %v228 = vpop.f32.mrb[0].mxu0
    %229 = vmatprep.mubr.f32.mxu0 0.0
    %230 = vmatmul.mubr.f32.gmra.mrb[0].mxu0 %v102
    %v231 = vpop.f32.mrb[0].mxu0
    %v232 = vadd.f32 0.0, %v231
    %v233 = vpop.f32.mrb[0].mxu0
    %234 = vmatprep.mubr.f32.mxu0 0.0
    %235 = vmatmul.mubr.f32.gmra.mrb[0].mxu0 %v105
    %v236 = vpop.f32.mrb[0].mxu0
    %v237 = vadd.f32 0.0, %v236
    %v238 = vpop.f32.mrb[0].mxu0
    %239 = vmatprep.mubr.f32.mxu0 0.0
    %240 = vmatmul.mubr.f32.gmra.mrb[0].mxu0 %v108
    %v241 = vpop.f32.mrb[0].mxu0
    %v242 = vadd.f32 0.0, %v241
    %v243 = vpop.f32.mrb[0].mxu0
    %244 = vmatprep.mubr.f32.mxu0 0.0
    %245 = vmatmul.mubr.f32.gmra.mrb[0].mxu0 %v111
    %v246 = vpop.f32.mrb[0].mxu0
    %v247 = vadd.f32 0.0, %v246
    %v248 = vpop.f32.mrb[0].mxu0
    %249 = vmatprep.mubr.f32.mxu0 0.0
    %250 = vmatmul.mubr.f32.gmra.mrb[0].mxu0 %v114
    %v251 = vpop.f32.mrb[0].mxu0
    %v252 = vadd.f32 0.0, %v251
    %v253 = vpop.f32.mrb[0].mxu0
    %254 = vmatprep.mubr.f32.mxu0 0.0
    %255 = vmatmul.mubr.f32.gmra.mrb[0].mxu0 %v117
    %v256 = vpop.f32.mrb[0].mxu0
    %v257 = vadd.f32 0.0, %v256
    %v258 = vpop.f32.mrb[0].mxu0
    %259 = vmatprep.mubr.f32.mxu0 0.0
    %260 = vmatmul.mubr.f32.gmra.mrb[0].mxu0 %v120
    %v261 = vpop.f32.mrb[0].mxu0
    %v262 = vadd.f32 0.0, %v261
    %v263 = vpop.f32.mrb[0].mxu0
    %264 = vmatprep.mubr.f32.mxu0 0.0
    %265 = vmatmul.mubr.f32.gmra.mrb[0].mxu0 %v123
    %v266 = vpop.f32.mrb[0].mxu0
    %v267 = vadd.f32 0.0, %v266
    %v268 = vpop.f32.mrb[0].mxu0
    %269 = vdwg.mxu0
    %v270 = vlaneseq
    %v271 = vshrl.u32 %v270, 7
    %v272 = vadd.s32 %v271, 8
    %v273 = vadd.s32 %v271, 16
    %v274 = vadd.s32 %v271, 24
    %v275 = vadd.s32 %v271, 32
    %v276 = vadd.s32 %v271, 40
    %v277 = vadd.s32 %v271, 48
    %v278 = vadd.s32 %v271, 56
    %v279 = vadd.s32 %v271, 64
    %v280 = vadd.s32 %v271, 72
    %v281 = vadd.s32 %v271, 80
    %v282 = vadd.s32 %v271, 88
    %v283 = vadd.s32 %v271, 96
    %v284 = vadd.s32 %v271, 104
    %v285 = vadd.s32 %v271, 112
    %v286 = vadd.s32 %v271, 120
    %v287 = vlaneseq
    %v288 = vand.u32 %v287, 127
    %v289 = vmul.f32 %v42, %v42
    %v290 = vmul.f32 %v43, %v43
    %v291 = vmul.f32 %v44, %v44
    %v292 = vmul.f32 %v45, %v45
    %v293 = vmul.f32 %v46, %v46
    %v294 = vmul.f32 %v47, %v47
    %v295 = vmul.f32 %v48, %v48
    %v296 = vmul.f32 %v49, %v49
    %v297 = vmul.f32 %v50, %v50
    %v298 = vmul.f32 %v51, %v51
    %v299 = vmul.f32 %v52, %v52
    %v300 = vmul.f32 %v53, %v53
    %v301 = vmul.f32 %v54, %v54
    %v302 = vmul.f32 %v55, %v55
    %v303 = vmul.f32 %v56, %v56
    %v304 = vmul.f32 %v57, %v57
    %v305 = vsel %vm76, %v289, 0.0
    %306 = vadd.xlane.f32.xlu0 %v305
    %v307 = vpop.xlane.xlu0 %306
    %v308 = vsel %vm76, %v290, 0.0
    %309 = vadd.xlane.f32.xlu0 %v308
    %v310 = vpop.xlane.xlu0 %309
    %v311 = vsel %vm76, %v291, 0.0
    %312 = vadd.xlane.f32.xlu0 %v311
    %v313 = vpop.xlane.xlu0 %312
    %v314 = vsel %vm76, %v292, 0.0
    %315 = vadd.xlane.f32.xlu0 %v314
    %v316 = vpop.xlane.xlu0 %315
    %v317 = vsel %vm76, %v293, 0.0
    %318 = vadd.xlane.f32.xlu0 %v317
    %v319 = vpop.xlane.xlu0 %318
    %v320 = vsel %vm76, %v294, 0.0
    %321 = vadd.xlane.f32.xlu0 %v320
    %v322 = vpop.xlane.xlu0 %321
    %v323 = vsel %vm76, %v295, 0.0
    %324 = vadd.xlane.f32.xlu0 %v323
    %v325 = vpop.xlane.xlu0 %324
    %v326 = vsel %vm76, %v296, 0.0
    %327 = vadd.xlane.f32.xlu0 %v326
    %v328 = vpop.xlane.xlu0 %327
    %v329 = vsel %vm76, %v297, 0.0
    %330 = vadd.xlane.f32.xlu0 %v329
    %v331 = vpop.xlane.xlu0 %330
    %v332 = vsel %vm76, %v298, 0.0
    %333 = vadd.xlane.f32.xlu0 %v332
    %v334 = vpop.xlane.xlu0 %333
    %v335 = vsel %vm76, %v299, 0.0
    %336 = vadd.xlane.f32.xlu0 %v335
    %v337 = vpop.xlane.xlu0 %336
    %v338 = vsel %vm76, %v300, 0.0
    %339 = vadd.xlane.f32.xlu0 %v338
    %v340 = vpop.xlane.xlu0 %339
    %v341 = vsel %vm76, %v301, 0.0
    %342 = vadd.xlane.f32.xlu0 %v341
    %v343 = vpop.xlane.xlu0 %342
    %v344 = vsel %vm76, %v302, 0.0
    %345 = vadd.xlane.f32.xlu0 %v344
    %v346 = vpop.xlane.xlu0 %345
    %v347 = vsel %vm76, %v303, 0.0
    %348 = vadd.xlane.f32.xlu0 %v347
    %v349 = vpop.xlane.xlu0 %348
    %v350 = vsel %vm76, %v304, 0.0
    %351 = vadd.xlane.f32.xlu0 %v350
    %v352 = vpop.xlane.xlu0 %351
    %v354 = vsel %vm76, 1.0, 0
    %v357 = vsel %vm76, %v289, 0
    %v360 = vsel %vm76, %v290, 0
    %v363 = vsel %vm76, %v291, 0
    %v366 = vsel %vm76, %v292, 0
    %v369 = vsel %vm76, %v293, 0
    %v372 = vsel %vm76, %v294, 0
    %v375 = vsel %vm76, %v295, 0
    %v378 = vsel %vm76, %v296, 0
    %v381 = vsel %vm76, %v297, 0
    %v384 = vsel %vm76, %v298, 0
    %v387 = vsel %vm76, %v299, 0
    %v390 = vsel %vm76, %v300, 0
    %v393 = vsel %vm76, %v301, 0
    %v396 = vsel %vm76, %v302, 0
    %v399 = vsel %vm76, %v303, 0
    %v402 = vsel %vm76, %v304, 0
    %404 = vmatprep.subr.mxu0 0.0
    %405 = vmatpush1.xpose.msra.mxu0 %v357
    %406 = vmatprep.subr.mxu0 0.0
    %407 = vmatpush1.xpose.msra.mxu0 %v360
    %408 = vmatprep.subr.mxu0 0.0
    %409 = vmatpush1.xpose.msra.mxu0 %v363
    %410 = vmatprep.subr.mxu0 0.0
    %411 = vmatpush1.xpose.msra.mxu0 %v366
    %412 = vmatprep.subr.mxu0 0.0
    %413 = vmatpush1.xpose.msra.mxu0 %v369
    %414 = vmatprep.subr.mxu0 0.0
    %415 = vmatpush1.xpose.msra.mxu0 %v372
    %416 = vmatprep.subr.mxu0 0.0
    %417 = vmatpush1.xpose.msra.mxu0 %v375
    %418 = vmatprep.subr.mxu0 0.0
    %419 = vmatpush1.xpose.msra.mxu0 %v378
    %420 = vmatprep.subr.mxu0 0.0
    %421 = vmatpush1.xpose.msra.mxu0 %v381
    %422 = vmatprep.subr.mxu0 0.0
    %423 = vmatpush1.xpose.msra.mxu0 %v384
    %424 = vmatprep.subr.mxu0 0.0
    %425 = vmatpush1.xpose.msra.mxu0 %v387
    %426 = vmatprep.subr.mxu0 0.0
    %427 = vmatpush1.xpose.msra.mxu0 %v390
    %428 = vmatprep.subr.mxu0 0.0
    %429 = vmatpush1.xpose.msra.mxu0 %v393
    %430 = vmatprep.subr.mxu0 0.0
    %431 = vmatpush1.xpose.msra.mxu0 %v396
    %432 = vmatprep.subr.mxu0 0.0
    %433 = vmatpush1.xpose.msra.mxu0 %v399
    %434 = vmatprep.subr.mxu0 0.0
    %435 = vmatpush1.xpose.msra.mxu0 %v402
    %436 = vmatprep.subr.mxu0 0.0
    %437 = vmatpush1.xpose.msra.mxu0 0.0
    %438 = vmatprep.subr.mxu0 0.0
    %439 = vmatpush1.xpose.msra.mxu0 0.0
    %440 = vmatprep.subr.mxu0 0.0
    %441 = vmatpush1.xpose.msra.mxu0 0.0
    %442 = vmatprep.subr.mxu0 0.0
    %443 = vmatpush1.xpose.msra.mxu0 0.0
    %444 = vmatprep.subr.mxu0 0.0
    %445 = vmatpush1.xpose.msra.mxu0 0.0
    %446 = vmatprep.subr.mxu0 0.0
    %447 = vmatpush1.xpose.msra.mxu0 0.0
    %448 = vmatprep.subr.mxu0 0.0
    %449 = vmatpush1.xpose.msra.mxu0 0.0
    %450 = vmatprep.subr.mxu0 0.0
    %451 = vmatpush1.xpose.msra.mxu0 0.0
    %452 = vmatprep.subr.mxu0 0.0
    %453 = vmatpush1.xpose.msra.mxu0 0.0
    %454 = vmatprep.subr.mxu0 0.0
    %455 = vmatpush1.xpose.msra.mxu0 0.0
    %456 = vmatprep.subr.mxu0 0.0
    %457 = vmatpush1.xpose.msra.mxu0 0.0
    %458 = vmatprep.subr.mxu0 0.0
    %459 = vmatpush1.xpose.msra.mxu0 0.0
    %460 = vmatprep.subr.mxu0 0.0
    %461 = vmatpush1.xpose.msra.mxu0 0.0
    %462 = vmatprep.subr.mxu0 0.0
    %463 = vmatpush1.xpose.msra.mxu0 0.0
    %464 = vmatprep.subr.mxu0 0.0
    %465 = vmatpush1.xpose.msra.mxu0 0.0
    %466 = vmatprep.subr.mxu0 0.0
    %467 = vmatpush1.xpose.msra.mxu0 0.0
    %468 = vmatprep.mubr.f32.mxu0 0.0
    %469 = vmatmul.mubr.f32.gmra.mrb[0].mxu0 %v354
    %v470 = vpop.f32.mrb[0].mxu0
    %v471 = vadd.f32 0.0, %v470
    %v472 = vpop.f32.mrb[0].mxu0
    %473 = vdwg.mxu0
    %v474 = vlaneseq
    %v475 = vshrl.u32 %v474, 7
    %v476 = vsub.s32 0, %v475
    %v477 = vrot.slane %v471, %v476
    %v478 = vadd.f32 %v307, %v477
    %v479 = vadd.f32 %v310, %v477
    %v480 = vadd.f32 %v313, %v477
    %v481 = vadd.f32 %v316, %v477
    %v482 = vadd.f32 %v319, %v477
    %v483 = vadd.f32 %v322, %v477
    %v484 = vadd.f32 %v325, %v477
    %v485 = vadd.f32 %v328, %v477
    %v486 = vadd.f32 %v331, %v477
    %v487 = vadd.f32 %v334, %v477
    %v488 = vadd.f32 %v337, %v477
    %v489 = vadd.f32 %v340, %v477
    %v490 = vadd.f32 %v343, %v477
    %v491 = vadd.f32 %v346, %v477
    %v492 = vadd.f32 %v349, %v477
    %v493 = vadd.f32 %v352, %v477
    %v494 = vmul.f32 %v192, 2.0
    %v495 = vmul.f32 %v197, 2.0
    %v496 = vmul.f32 %v202, 2.0
    %v497 = vmul.f32 %v207, 2.0
    %v498 = vmul.f32 %v212, 2.0
    %v499 = vmul.f32 %v217, 2.0
    %v500 = vmul.f32 %v222, 2.0
    %v501 = vmul.f32 %v227, 2.0
    %v502 = vmul.f32 %v232, 2.0
    %v503 = vmul.f32 %v237, 2.0
    %v504 = vmul.f32 %v242, 2.0
    %v505 = vmul.f32 %v247, 2.0
    %v506 = vmul.f32 %v252, 2.0
    %v507 = vmul.f32 %v257, 2.0
    %v508 = vmul.f32 %v262, 2.0
    %v509 = vmul.f32 %v267, 2.0
    %v510 = vsub.f32 %v478, %v494
    %v511 = vsub.f32 %v479, %v495
    %v512 = vsub.f32 %v480, %v496
    %v513 = vsub.f32 %v481, %v497
    %v514 = vsub.f32 %v482, %v498
    %v515 = vsub.f32 %v483, %v499
    %v516 = vsub.f32 %v484, %v500
    %v517 = vsub.f32 %v485, %v501
    %v518 = vsub.f32 %v486, %v502
    %v519 = vsub.f32 %v487, %v503
    %v520 = vsub.f32 %v488, %v504
    %v521 = vsub.f32 %v489, %v505
    %v522 = vsub.f32 %v490, %v506
    %v523 = vsub.f32 %v491, %v507
    %v524 = vsub.f32 %v492, %v508
    %v525 = vsub.f32 %v493, %v509
    %vm526 = vcmask 15360
    %v528 = vsel %vm526, %v58, 0
    %v531 = vsel %vm526, %v59, 0
    %v534 = vsel %vm526, %v60, 0
    %v537 = vsel %vm526, %v61, 0
    %v540 = vsel %vm526, %v62, 0
    %v543 = vsel %vm526, %v63, 0
    %v546 = vsel %vm526, %v64, 0
    %v549 = vsel %vm526, %v65, 0
    %v552 = vsel %vm526, %v66, 0
    %v555 = vsel %vm526, %v67, 0
    %v558 = vsel %vm526, %v68, 0
    %v561 = vsel %vm526, %v69, 0
    %v564 = vsel %vm526, %v70, 0
    %v567 = vsel %vm526, %v71, 0
    %v570 = vsel %vm526, %v72, 0
    %v573 = vsel %vm526, %v73, 0
    %575 = vmatprep.subr.mxu0 0.0
    %576 = vmatpush1.xpose.msra.mxu0 %v528
    %577 = vmatprep.subr.mxu0 0.0
    %578 = vmatpush1.xpose.msra.mxu0 %v531
    %579 = vmatprep.subr.mxu0 0.0
    %580 = vmatpush1.xpose.msra.mxu0 %v534
    %581 = vmatprep.subr.mxu0 0.0
    %582 = vmatpush1.xpose.msra.mxu0 %v537
    %583 = vmatprep.subr.mxu0 0.0
    %584 = vmatpush1.xpose.msra.mxu0 %v540
    %585 = vmatprep.subr.mxu0 0.0
    %586 = vmatpush1.xpose.msra.mxu0 %v543
    %587 = vmatprep.subr.mxu0 0.0
    %588 = vmatpush1.xpose.msra.mxu0 %v546
    %589 = vmatprep.subr.mxu0 0.0
    %590 = vmatpush1.xpose.msra.mxu0 %v549
    %591 = vmatprep.subr.mxu0 0.0
    %592 = vmatpush1.xpose.msra.mxu0 %v552
    %593 = vmatprep.subr.mxu0 0.0
    %594 = vmatpush1.xpose.msra.mxu0 %v555
    %595 = vmatprep.subr.mxu0 0.0
    %596 = vmatpush1.xpose.msra.mxu0 %v558
    %597 = vmatprep.subr.mxu0 0.0
    %598 = vmatpush1.xpose.msra.mxu0 %v561
    %599 = vmatprep.subr.mxu0 0.0
    %600 = vmatpush1.xpose.msra.mxu0 %v564
    %601 = vmatprep.subr.mxu0 0.0
    %602 = vmatpush1.xpose.msra.mxu0 %v567
    %603 = vmatprep.subr.mxu0 0.0
    %604 = vmatpush1.xpose.msra.mxu0 %v570
    %605 = vmatprep.subr.mxu0 0.0
    %606 = vmatpush1.xpose.msra.mxu0 %v573
    %607 = vmatprep.subr.mxu0 0.0
    %608 = vmatpush1.xpose.msra.mxu0 0.0
    %609 = vmatprep.subr.mxu0 0.0
    %610 = vmatpush1.xpose.msra.mxu0 0.0
    %611 = vmatprep.subr.mxu0 0.0
    %612 = vmatpush1.xpose.msra.mxu0 0.0
    %613 = vmatprep.subr.mxu0 0.0
    %614 = vmatpush1.xpose.msra.mxu0 0.0
    %615 = vmatprep.subr.mxu0 0.0
    %616 = vmatpush1.xpose.msra.mxu0 0.0
    %617 = vmatprep.subr.mxu0 0.0
    %618 = vmatpush1.xpose.msra.mxu0 0.0
    %619 = vmatprep.subr.mxu0 0.0
    %620 = vmatpush1.xpose.msra.mxu0 0.0
    %621 = vmatprep.subr.mxu0 0.0
    %622 = vmatpush1.xpose.msra.mxu0 0.0
    %623 = vmatprep.subr.mxu0 0.0
    %624 = vmatpush1.xpose.msra.mxu0 0.0
    %625 = vmatprep.subr.mxu0 0.0
    %626 = vmatpush1.xpose.msra.mxu0 0.0
    %627 = vmatprep.subr.mxu0 0.0
    %628 = vmatpush1.xpose.msra.mxu0 0.0
    %629 = vmatprep.subr.mxu0 0.0
    %630 = vmatpush1.xpose.msra.mxu0 0.0
    %631 = vmatprep.subr.mxu0 0.0
    %632 = vmatpush1.xpose.msra.mxu0 0.0
    %633 = vmatprep.subr.mxu0 0.0
    %634 = vmatpush1.xpose.msra.mxu0 0.0
    %635 = vmatprep.subr.mxu0 0.0
    %636 = vmatpush1.xpose.msra.mxu0 0.0
    %637 = vmatprep.subr.mxu0 0.0
    %638 = vmatpush1.xpose.msra.mxu0 0.0
    %639 = vmatprep.mubr.f32.mxu0 0.0
    %640 = vmatmul.mubr.f32.gmra.mrb[0].mxu0 %v528
    %v641 = vpop.f32.mrb[0].mxu0
    %v642 = vadd.f32 0.0, %v641
    %v643 = vpop.f32.mrb[0].mxu0
    %644 = vmatprep.mubr.f32.mxu0 0.0
    %645 = vmatmul.mubr.f32.gmra.mrb[0].mxu0 %v531
    %v646 = vpop.f32.mrb[0].mxu0
    %v647 = vadd.f32 0.0, %v646
    %v648 = vpop.f32.mrb[0].mxu0
    %649 = vmatprep.mubr.f32.mxu0 0.0
    %650 = vmatmul.mubr.f32.gmra.mrb[0].mxu0 %v534
    %v651 = vpop.f32.mrb[0].mxu0
    %v652 = vadd.f32 0.0, %v651
    %v653 = vpop.f32.mrb[0].mxu0
    %654 = vmatprep.mubr.f32.mxu0 0.0
    %655 = vmatmul.mubr.f32.gmra.mrb[0].mxu0 %v537
    %v656 = vpop.f32.mrb[0].mxu0
    %v657 = vadd.f32 0.0, %v656
    %v658 = vpop.f32.mrb[0].mxu0
    %659 = vmatprep.mubr.f32.mxu0 0.0
    %660 = vmatmul.mubr.f32.gmra.mrb[0].mxu0 %v540
    %v661 = vpop.f32.mrb[0].mxu0
    %v662 = vadd.f32 0.0, %v661
    %v663 = vpop.f32.mrb[0].mxu0
    %664 = vmatprep.mubr.f32.mxu0 0.0
    %665 = vmatmul.mubr.f32.gmra.mrb[0].mxu0 %v543
    %v666 = vpop.f32.mrb[0].mxu0
    %v667 = vadd.f32 0.0, %v666
    %v668 = vpop.f32.mrb[0].mxu0
    %669 = vmatprep.mubr.f32.mxu0 0.0
    %670 = vmatmul.mubr.f32.gmra.mrb[0].mxu0 %v546
    %v671 = vpop.f32.mrb[0].mxu0
    %v672 = vadd.f32 0.0, %v671
    %v673 = vpop.f32.mrb[0].mxu0
    %674 = vmatprep.mubr.f32.mxu0 0.0
    %675 = vmatmul.mubr.f32.gmra.mrb[0].mxu0 %v549
    %v676 = vpop.f32.mrb[0].mxu0
    %v677 = vadd.f32 0.0, %v676
    %v678 = vpop.f32.mrb[0].mxu0
    %679 = vmatprep.mubr.f32.mxu0 0.0
    %680 = vmatmul.mubr.f32.gmra.mrb[0].mxu0 %v552
    %v681 = vpop.f32.mrb[0].mxu0
    %v682 = vadd.f32 0.0, %v681
    %v683 = vpop.f32.mrb[0].mxu0
    %684 = vmatprep.mubr.f32.mxu0 0.0
    %685 = vmatmul.mubr.f32.gmra.mrb[0].mxu0 %v555
    %v686 = vpop.f32.mrb[0].mxu0
    %v687 = vadd.f32 0.0, %v686
    %v688 = vpop.f32.mrb[0].mxu0
    %689 = vmatprep.mubr.f32.mxu0 0.0
    %690 = vmatmul.mubr.f32.gmra.mrb[0].mxu0 %v558
    %v691 = vpop.f32.mrb[0].mxu0
    %v692 = vadd.f32 0.0, %v691
    %v693 = vpop.f32.mrb[0].mxu0
    %694 = vmatprep.mubr.f32.mxu0 0.0
    %695 = vmatmul.mubr.f32.gmra.mrb[0].mxu0 %v561
    %v696 = vpop.f32.mrb[0].mxu0
    %v697 = vadd.f32 0.0, %v696
    %v698 = vpop.f32.mrb[0].mxu0
    %699 = vmatprep.mubr.f32.mxu0 0.0
    %700 = vmatmul.mubr.f32.gmra.mrb[0].mxu0 %v564
    %v701 = vpop.f32.mrb[0].mxu0
    %v702 = vadd.f32 0.0, %v701
    %v703 = vpop.f32.mrb[0].mxu0
    %704 = vmatprep.mubr.f32.mxu0 0.0
    %705 = vmatmul.mubr.f32.gmra.mrb[0].mxu0 %v567
    %v706 = vpop.f32.mrb[0].mxu0
    %v707 = vadd.f32 0.0, %v706
    %v708 = vpop.f32.mrb[0].mxu0
    %709 = vmatprep.mubr.f32.mxu0 0.0
    %710 = vmatmul.mubr.f32.gmra.mrb[0].mxu0 %v570
    %v711 = vpop.f32.mrb[0].mxu0
    %v712 = vadd.f32 0.0, %v711
    %v713 = vpop.f32.mrb[0].mxu0
    %714 = vmatprep.mubr.f32.mxu0 0.0
    %715 = vmatmul.mubr.f32.gmra.mrb[0].mxu0 %v573
    %v716 = vpop.f32.mrb[0].mxu0
    %v717 = vadd.f32 0.0, %v716
    %v718 = vpop.f32.mrb[0].mxu0
    %719 = vdwg.mxu0
    %vm720 = vcmp.le.f32.partialorder %v510, 25.0
    %vm721 = vcmp.le.f32.partialorder %v511, 25.0
    %vm722 = vcmp.le.f32.partialorder %v512, 25.0
    %vm723 = vcmp.le.f32.partialorder %v513, 25.0
    %vm724 = vcmp.le.f32.partialorder %v514, 25.0
    %vm725 = vcmp.le.f32.partialorder %v515, 25.0
    %vm726 = vcmp.le.f32.partialorder %v516, 25.0
    %vm727 = vcmp.le.f32.partialorder %v517, 25.0
    %vm728 = vcmp.le.f32.partialorder %v518, 25.0
    %vm729 = vcmp.le.f32.partialorder %v519, 25.0
    %vm730 = vcmp.le.f32.partialorder %v520, 25.0
    %vm731 = vcmp.le.f32.partialorder %v521, 25.0
    %vm732 = vcmp.le.f32.partialorder %v522, 25.0
    %vm733 = vcmp.le.f32.partialorder %v523, 25.0
    %vm734 = vcmp.le.f32.partialorder %v524, 25.0
    %vm735 = vcmp.le.f32.partialorder %v525, 25.0
    %vm736 = vcmp.ne.s32.totalorder %v271, %v288
    %vm737 = vcmp.ne.s32.totalorder %v272, %v288
    %vm738 = vcmp.ne.s32.totalorder %v273, %v288
    %vm739 = vcmp.ne.s32.totalorder %v274, %v288
    %vm740 = vcmp.ne.s32.totalorder %v275, %v288
    %vm741 = vcmp.ne.s32.totalorder %v276, %v288
    %vm742 = vcmp.ne.s32.totalorder %v277, %v288
    %vm743 = vcmp.ne.s32.totalorder %v278, %v288
    %vm744 = vcmp.ne.s32.totalorder %v279, %v288
    %vm745 = vcmp.ne.s32.totalorder %v280, %v288
    %vm746 = vcmp.ne.s32.totalorder %v281, %v288
    %vm747 = vcmp.ne.s32.totalorder %v282, %v288
    %vm748 = vcmp.ne.s32.totalorder %v283, %v288
    %vm749 = vcmp.ne.s32.totalorder %v284, %v288
    %vm750 = vcmp.ne.s32.totalorder %v285, %v288
    %vm751 = vcmp.ne.s32.totalorder %v286, %v288
    %vm752 = vmand %vm720, %vm736
    %vm753 = vmand %vm721, %vm737
    %vm754 = vmand %vm722, %vm738
    %vm755 = vmand %vm723, %vm739
    %vm756 = vmand %vm724, %vm740
    %vm757 = vmand %vm725, %vm741
    %vm758 = vmand %vm726, %vm742
    %vm759 = vmand %vm727, %vm743
    %vm760 = vmand %vm728, %vm744
    %vm761 = vmand %vm729, %vm745
    %vm762 = vmand %vm730, %vm746
    %vm763 = vmand %vm731, %vm747
    %vm764 = vmand %vm732, %vm748
    %vm765 = vmand %vm733, %vm749
    %vm766 = vmand %vm734, %vm750
    %vm767 = vmand %vm735, %vm751
    %v768 = vsel %vm752, %v642, 0.0
    %v769 = vsel %vm753, %v647, 0.0
    %v770 = vsel %vm754, %v652, 0.0
    %v771 = vsel %vm755, %v657, 0.0
    %v772 = vsel %vm756, %v662, 0.0
    %v773 = vsel %vm757, %v667, 0.0
    %v774 = vsel %vm758, %v672, 0.0
    %v775 = vsel %vm759, %v677, 0.0
    %v776 = vsel %vm760, %v682, 0.0
    %v777 = vsel %vm761, %v687, 0.0
    %v778 = vsel %vm762, %v692, 0.0
    %v779 = vsel %vm763, %v697, 0.0
    %v780 = vsel %vm764, %v702, 0.0
    %v781 = vsel %vm765, %v707, 0.0
    %v782 = vsel %vm766, %v712, 0.0
    %v783 = vsel %vm767, %v717, 0.0
    %v784 = vpack.c.bf16 %v769, %v768
    %v785 = vpack.c.bf16 %v771, %v770
    %v786 = vpack.c.bf16 %v773, %v772
    %v787 = vpack.c.bf16 %v775, %v774
    %v788 = vpack.c.bf16 %v777, %v776
    %v789 = vpack.c.bf16 %v779, %v778
    %v790 = vpack.c.bf16 %v781, %v780
    %v791 = vpack.c.bf16 %v783, %v782
    %vm792 = vcmp.le.s32.totalorder %v288, %v271
    %vm793 = vcmp.le.s32.totalorder %v288, %v272
    %vm794 = vcmp.le.s32.totalorder %v288, %v273
    %vm795 = vcmp.le.s32.totalorder %v288, %v274
    %vm796 = vcmp.le.s32.totalorder %v288, %v275
    %vm797 = vcmp.le.s32.totalorder %v288, %v276
    %vm798 = vcmp.le.s32.totalorder %v288, %v277
    %vm799 = vcmp.le.s32.totalorder %v288, %v278
    %vm800 = vcmp.le.s32.totalorder %v288, %v279
    %vm801 = vcmp.le.s32.totalorder %v288, %v280
    %vm802 = vcmp.le.s32.totalorder %v288, %v281
    %vm803 = vcmp.le.s32.totalorder %v288, %v282
    %vm804 = vcmp.le.s32.totalorder %v288, %v283
    %vm805 = vcmp.le.s32.totalorder %v288, %v284
    %vm806 = vcmp.le.s32.totalorder %v288, %v285
    %vm807 = vcmp.le.s32.totalorder %v288, %v286
    %v808 = vsel %vm792, 1, 0
    %v809 = vsel %vm793, 1, 0
    %v810 = vsel %vm794, 1, 0
    %v811 = vsel %vm795, 1, 0
    %v812 = vsel %vm796, 1, 0
    %v813 = vsel %vm797, 1, 0
    %v814 = vsel %vm798, 1, 0
    %v815 = vsel %vm799, 1, 0
    %v816 = vsel %vm800, 1, 0
    %v817 = vsel %vm801, 1, 0
    %v818 = vsel %vm802, 1, 0
    %v819 = vsel %vm803, 1, 0
    %v820 = vsel %vm804, 1, 0
    %v821 = vsel %vm805, 1, 0
    %v822 = vsel %vm806, 1, 0
    %v823 = vsel %vm807, 1, 0
    %v824 = vcvt.s32.f32 %v808
    %v825 = vcvt.s32.f32 %v809
    %v826 = vcvt.s32.f32 %v810
    %v827 = vcvt.s32.f32 %v811
    %v828 = vcvt.s32.f32 %v812
    %v829 = vcvt.s32.f32 %v813
    %v830 = vcvt.s32.f32 %v814
    %v831 = vcvt.s32.f32 %v815
    %v832 = vcvt.s32.f32 %v816
    %v833 = vcvt.s32.f32 %v817
    %v834 = vcvt.s32.f32 %v818
    %v835 = vcvt.s32.f32 %v819
    %v836 = vcvt.s32.f32 %v820
    %v837 = vcvt.s32.f32 %v821
    %v838 = vcvt.s32.f32 %v822
    %v839 = vcvt.s32.f32 %v823
    %v840 = vpack.c.bf16 %v825, %v824
    %v841 = vpack.c.bf16 %v827, %v826
    %v842 = vpack.c.bf16 %v829, %v828
    %v843 = vpack.c.bf16 %v831, %v830
    %v844 = vpack.c.bf16 %v833, %v832
    %v845 = vpack.c.bf16 %v835, %v834
    %v846 = vpack.c.bf16 %v837, %v836
    %v847 = vpack.c.bf16 %v839, %v838
    %848 = vmatprep.subr.bf16.mxu0 0
    %849 = vmatpush1.bf16.msra.mxu0 %v784
    %850 = vmatprep.subr.bf16.mxu0 0
    %851 = vmatpush1.bf16.msra.mxu0 %v785
    %852 = vmatprep.subr.bf16.mxu0 0
    %853 = vmatpush1.bf16.msra.mxu0 %v786
    %854 = vmatprep.subr.bf16.mxu0 0
    %855 = vmatpush1.bf16.msra.mxu0 %v787
    %856 = vmatprep.subr.bf16.mxu0 0
    %857 = vmatpush1.bf16.msra.mxu0 %v788
    %858 = vmatprep.subr.bf16.mxu0 0
    %859 = vmatpush1.bf16.msra.mxu0 %v789
    %860 = vmatprep.subr.bf16.mxu0 0
    %861 = vmatpush1.bf16.msra.mxu0 %v790
    %862 = vmatprep.subr.bf16.mxu0 0
    %863 = vmatpush1.bf16.msra.mxu0 %v791
    %864 = vmatprep.subr.bf16.mxu0 0
    %865 = vmatpush1.bf16.msra.mxu0 0
    %866 = vmatprep.subr.bf16.mxu0 0
    %867 = vmatpush1.bf16.msra.mxu0 0
    %868 = vmatprep.subr.bf16.mxu0 0
    %869 = vmatpush1.bf16.msra.mxu0 0
    %870 = vmatprep.subr.bf16.mxu0 0
    %871 = vmatpush1.bf16.msra.mxu0 0
    %872 = vmatprep.subr.bf16.mxu0 0
    %873 = vmatpush1.bf16.msra.mxu0 0
    %874 = vmatprep.subr.bf16.mxu0 0
    %875 = vmatpush1.bf16.msra.mxu0 0
    %876 = vmatprep.subr.bf16.mxu0 0
    %877 = vmatpush1.bf16.msra.mxu0 0
    %878 = vmatprep.subr.bf16.mxu0 0
    %879 = vmatpush1.bf16.msra.mxu0 0
    %880 = vmatprep.mubr.bf16.mxu0 0
    %881 = vmatmul.mubr.bf16.gmra.mrb[0].mxu0 %v840
    %v882 = vpop.f32.mrb[0].mxu0
    %v883 = vadd.f32 0.0, %v882
    %v884 = vpop.f32.mrb[0].mxu0
    %v885 = vpop.f32.mrb[0].mxu0
    %v886 = vadd.f32 0.0, %v885
    %v887 = vpop.f32.mrb[0].mxu0
    %888 = vmatprep.mubr.bf16.mxu0 0
    %889 = vmatmul.mubr.bf16.gmra.mrb[0].mxu0 %v841
    %v890 = vpop.f32.mrb[0].mxu0
    %v891 = vadd.f32 0.0, %v890
    %v892 = vpop.f32.mrb[0].mxu0
    %v893 = vpop.f32.mrb[0].mxu0
    %v894 = vadd.f32 0.0, %v893
    %v895 = vpop.f32.mrb[0].mxu0
    %896 = vmatprep.mubr.bf16.mxu0 0
    %897 = vmatmul.mubr.bf16.gmra.mrb[0].mxu0 %v842
    %v898 = vpop.f32.mrb[0].mxu0
    %v899 = vadd.f32 0.0, %v898
    %v900 = vpop.f32.mrb[0].mxu0
    %v901 = vpop.f32.mrb[0].mxu0
    %v902 = vadd.f32 0.0, %v901
    %v903 = vpop.f32.mrb[0].mxu0
    %904 = vmatprep.mubr.bf16.mxu0 0
    %905 = vmatmul.mubr.bf16.gmra.mrb[0].mxu0 %v843
    %v906 = vpop.f32.mrb[0].mxu0
    %v907 = vadd.f32 0.0, %v906
    %v908 = vpop.f32.mrb[0].mxu0
    %v909 = vpop.f32.mrb[0].mxu0
    %v910 = vadd.f32 0.0, %v909
    %v911 = vpop.f32.mrb[0].mxu0
    %912 = vmatprep.mubr.bf16.mxu0 0
    %913 = vmatmul.mubr.bf16.gmra.mrb[0].mxu0 %v844
    %v914 = vpop.f32.mrb[0].mxu0
    %v915 = vadd.f32 0.0, %v914
    %v916 = vpop.f32.mrb[0].mxu0
    %v917 = vpop.f32.mrb[0].mxu0
    %v918 = vadd.f32 0.0, %v917
    %v919 = vpop.f32.mrb[0].mxu0
    %920 = vmatprep.mubr.bf16.mxu0 0
    %921 = vmatmul.mubr.bf16.gmra.mrb[0].mxu0 %v845
    %v922 = vpop.f32.mrb[0].mxu0
    %v923 = vadd.f32 0.0, %v922
    %v924 = vpop.f32.mrb[0].mxu0
    %v925 = vpop.f32.mrb[0].mxu0
    %v926 = vadd.f32 0.0, %v925
    %v927 = vpop.f32.mrb[0].mxu0
    %928 = vmatprep.mubr.bf16.mxu0 0
    %929 = vmatmul.mubr.bf16.gmra.mrb[0].mxu0 %v846
    %v930 = vpop.f32.mrb[0].mxu0
    %v931 = vadd.f32 0.0, %v930
    %v932 = vpop.f32.mrb[0].mxu0
    %v933 = vpop.f32.mrb[0].mxu0
    %v934 = vadd.f32 0.0, %v933
    %v935 = vpop.f32.mrb[0].mxu0
    %936 = vmatprep.mubr.bf16.mxu0 0
    %937 = vmatmul.mubr.bf16.gmra.mrb[0].mxu0 %v847
    %v938 = vpop.f32.mrb[0].mxu0
    %v939 = vadd.f32 0.0, %v938
    %v940 = vpop.f32.mrb[0].mxu0
    %v941 = vpop.f32.mrb[0].mxu0
    %v942 = vadd.f32 0.0, %v941
    %v943 = vpop.f32.mrb[0].mxu0
    %944 = vdwg.mxu0
    %vm945 = vcmp.le.f32.partialorder %v883, 12.0
    %vm946 = vcmp.le.f32.partialorder %v886, 12.0
    %vm947 = vcmp.le.f32.partialorder %v891, 12.0
    %vm948 = vcmp.le.f32.partialorder %v894, 12.0
    %vm949 = vcmp.le.f32.partialorder %v899, 12.0
    %vm950 = vcmp.le.f32.partialorder %v902, 12.0
    %vm951 = vcmp.le.f32.partialorder %v907, 12.0
    %vm952 = vcmp.le.f32.partialorder %v910, 12.0
    %vm953 = vcmp.le.f32.partialorder %v915, 12.0
    %vm954 = vcmp.le.f32.partialorder %v918, 12.0
    %vm955 = vcmp.le.f32.partialorder %v923, 12.0
    %vm956 = vcmp.le.f32.partialorder %v926, 12.0
    %vm957 = vcmp.le.f32.partialorder %v931, 12.0
    %vm958 = vcmp.le.f32.partialorder %v934, 12.0
    %vm959 = vcmp.le.f32.partialorder %v939, 12.0
    %vm960 = vcmp.le.f32.partialorder %v942, 12.0
    %vm961 = vmpackc.low %vm946, %vm945
    %vm962 = vmpackc.low %vm948, %vm947
    %vm963 = vmpackc.low %vm950, %vm949
    %vm964 = vmpackc.low %vm952, %vm951
    %vm965 = vmpackc.low %vm954, %vm953
    %vm966 = vmpackc.low %vm956, %vm955
    %vm967 = vmpackc.low %vm958, %vm957
    %vm968 = vmpackc.low %vm960, %vm959
    %v969 = vsel %vm961, %v784, 0
    %v970 = vsel %vm962, %v785, 0
    %v971 = vsel %vm963, %v786, 0
    %v972 = vsel %vm964, %v787, 0
    %v973 = vsel %vm965, %v788, 0
    %v974 = vsel %vm966, %v789, 0
    %v975 = vsel %vm967, %v790, 0
    %v976 = vsel %vm968, %v791, 0
    %v977 = vld [vmem:[%s3] sm:$0xff]
    %v978 = vld [vmem:[%s3 + $0x8] sm:$0xff]
    %vm979 = vcmask 130048
    %v981 = vsel %vm979, %v977, 0
    %v984 = vsel %vm979, %v978, 0
    %986 = vmatprep.subr.mxu0 0.0
    %987 = vmatpush1.msra.mxu0 %v74
    %988 = vmatprep.subr.mxu0 0.0
    %989 = vmatpush1.msra.mxu0 %v75
    %990 = vmatprep.subr.mxu0 0.0
    %991 = vmatpush1.msra.mxu0 0.0
    %992 = vmatprep.subr.mxu0 0.0
    %993 = vmatpush1.msra.mxu0 0.0
    %994 = vmatprep.subr.mxu0 0.0
    %995 = vmatpush1.msra.mxu0 0.0
    %996 = vmatprep.subr.mxu0 0.0
    %997 = vmatpush1.msra.mxu0 0.0
    %998 = vmatprep.subr.mxu0 0.0
    %999 = vmatpush1.msra.mxu0 0.0
    %1000 = vmatprep.subr.mxu0 0.0
    %1001 = vmatpush1.msra.mxu0 0.0
    %1002 = vmatprep.subr.mxu0 0.0
    %1003 = vmatpush1.msra.mxu0 0.0
    %1004 = vmatprep.subr.mxu0 0.0
    %1005 = vmatpush1.msra.mxu0 0.0
    %1006 = vmatprep.subr.mxu0 0.0
    %1007 = vmatpush1.msra.mxu0 0.0
    %1008 = vmatprep.subr.mxu0 0.0
    %1009 = vmatpush1.msra.mxu0 0.0
    %1010 = vmatprep.subr.mxu0 0.0
    %1011 = vmatpush1.msra.mxu0 0.0
    %1012 = vmatprep.subr.mxu0 0.0
    %1013 = vmatpush1.msra.mxu0 0.0
    %1014 = vmatprep.subr.mxu0 0.0
    %1015 = vmatpush1.msra.mxu0 0.0
    %1016 = vmatprep.subr.mxu0 0.0
    %1017 = vmatpush1.msra.mxu0 0.0
    %1018 = vmatprep.subr.mxu0 0.0
    %1019 = vmatpush1.msra.mxu0 0.0
    %1020 = vmatprep.subr.mxu0 0.0
    %1021 = vmatpush1.msra.mxu0 0.0
    %1022 = vmatprep.subr.mxu0 0.0
    %1023 = vmatpush1.msra.mxu0 0.0
    %1024 = vmatprep.subr.mxu0 0.0
    %1025 = vmatpush1.msra.mxu0 0.0
    %1026 = vmatprep.subr.mxu0 0.0
    %1027 = vmatpush1.msra.mxu0 0.0
    %1028 = vmatprep.subr.mxu0 0.0
    %1029 = vmatpush1.msra.mxu0 0.0
    %1030 = vmatprep.subr.mxu0 0.0
    %1031 = vmatpush1.msra.mxu0 0.0
    %1032 = vmatprep.subr.mxu0 0.0
    %1033 = vmatpush1.msra.mxu0 0.0
    %1034 = vmatprep.subr.mxu0 0.0
    %1035 = vmatpush1.msra.mxu0 0.0
    %1036 = vmatprep.subr.mxu0 0.0
    %1037 = vmatpush1.msra.mxu0 0.0
    %1038 = vmatprep.subr.mxu0 0.0
    %1039 = vmatpush1.msra.mxu0 0.0
    %1040 = vmatprep.subr.mxu0 0.0
    %1041 = vmatpush1.msra.mxu0 0.0
    %1042 = vmatprep.subr.mxu0 0.0
    %1043 = vmatpush1.msra.mxu0 0.0
    %1044 = vmatprep.subr.mxu0 0.0
    %1045 = vmatpush1.msra.mxu0 0.0
    %1046 = vmatprep.subr.mxu0 0.0
    %1047 = vmatpush1.msra.mxu0 0.0
    %1048 = vmatprep.subr.mxu0 0.0
    %1049 = vmatpush1.msra.mxu0 0.0
    %1050 = vmatprep.mubr.f32.mxu0 0.0
    %1051 = vmatmul.mubr.f32.gmra.mrb[0].mxu0 %v981
    %v1052 = vpop.f32.mrb[0].mxu0
    %v1053 = vadd.f32 0.0, %v1052
    %v1054 = vpop.f32.mrb[0].mxu0
    %1055 = vmatprep.mubr.f32.mxu0 0.0
    %1056 = vmatmul.mubr.f32.gmra.mrb[0].mxu0 %v984
    %v1057 = vpop.f32.mrb[0].mxu0
    %v1058 = vadd.f32 0.0, %v1057
    %v1059 = vpop.f32.mrb[0].mxu0
    %1060 = vdwg.mxu0
    %v1061 = vld [vmem:[#allocation2] sm:$0xff]
    %v1062 = vld [vmem:[#allocation2 + $0x8] sm:$0xff]
    %v1063 = vld [vmem:[#allocation2 + $0x10] sm:$0xff]
    %v1064 = vld [vmem:[#allocation2 + $0x18] sm:$0xff]
    %v1065 = vld [vmem:[#allocation2 + $0x20] sm:$0xff]
    %v1066 = vld [vmem:[#allocation2 + $0x28] sm:$0xff]
    %v1067 = vld [vmem:[#allocation2 + $0x30] sm:$0xff]
    %v1068 = vld [vmem:[#allocation2 + $0x38] sm:$0xff]
    %v1069 = vld [vmem:[#allocation2 + $0x40] sm:$0xff]
    %v1070 = vld [vmem:[#allocation2 + $0x48] sm:$0xff]
    %v1071 = vld [vmem:[#allocation2 + $0x50] sm:$0xff]
    %v1072 = vld [vmem:[#allocation2 + $0x58] sm:$0xff]
    %v1073 = vld [vmem:[#allocation2 + $0x60] sm:$0xff]
    %v1074 = vld [vmem:[#allocation2 + $0x68] sm:$0xff]
    %v1075 = vld [vmem:[#allocation2 + $0x70] sm:$0xff]
    %v1076 = vld [vmem:[#allocation2 + $0x78] sm:$0xff]
    %v1077 = vld [vmem:[%s5] sm:$0xff]
    %v1078 = vld [vmem:[%s5 + $0x8] sm:$0xff]
    %v1079 = vld [vmem:[%s5 + $0x10] sm:$0xff]
    %v1080 = vld [vmem:[%s5 + $0x18] sm:$0xff]
    %v1081 = vpack.c.bf16 %v1058, %v1053
    %1082 = vmatprep.subr.bf16.mxu0 0
    %1083 = vmatpush1.bf16.msra.mxu0 %v969
    %1084 = vmatprep.subr.bf16.mxu0 0
    %1085 = vmatpush1.bf16.msra.mxu0 %v970
    %1086 = vmatprep.subr.bf16.mxu0 0
    %1087 = vmatpush1.bf16.msra.mxu0 %v971
    %1088 = vmatprep.subr.bf16.mxu0 0
    %1089 = vmatpush1.bf16.msra.mxu0 %v972
    %1090 = vmatprep.subr.bf16.mxu0 0
    %1091 = vmatpush1.bf16.msra.mxu0 %v973
    %1092 = vmatprep.subr.bf16.mxu0 0
    %1093 = vmatpush1.bf16.msra.mxu0 %v974
    %1094 = vmatprep.subr.bf16.mxu0 0
    %1095 = vmatpush1.bf16.msra.mxu0 %v975
    %1096 = vmatprep.subr.bf16.mxu0 0
    %1097 = vmatpush1.bf16.msra.mxu0 %v976
    %1098 = vmatprep.subr.bf16.mxu0 0
    %1099 = vmatpush1.bf16.msra.mxu0 0
    %1100 = vmatprep.subr.bf16.mxu0 0
    %1101 = vmatpush1.bf16.msra.mxu0 0
    %1102 = vmatprep.subr.bf16.mxu0 0
    %1103 = vmatpush1.bf16.msra.mxu0 0
    %1104 = vmatprep.subr.bf16.mxu0 0
    %1105 = vmatpush1.bf16.msra.mxu0 0
    %1106 = vmatprep.subr.bf16.mxu0 0
    %1107 = vmatpush1.bf16.msra.mxu0 0
    %1108 = vmatprep.subr.bf16.mxu0 0
    %1109 = vmatpush1.bf16.msra.mxu0 0
    %1110 = vmatprep.subr.bf16.mxu0 0
    %1111 = vmatpush1.bf16.msra.mxu0 0
    %1112 = vmatprep.subr.bf16.mxu0 0
    %1113 = vmatpush1.bf16.msra.mxu0 0
    %1114 = vmatprep.mubr.bf16.mxu0 0
    %1115 = vmatmul.mubr.bf16.gmra.mrb[0].mxu0 %v1081
    %v1116 = vpop.f32.mrb[0].mxu0
    %v1117 = vadd.f32 0.0, %v1116
    %v1118 = vpop.f32.mrb[0].mxu0
    %v1119 = vpop.f32.mrb[0].mxu0
    %v1120 = vadd.f32 0.0, %v1119
    %v1121 = vpop.f32.mrb[0].mxu0
    %1122 = vmatprep.mubr.bf16.mxu0 0
    %1123 = vmatmul.mubr.bf16.gmra.mrb[0].mxu0 0
    %v1124 = vpop.f32.mrb[0].mxu0
    %v1125 = vadd.f32 0.0, %v1124
    %v1126 = vpop.f32.mrb[0].mxu0
    %v1127 = vpop.f32.mrb[0].mxu0
    %v1128 = vadd.f32 0.0, %v1127
    %v1129 = vpop.f32.mrb[0].mxu0
    %1130 = vmatprep.mubr.bf16.mxu0 0
    %1131 = vmatmul.mubr.bf16.gmra.mrb[0].mxu0 0
    %v1132 = vpop.f32.mrb[0].mxu0
    %v1133 = vadd.f32 0.0, %v1132
    %v1134 = vpop.f32.mrb[0].mxu0
    %v1135 = vpop.f32.mrb[0].mxu0
    %v1136 = vadd.f32 0.0, %v1135
    %v1137 = vpop.f32.mrb[0].mxu0
    %1138 = vmatprep.mubr.bf16.mxu0 0
    %1139 = vmatmul.mubr.bf16.gmra.mrb[0].mxu0 0
    %v1140 = vpop.f32.mrb[0].mxu0
    %v1141 = vadd.f32 0.0, %v1140
    %v1142 = vpop.f32.mrb[0].mxu0
    %v1143 = vpop.f32.mrb[0].mxu0
    %v1144 = vadd.f32 0.0, %v1143
    %v1145 = vpop.f32.mrb[0].mxu0
    %1146 = vdwg.mxu0
    %v1149 = vcombine.high %v1053, %v1053
    %v1151 = vunpack.c.l.s4 1966171168
    %v1152 = vunpack.c.0.s8 %v1151
    %v1153 = vlaneseq
    %v1154 = vshrl.u32 %v1153, 7
    %v1155 = vsub.s32 %v1152, %v1154
    %v1156 = vrot.slane %v1053, %v1155
    %v1158 = vunpack.c.l.s4 1966171168
    %v1159 = vunpack.c.0.s8 %v1158
    %v1160 = vlaneseq
    %v1161 = vshrl.u32 %v1160, 7
    %v1162 = vsub.s32 %v1159, %v1161
    %v1163 = vrot.slane %v1149, %v1162
    %v1164 = vcombine.high %v1156, %v1156
    %v1165 = vcombine.high %v1163, %v1163
    %v1167 = vunpack.c.l.s4 1966171168
    %v1168 = vunpack.c.0.s8 %v1167
    %v1169 = vlaneseq
    %v1170 = vshrl.u32 %v1169, 7
    %v1171 = vsub.s32 %v1168, %v1170
    %v1172 = vrot.slane %v1156, %v1171
    %v1174 = vunpack.c.l.s4 1966171168
    %v1175 = vunpack.c.0.s8 %v1174
    %v1176 = vlaneseq
    %v1177 = vshrl.u32 %v1176, 7
    %v1178 = vsub.s32 %v1175, %v1177
    %v1179 = vrot.slane %v1163, %v1178
    %v1181 = vunpack.c.l.s4 1966171168
    %v1182 = vunpack.c.0.s8 %v1181
    %v1183 = vlaneseq
    %v1184 = vshrl.u32 %v1183, 7
    %v1185 = vsub.s32 %v1182, %v1184
    %v1186 = vrot.slane %v1164, %v1185
    %v1188 = vunpack.c.l.s4 1966171168
    %v1189 = vunpack.c.0.s8 %v1188
    %v1190 = vlaneseq
    %v1191 = vshrl.u32 %v1190, 7
    %v1192 = vsub.s32 %v1189, %v1191
    %v1193 = vrot.slane %v1165, %v1192
    %v1194 = vcombine.high %v1172, %v1172
    %v1195 = vcombine.high %v1179, %v1179
    %v1196 = vcombine.high %v1186, %v1186
    %v1197 = vcombine.high %v1193, %v1193
    %v1198 = vcombine.high %v1058, %v1058
    %v1200 = vunpack.c.l.s4 1966171168
    %v1201 = vunpack.c.0.s8 %v1200
    %v1202 = vlaneseq
    %v1203 = vshrl.u32 %v1202, 7
    %v1204 = vsub.s32 %v1201, %v1203
    %v1205 = vrot.slane %v1058, %v1204
    %v1207 = vunpack.c.l.s4 1966171168
    %v1208 = vunpack.c.0.s8 %v1207
    %v1209 = vlaneseq
    %v1210 = vshrl.u32 %v1209, 7
    %v1211 = vsub.s32 %v1208, %v1210
    %v1212 = vrot.slane %v1198, %v1211
    %v1213 = vcombine.high %v1205, %v1205
    %v1214 = vcombine.high %v1212, %v1212
    %v1216 = vunpack.c.l.s4 1966171168
    %v1217 = vunpack.c.0.s8 %v1216
    %v1218 = vlaneseq
    %v1219 = vshrl.u32 %v1218, 7
    %v1220 = vsub.s32 %v1217, %v1219
    %v1221 = vrot.slane %v1205, %v1220
    %v1223 = vunpack.c.l.s4 1966171168
    %v1224 = vunpack.c.0.s8 %v1223
    %v1225 = vlaneseq
    %v1226 = vshrl.u32 %v1225, 7
    %v1227 = vsub.s32 %v1224, %v1226
    %v1228 = vrot.slane %v1212, %v1227
    %v1230 = vunpack.c.l.s4 1966171168
    %v1231 = vunpack.c.0.s8 %v1230
    %v1232 = vlaneseq
    %v1233 = vshrl.u32 %v1232, 7
    %v1234 = vsub.s32 %v1231, %v1233
    %v1235 = vrot.slane %v1213, %v1234
    %v1237 = vunpack.c.l.s4 1966171168
    %v1238 = vunpack.c.0.s8 %v1237
    %v1239 = vlaneseq
    %v1240 = vshrl.u32 %v1239, 7
    %v1241 = vsub.s32 %v1238, %v1240
    %v1242 = vrot.slane %v1214, %v1241
    %v1243 = vcombine.high %v1221, %v1221
    %v1244 = vcombine.high %v1228, %v1228
    %v1245 = vcombine.high %v1235, %v1235
    %v1246 = vcombine.high %v1242, %v1242
    %v1247 = vlaneseq
    %v1248 = vshrl.u32 %v1247, 7
    %v1249 = vsub.s32 0, %v1248
    %v1250 = vrot.slane %v1172, %v1249
    %v1251 = vlaneseq
    %v1252 = vshrl.u32 %v1251, 7
    %v1253 = vsub.s32 0, %v1252
    %v1254 = vrot.slane %v1186, %v1253
    %v1255 = vlaneseq
    %v1256 = vshrl.u32 %v1255, 7
    %v1257 = vsub.s32 0, %v1256
    %v1258 = vrot.slane %v1194, %v1257
    %v1259 = vlaneseq
    %v1260 = vshrl.u32 %v1259, 7
    %v1261 = vsub.s32 0, %v1260
    %v1262 = vrot.slane %v1196, %v1261
    %v1263 = vlaneseq
    %v1264 = vshrl.u32 %v1263, 7
    %v1265 = vsub.s32 0, %v1264
    %v1266 = vrot.slane %v1179, %v1265
    %v1267 = vlaneseq
    %v1268 = vshrl.u32 %v1267, 7
    %v1269 = vsub.s32 0, %v1268
    %v1270 = vrot.slane %v1193, %v1269
    %v1271 = vlaneseq
    %v1272 = vshrl.u32 %v1271, 7
    %v1273 = vsub.s32 0, %v1272
    %v1274 = vrot.slane %v1195, %v1273
    %v1275 = vlaneseq
    %v1276 = vshrl.u32 %v1275, 7
    %v1277 = vsub.s32 0, %v1276
    %v1278 = vrot.slane %v1197, %v1277
    %v1279 = vlaneseq
    %v1280 = vshrl.u32 %v1279, 7
    %v1281 = vsub.s32 0, %v1280
    %v1282 = vrot.slane %v1221, %v1281
    %v1283 = vlaneseq
    %v1284 = vshrl.u32 %v1283, 7
    %v1285 = vsub.s32 0, %v1284
    %v1286 = vrot.slane %v1235, %v1285
    %v1287 = vlaneseq
    %v1288 = vshrl.u32 %v1287, 7
    %v1289 = vsub.s32 0, %v1288
    %v1290 = vrot.slane %v1243, %v1289
    %v1291 = vlaneseq
    %v1292 = vshrl.u32 %v1291, 7
    %v1293 = vsub.s32 0, %v1292
    %v1294 = vrot.slane %v1245, %v1293
    %v1295 = vlaneseq
    %v1296 = vshrl.u32 %v1295, 7
    %v1297 = vsub.s32 0, %v1296
    %v1298 = vrot.slane %v1228, %v1297
    %v1299 = vlaneseq
    %v1300 = vshrl.u32 %v1299, 7
    %v1301 = vsub.s32 0, %v1300
    %v1302 = vrot.slane %v1242, %v1301
    %v1303 = vlaneseq
    %v1304 = vshrl.u32 %v1303, 7
    %v1305 = vsub.s32 0, %v1304
    %v1306 = vrot.slane %v1244, %v1305
    %v1307 = vlaneseq
    %v1308 = vshrl.u32 %v1307, 7
    %v1309 = vsub.s32 0, %v1308
    %v1310 = vrot.slane %v1246, %v1309
    %v1327 = vmul.f32 %v1250, %v1117
    %v1328 = vmul.f32 %v1250, %v1120
    %v1329 = vmul.f32 %v1254, %v1117
    %v1330 = vmul.f32 %v1254, %v1120
    %v1331 = vmul.f32 %v1258, %v1117
    %v1332 = vmul.f32 %v1258, %v1120
    %v1333 = vmul.f32 %v1262, %v1117
    %v1334 = vmul.f32 %v1262, %v1120
    %v1335 = vmul.f32 %v1266, %v1117
    %v1336 = vmul.f32 %v1266, %v1120
    %v1337 = vmul.f32 %v1270, %v1117
    %v1338 = vmul.f32 %v1270, %v1120
    %v1339 = vmul.f32 %v1274, %v1117
    %v1340 = vmul.f32 %v1274, %v1120
    %v1341 = vmul.f32 %v1278, %v1117
    %v1342 = vmul.f32 %v1278, %v1120
    %v1343 = vmul.f32 %v1282, %v1117
    %v1344 = vmul.f32 %v1282, %v1120
    %v1345 = vmul.f32 %v1286, %v1117
    %v1346 = vmul.f32 %v1286, %v1120
    %v1347 = vmul.f32 %v1290, %v1117
    %v1348 = vmul.f32 %v1290, %v1120
    %v1349 = vmul.f32 %v1294, %v1117
    %v1350 = vmul.f32 %v1294, %v1120
    %v1351 = vmul.f32 %v1298, %v1117
    %v1352 = vmul.f32 %v1298, %v1120
    %v1353 = vmul.f32 %v1302, %v1117
    %v1354 = vmul.f32 %v1302, %v1120
    %v1355 = vmul.f32 %v1306, %v1117
    %v1356 = vmul.f32 %v1306, %v1120
    %v1357 = vmul.f32 %v1310, %v1117
    %v1358 = vmul.f32 %v1310, %v1120
    %v1359 = vpack.c.bf16 %v1328, %v1327
    %v1360 = vpack.c.bf16 %v1330, %v1329
    %v1361 = vpack.c.bf16 %v1332, %v1331
    %v1362 = vpack.c.bf16 %v1334, %v1333
    %v1363 = vpack.c.bf16 %v1336, %v1335
    %v1364 = vpack.c.bf16 %v1338, %v1337
    %v1365 = vpack.c.bf16 %v1340, %v1339
    %v1366 = vpack.c.bf16 %v1342, %v1341
    %v1367 = vpack.c.bf16 %v1344, %v1343
    %v1368 = vpack.c.bf16 %v1346, %v1345
    %v1369 = vpack.c.bf16 %v1348, %v1347
    %v1370 = vpack.c.bf16 %v1350, %v1349
    %v1371 = vpack.c.bf16 %v1352, %v1351
    %v1372 = vpack.c.bf16 %v1354, %v1353
    %v1373 = vpack.c.bf16 %v1356, %v1355
    %v1374 = vpack.c.bf16 %v1358, %v1357
    %v1375 = vmul.f32 %v1125, 0.0
    %v1376 = vmul.f32 %v1128, 0.0
    %v1377 = vpack.c.bf16 %v1376, %v1375
    %v1378 = vmul.f32 %v1133, 0.0
    %v1379 = vmul.f32 %v1136, 0.0
    %v1380 = vpack.c.bf16 %v1379, %v1378
    %v1381 = vmul.f32 %v1141, 0.0
    %v1382 = vmul.f32 %v1144, 0.0
    %v1383 = vpack.c.bf16 %v1382, %v1381
    %v1384 = vmul.f32 %v1250, %v1125
    %v1385 = vmul.f32 %v1250, %v1128
    %v1386 = vmul.f32 %v1254, %v1125
    %v1387 = vmul.f32 %v1254, %v1128
    %v1388 = vmul.f32 %v1258, %v1125
    %v1389 = vmul.f32 %v1258, %v1128
    %v1390 = vmul.f32 %v1262, %v1125
    %v1391 = vmul.f32 %v1262, %v1128
    %v1392 = vmul.f32 %v1266, %v1125
    %v1393 = vmul.f32 %v1266, %v1128
    %v1394 = vmul.f32 %v1270, %v1125
    %v1395 = vmul.f32 %v1270, %v1128
    %v1396 = vmul.f32 %v1274, %v1125
    %v1397 = vmul.f32 %v1274, %v1128
    %v1398 = vmul.f32 %v1278, %v1125
    %v1399 = vmul.f32 %v1278, %v1128
    %v1400 = vmul.f32 %v1282, %v1125
    %v1401 = vmul.f32 %v1282, %v1128
    %v1402 = vmul.f32 %v1286, %v1125
    %v1403 = vmul.f32 %v1286, %v1128
    %v1404 = vmul.f32 %v1290, %v1125
    %v1405 = vmul.f32 %v1290, %v1128
    %v1406 = vmul.f32 %v1294, %v1125
    %v1407 = vmul.f32 %v1294, %v1128
    %v1408 = vmul.f32 %v1298, %v1125
    %v1409 = vmul.f32 %v1298, %v1128
    %v1410 = vmul.f32 %v1302, %v1125
    %v1411 = vmul.f32 %v1302, %v1128
    %v1412 = vmul.f32 %v1306, %v1125
    %v1413 = vmul.f32 %v1306, %v1128
    %v1414 = vmul.f32 %v1310, %v1125
    %v1415 = vmul.f32 %v1310, %v1128
    %v1416 = vpack.c.bf16 %v1385, %v1384
    %v1417 = vpack.c.bf16 %v1387, %v1386
    %v1418 = vpack.c.bf16 %v1389, %v1388
    %v1419 = vpack.c.bf16 %v1391, %v1390
    %v1420 = vpack.c.bf16 %v1393, %v1392
    %v1421 = vpack.c.bf16 %v1395, %v1394
    %v1422 = vpack.c.bf16 %v1397, %v1396
    %v1423 = vpack.c.bf16 %v1399, %v1398
    %v1424 = vpack.c.bf16 %v1401, %v1400
    %v1425 = vpack.c.bf16 %v1403, %v1402
    %v1426 = vpack.c.bf16 %v1405, %v1404
    %v1427 = vpack.c.bf16 %v1407, %v1406
    %v1428 = vpack.c.bf16 %v1409, %v1408
    %v1429 = vpack.c.bf16 %v1411, %v1410
    %v1430 = vpack.c.bf16 %v1413, %v1412
    %v1431 = vpack.c.bf16 %v1415, %v1414
    %v1432 = vmul.f32 %v1117, 0.0
    %v1433 = vmul.f32 %v1120, 0.0
    %v1434 = vpack.c.bf16 %v1433, %v1432
    %v1435 = vmul.f32 %v1250, %v1133
    %v1436 = vmul.f32 %v1250, %v1136
    %v1437 = vmul.f32 %v1254, %v1133
    %v1438 = vmul.f32 %v1254, %v1136
    %v1439 = vmul.f32 %v1258, %v1133
    %v1440 = vmul.f32 %v1258, %v1136
    %v1441 = vmul.f32 %v1262, %v1133
    %v1442 = vmul.f32 %v1262, %v1136
    %v1443 = vmul.f32 %v1266, %v1133
    %v1444 = vmul.f32 %v1266, %v1136
    %v1445 = vmul.f32 %v1270, %v1133
    %v1446 = vmul.f32 %v1270, %v1136
    %v1447 = vmul.f32 %v1274, %v1133
    %v1448 = vmul.f32 %v1274, %v1136
    %v1449 = vmul.f32 %v1278, %v1133
    %v1450 = vmul.f32 %v1278, %v1136
    %v1451 = vmul.f32 %v1282, %v1133
    %v1452 = vmul.f32 %v1282, %v1136
    %v1453 = vmul.f32 %v1286, %v1133
    %v1454 = vmul.f32 %v1286, %v1136
    %v1455 = vmul.f32 %v1290, %v1133
    %v1456 = vmul.f32 %v1290, %v1136
    %v1457 = vmul.f32 %v1294, %v1133
    %v1458 = vmul.f32 %v1294, %v1136
    %v1459 = vmul.f32 %v1298, %v1133
    %v1460 = vmul.f32 %v1298, %v1136
    %v1461 = vmul.f32 %v1302, %v1133
    %v1462 = vmul.f32 %v1302, %v1136
    %v1463 = vmul.f32 %v1306, %v1133
    %v1464 = vmul.f32 %v1306, %v1136
    %v1465 = vmul.f32 %v1310, %v1133
    %v1466 = vmul.f32 %v1310, %v1136
    %v1467 = vpack.c.bf16 %v1436, %v1435
    %v1468 = vpack.c.bf16 %v1438, %v1437
    %v1469 = vpack.c.bf16 %v1440, %v1439
    %v1470 = vpack.c.bf16 %v1442, %v1441
    %v1471 = vpack.c.bf16 %v1444, %v1443
    %v1472 = vpack.c.bf16 %v1446, %v1445
    %v1473 = vpack.c.bf16 %v1448, %v1447
    %v1474 = vpack.c.bf16 %v1450, %v1449
    %v1475 = vpack.c.bf16 %v1452, %v1451
    %v1476 = vpack.c.bf16 %v1454, %v1453
    %v1477 = vpack.c.bf16 %v1456, %v1455
    %v1478 = vpack.c.bf16 %v1458, %v1457
    %v1479 = vpack.c.bf16 %v1460, %v1459
    %v1480 = vpack.c.bf16 %v1462, %v1461
    %v1481 = vpack.c.bf16 %v1464, %v1463
    %v1482 = vpack.c.bf16 %v1466, %v1465
    %v1483 = vmul.f32 %v1250, %v1141
    %v1484 = vmul.f32 %v1250, %v1144
    %v1485 = vmul.f32 %v1254, %v1141
    %v1486 = vmul.f32 %v1254, %v1144
    %v1487 = vmul.f32 %v1258, %v1141
    %v1488 = vmul.f32 %v1258, %v1144
    %v1489 = vmul.f32 %v1262, %v1141
    %v1490 = vmul.f32 %v1262, %v1144
    %v1491 = vmul.f32 %v1266, %v1141
    %v1492 = vmul.f32 %v1266, %v1144
    %v1493 = vmul.f32 %v1270, %v1141
    %v1494 = vmul.f32 %v1270, %v1144
    %v1495 = vmul.f32 %v1274, %v1141
    %v1496 = vmul.f32 %v1274, %v1144
    %v1497 = vmul.f32 %v1278, %v1141
    %v1498 = vmul.f32 %v1278, %v1144
    %v1499 = vmul.f32 %v1282, %v1141
    %v1500 = vmul.f32 %v1282, %v1144
    %v1501 = vmul.f32 %v1286, %v1141
    %v1502 = vmul.f32 %v1286, %v1144
    %v1503 = vmul.f32 %v1290, %v1141
    %v1504 = vmul.f32 %v1290, %v1144
    %v1505 = vmul.f32 %v1294, %v1141
    %v1506 = vmul.f32 %v1294, %v1144
    %v1507 = vmul.f32 %v1298, %v1141
    %v1508 = vmul.f32 %v1298, %v1144
    %v1509 = vmul.f32 %v1302, %v1141
    %v1510 = vmul.f32 %v1302, %v1144
    %v1511 = vmul.f32 %v1306, %v1141
    %v1512 = vmul.f32 %v1306, %v1144
    %v1513 = vmul.f32 %v1310, %v1141
    %v1514 = vmul.f32 %v1310, %v1144
    %v1515 = vpack.c.bf16 %v1484, %v1483
    %v1516 = vpack.c.bf16 %v1486, %v1485
    %v1517 = vpack.c.bf16 %v1488, %v1487
    %v1518 = vpack.c.bf16 %v1490, %v1489
    %v1519 = vpack.c.bf16 %v1492, %v1491
    %v1520 = vpack.c.bf16 %v1494, %v1493
    %v1521 = vpack.c.bf16 %v1496, %v1495
    %v1522 = vpack.c.bf16 %v1498, %v1497
    %v1523 = vpack.c.bf16 %v1500, %v1499
    %v1524 = vpack.c.bf16 %v1502, %v1501
    %v1525 = vpack.c.bf16 %v1504, %v1503
    %v1526 = vpack.c.bf16 %v1506, %v1505
    %v1527 = vpack.c.bf16 %v1508, %v1507
    %v1528 = vpack.c.bf16 %v1510, %v1509
    %v1529 = vpack.c.bf16 %v1512, %v1511
    %v1530 = vpack.c.bf16 %v1514, %v1513
    %v1547 = vunpack.c.l.b16 %v1061
    %v1548 = vunpack.c.h.b16 %v1061
    %v1549 = vunpack.c.l.b16 %v1062
    %v1550 = vunpack.c.h.b16 %v1062
    %v1551 = vunpack.c.l.b16 %v1063
    %v1552 = vunpack.c.h.b16 %v1063
    %v1553 = vunpack.c.l.b16 %v1064
    %v1554 = vunpack.c.h.b16 %v1064
    %v1555 = vunpack.c.l.b16 %v1065
    %v1556 = vunpack.c.h.b16 %v1065
    %v1557 = vunpack.c.l.b16 %v1066
    %v1558 = vunpack.c.h.b16 %v1066
    %v1559 = vunpack.c.l.b16 %v1067
    %v1560 = vunpack.c.h.b16 %v1067
    %v1561 = vunpack.c.l.b16 %v1068
    %v1562 = vunpack.c.h.b16 %v1068
    %v1563 = vunpack.c.l.b16 %v1069
    %v1564 = vunpack.c.h.b16 %v1069
    %v1565 = vunpack.c.l.b16 %v1070
    %v1566 = vunpack.c.h.b16 %v1070
    %v1567 = vunpack.c.l.b16 %v1071
    %v1568 = vunpack.c.h.b16 %v1071
    %v1569 = vunpack.c.l.b16 %v1072
    %v1570 = vunpack.c.h.b16 %v1072
    %v1571 = vunpack.c.l.b16 %v1073
    %v1572 = vunpack.c.h.b16 %v1073
    %v1573 = vunpack.c.l.b16 %v1074
    %v1574 = vunpack.c.h.b16 %v1074
    %v1575 = vunpack.c.l.b16 %v1075
    %v1576 = vunpack.c.h.b16 %v1075
    %v1577 = vunpack.c.l.b16 %v1076
    %v1578 = vunpack.c.h.b16 %v1076
    %v1579 = vpack.c.b16 %v1555, %v1547
    %v1580 = vpack.c.b16 %v1556, %v1548
    %v1581 = vpack.c.b16 %v1557, %v1549
    %v1582 = vpack.c.b16 %v1558, %v1550
    %v1583 = vpack.c.b16 %v1559, %v1551
    %v1584 = vpack.c.b16 %v1560, %v1552
    %v1585 = vpack.c.b16 %v1561, %v1553
    %v1586 = vpack.c.b16 %v1562, %v1554
    %v1587 = vpack.c.b16 %v1571, %v1563
    %v1588 = vpack.c.b16 %v1572, %v1564
    %v1589 = vpack.c.b16 %v1573, %v1565
    %v1590 = vpack.c.b16 %v1574, %v1566
    %v1591 = vpack.c.b16 %v1575, %v1567
    %v1592 = vpack.c.b16 %v1576, %v1568
    %v1593 = vpack.c.b16 %v1577, %v1569
    %v1594 = vpack.c.b16 %v1578, %v1570
    %1611 = vmatprep.subr.bf16.mxu0 0
    %1612 = vmatpush1.bf16.msra.mxu0 %v1359
    %1613 = vmatprep.subr.bf16.mxu0 0
    %1614 = vmatpush1.bf16.msra.mxu0 %v1360
    %1615 = vmatprep.subr.bf16.mxu0 0
    %1616 = vmatpush1.bf16.msra.mxu0 %v1361
    %1617 = vmatprep.subr.bf16.mxu0 0
    %1618 = vmatpush1.bf16.msra.mxu0 %v1362
    %1619 = vmatprep.subr.bf16.mxu0 0
    %1620 = vmatpush1.bf16.msra.mxu0 %v1363
    %1621 = vmatprep.subr.bf16.mxu0 0
    %1622 = vmatpush1.bf16.msra.mxu0 %v1364
    %1623 = vmatprep.subr.bf16.mxu0 0
    %1624 = vmatpush1.bf16.msra.mxu0 %v1365
    %1625 = vmatprep.subr.bf16.mxu0 0
    %1626 = vmatpush1.bf16.msra.mxu0 %v1366
    %1627 = vmatprep.subr.bf16.mxu0 0
    %1628 = vmatpush1.bf16.msra.mxu0 %v1367
    %1629 = vmatprep.subr.bf16.mxu0 0
    %1630 = vmatpush1.bf16.msra.mxu0 %v1368
    %1631 = vmatprep.subr.bf16.mxu0 0
    %1632 = vmatpush1.bf16.msra.mxu0 %v1369
    %1633 = vmatprep.subr.bf16.mxu0 0
    %1634 = vmatpush1.bf16.msra.mxu0 %v1370
    %1635 = vmatprep.subr.bf16.mxu0 0
    %1636 = vmatpush1.bf16.msra.mxu0 %v1371
    %1637 = vmatprep.subr.bf16.mxu0 0
    %1638 = vmatpush1.bf16.msra.mxu0 %v1372
    %1639 = vmatprep.subr.bf16.mxu0 0
    %1640 = vmatpush1.bf16.msra.mxu0 %v1373
    %1641 = vmatprep.subr.bf16.mxu0 0
    %1642 = vmatpush1.bf16.msra.mxu0 %v1374
    %1643 = vmatprep.mubr.bf16.mxu0 %v1580
    %1644 = vmatmul.mubr.bf16.gmra.mrb[0].mxu0 %v1579
    %v1645 = vpop.f32.mrb[0].mxu0
    %v1646 = vadd.f32 0.0, %v1645
    %v1647 = vpop.f32.mrb[0].mxu0
    %v1648 = vpop.f32.mrb[0].mxu0
    %v1649 = vadd.f32 0.0, %v1648
    %v1650 = vpop.f32.mrb[0].mxu0
    %1651 = vmatprep.mubr.bf16.mxu0 %v1588
    %1652 = vmatmul.mubr.bf16.gmra.mrb[0].mxu0 %v1587
    %v1653 = vpop.f32.mrb[0].mxu0
    %v1654 = vadd.f32 0.0, %v1653
    %v1655 = vpop.f32.mrb[0].mxu0
    %v1656 = vpop.f32.mrb[0].mxu0
    %v1657 = vadd.f32 0.0, %v1656
    %v1658 = vpop.f32.mrb[0].mxu0
    %1659 = vdwg.mxu0
    %1660 = vmatprep.subr.bf16.mxu0 0
    %1661 = vmatpush1.bf16.msra.mxu0 %v1377
    %1662 = vmatprep.subr.bf16.mxu0 0
    %1663 = vmatpush1.bf16.msra.mxu0 %v1377
    %1664 = vmatprep.subr.bf16.mxu0 0
    %1665 = vmatpush1.bf16.msra.mxu0 %v1377
    %1666 = vmatprep.subr.bf16.mxu0 0
    %1667 = vmatpush1.bf16.msra.mxu0 %v1377
    %1668 = vmatprep.subr.bf16.mxu0 0
    %1669 = vmatpush1.bf16.msra.mxu0 %v1377
    %1670 = vmatprep.subr.bf16.mxu0 0
    %1671 = vmatpush1.bf16.msra.mxu0 %v1377
    %1672 = vmatprep.subr.bf16.mxu0 0
    %1673 = vmatpush1.bf16.msra.mxu0 %v1377
    %1674 = vmatprep.subr.bf16.mxu0 0
    %1675 = vmatpush1.bf16.msra.mxu0 %v1377
    %1676 = vmatprep.subr.bf16.mxu0 0
    %1677 = vmatpush1.bf16.msra.mxu0 %v1377
    %1678 = vmatprep.subr.bf16.mxu0 0
    %1679 = vmatpush1.bf16.msra.mxu0 %v1377
    %1680 = vmatprep.subr.bf16.mxu0 0
    %1681 = vmatpush1.bf16.msra.mxu0 %v1377
    %1682 = vmatprep.subr.bf16.mxu0 0
    %1683 = vmatpush1.bf16.msra.mxu0 %v1377
    %1684 = vmatprep.subr.bf16.mxu0 0
    %1685 = vmatpush1.bf16.msra.mxu0 %v1377
    %1686 = vmatprep.subr.bf16.mxu0 0
    %1687 = vmatpush1.bf16.msra.mxu0 %v1377
    %1688 = vmatprep.subr.bf16.mxu0 0
    %1689 = vmatpush1.bf16.msra.mxu0 %v1377
    %1690 = vmatprep.subr.bf16.mxu0 0
    %1691 = vmatpush1.bf16.msra.mxu0 %v1377
    %1692 = vmatprep.mubr.bf16.mxu0 %v1582
    %1693 = vmatmul.mubr.bf16.gmra.mrb[0].mxu0 %v1581
    %v1694 = vpop.f32.mrb[0].mxu0
    %v1695 = vadd.f32 %v1646, %v1694
    %v1696 = vpop.f32.mrb[0].mxu0
    %v1697 = vpop.f32.mrb[0].mxu0
    %v1698 = vadd.f32 %v1649, %v1697
    %v1699 = vpop.f32.mrb[0].mxu0
    %1700 = vmatprep.mubr.bf16.mxu0 %v1590
    %1701 = vmatmul.mubr.bf16.gmra.mrb[0].mxu0 %v1589
    %v1702 = vpop.f32.mrb[0].mxu0
    %v1703 = vadd.f32 %v1654, %v1702
    %v1704 = vpop.f32.mrb[0].mxu0
    %v1705 = vpop.f32.mrb[0].mxu0
    %v1706 = vadd.f32 %v1657, %v1705
    %v1707 = vpop.f32.mrb[0].mxu0
    %1708 = vdwg.mxu0
    %1709 = vmatprep.subr.bf16.mxu0 0
    %1710 = vmatpush1.bf16.msra.mxu0 %v1380
    %1711 = vmatprep.subr.bf16.mxu0 0
    %1712 = vmatpush1.bf16.msra.mxu0 %v1380
    %1713 = vmatprep.subr.bf16.mxu0 0
    %1714 = vmatpush1.bf16.msra.mxu0 %v1380
    %1715 = vmatprep.subr.bf16.mxu0 0
    %1716 = vmatpush1.bf16.msra.mxu0 %v1380
    %1717 = vmatprep.subr.bf16.mxu0 0
    %1718 = vmatpush1.bf16.msra.mxu0 %v1380
    %1719 = vmatprep.subr.bf16.mxu0 0
    %1720 = vmatpush1.bf16.msra.mxu0 %v1380
    %1721 = vmatprep.subr.bf16.mxu0 0
    %1722 = vmatpush1.bf16.msra.mxu0 %v1380
    %1723 = vmatprep.subr.bf16.mxu0 0
    %1724 = vmatpush1.bf16.msra.mxu0 %v1380
    %1725 = vmatprep.subr.bf16.mxu0 0
    %1726 = vmatpush1.bf16.msra.mxu0 %v1380
    %1727 = vmatprep.subr.bf16.mxu0 0
    %1728 = vmatpush1.bf16.msra.mxu0 %v1380
    %1729 = vmatprep.subr.bf16.mxu0 0
    %1730 = vmatpush1.bf16.msra.mxu0 %v1380
    %1731 = vmatprep.subr.bf16.mxu0 0
    %1732 = vmatpush1.bf16.msra.mxu0 %v1380
    %1733 = vmatprep.subr.bf16.mxu0 0
    %1734 = vmatpush1.bf16.msra.mxu0 %v1380
    %1735 = vmatprep.subr.bf16.mxu0 0
    %1736 = vmatpush1.bf16.msra.mxu0 %v1380
    %1737 = vmatprep.subr.bf16.mxu0 0
    %1738 = vmatpush1.bf16.msra.mxu0 %v1380
    %1739 = vmatprep.subr.bf16.mxu0 0
    %1740 = vmatpush1.bf16.msra.mxu0 %v1380
    %1741 = vmatprep.mubr.bf16.mxu0 %v1584
    %1742 = vmatmul.mubr.bf16.gmra.mrb[0].mxu0 %v1583
    %v1743 = vpop.f32.mrb[0].mxu0
    %v1744 = vadd.f32 %v1695, %v1743
    %v1745 = vpop.f32.mrb[0].mxu0
    %v1746 = vpop.f32.mrb[0].mxu0
    %v1747 = vadd.f32 %v1698, %v1746
    %v1748 = vpop.f32.mrb[0].mxu0
    %1749 = vmatprep.mubr.bf16.mxu0 %v1592
    %1750 = vmatmul.mubr.bf16.gmra.mrb[0].mxu0 %v1591
    %v1751 = vpop.f32.mrb[0].mxu0
    %v1752 = vadd.f32 %v1703, %v1751
    %v1753 = vpop.f32.mrb[0].mxu0
    %v1754 = vpop.f32.mrb[0].mxu0
    %v1755 = vadd.f32 %v1706, %v1754
    %v1756 = vpop.f32.mrb[0].mxu0
    %1757 = vdwg.mxu0
    %1758 = vmatprep.subr.bf16.mxu0 0
    %1759 = vmatpush1.bf16.msra.mxu0 %v1383
    %1760 = vmatprep.subr.bf16.mxu0 0
    %1761 = vmatpush1.bf16.msra.mxu0 %v1383
    %1762 = vmatprep.subr.bf16.mxu0 0
    %1763 = vmatpush1.bf16.msra.mxu0 %v1383
    %1764 = vmatprep.subr.bf16.mxu0 0
    %1765 = vmatpush1.bf16.msra.mxu0 %v1383
    %1766 = vmatprep.subr.bf16.mxu0 0
    %1767 = vmatpush1.bf16.msra.mxu0 %v1383
    %1768 = vmatprep.subr.bf16.mxu0 0
    %1769 = vmatpush1.bf16.msra.mxu0 %v1383
    %1770 = vmatprep.subr.bf16.mxu0 0
    %1771 = vmatpush1.bf16.msra.mxu0 %v1383
    %1772 = vmatprep.subr.bf16.mxu0 0
    %1773 = vmatpush1.bf16.msra.mxu0 %v1383
    %1774 = vmatprep.subr.bf16.mxu0 0
    %1775 = vmatpush1.bf16.msra.mxu0 %v1383
    %1776 = vmatprep.subr.bf16.mxu0 0
    %1777 = vmatpush1.bf16.msra.mxu0 %v1383
    %1778 = vmatprep.subr.bf16.mxu0 0
    %1779 = vmatpush1.bf16.msra.mxu0 %v1383
    %1780 = vmatprep.subr.bf16.mxu0 0
    %1781 = vmatpush1.bf16.msra.mxu0 %v1383
    %1782 = vmatprep.subr.bf16.mxu0 0
    %1783 = vmatpush1.bf16.msra.mxu0 %v1383
    %1784 = vmatprep.subr.bf16.mxu0 0
    %1785 = vmatpush1.bf16.msra.mxu0 %v1383
    %1786 = vmatprep.subr.bf16.mxu0 0
    %1787 = vmatpush1.bf16.msra.mxu0 %v1383
    %1788 = vmatprep.subr.bf16.mxu0 0
    %1789 = vmatpush1.bf16.msra.mxu0 %v1383
    %1790 = vmatprep.mubr.bf16.mxu0 %v1586
    %1791 = vmatmul.mubr.bf16.gmra.mrb[0].mxu0 %v1585
    %v1792 = vpop.f32.mrb[0].mxu0
    %v1793 = vadd.f32 %v1744, %v1792
    %v1794 = vpop.f32.mrb[0].mxu0
    %v1795 = vpop.f32.mrb[0].mxu0
    %v1796 = vadd.f32 %v1747, %v1795
    %v1797 = vpop.f32.mrb[0].mxu0
    %1798 = vmatprep.mubr.bf16.mxu0 %v1594
    %1799 = vmatmul.mubr.bf16.gmra.mrb[0].mxu0 %v1593
    %v1800 = vpop.f32.mrb[0].mxu0
    %v1801 = vadd.f32 %v1752, %v1800
    %v1802 = vpop.f32.mrb[0].mxu0
    %v1803 = vpop.f32.mrb[0].mxu0
    %v1804 = vadd.f32 %v1755, %v1803
    %v1805 = vpop.f32.mrb[0].mxu0
    %1806 = vdwg.mxu0
    %v1811 = vunpack.c.l.b16 %v1077
    %v1812 = vunpack.c.h.b16 %v1077
    %v1813 = vunpack.c.l.b16 %v1078
    %v1814 = vunpack.c.h.b16 %v1078
    %v1815 = vunpack.c.l.b16 %v1079
    %v1816 = vunpack.c.h.b16 %v1079
    %v1817 = vunpack.c.l.b16 %v1080
    %v1818 = vunpack.c.h.b16 %v1080
    %v1819 = vpack.c.b16 %v1815, %v1811
    %v1820 = vpack.c.b16 %v1816, %v1812
    %v1821 = vpack.c.b16 %v1817, %v1813
    %v1822 = vpack.c.b16 %v1818, %v1814
    %1827 = vmatprep.subr.bf16.mxu0 %v1467
    %1828 = vmatpush1.bf16.msra.mxu0 %v1416
    %1829 = vmatprep.subr.bf16.mxu0 %v1468
    %1830 = vmatpush1.bf16.msra.mxu0 %v1417
    %1831 = vmatprep.subr.bf16.mxu0 %v1469
    %1832 = vmatpush1.bf16.msra.mxu0 %v1418
    %1833 = vmatprep.subr.bf16.mxu0 %v1470
    %1834 = vmatpush1.bf16.msra.mxu0 %v1419
    %1835 = vmatprep.subr.bf16.mxu0 %v1471
    %1836 = vmatpush1.bf16.msra.mxu0 %v1420
    %1837 = vmatprep.subr.bf16.mxu0 %v1472
    %1838 = vmatpush1.bf16.msra.mxu0 %v1421
    %1839 = vmatprep.subr.bf16.mxu0 %v1473
    %1840 = vmatpush1.bf16.msra.mxu0 %v1422
    %1841 = vmatprep.subr.bf16.mxu0 %v1474
    %1842 = vmatpush1.bf16.msra.mxu0 %v1423
    %1843 = vmatprep.subr.bf16.mxu0 %v1475
    %1844 = vmatpush1.bf16.msra.mxu0 %v1424
    %1845 = vmatprep.subr.bf16.mxu0 %v1476
    %1846 = vmatpush1.bf16.msra.mxu0 %v1425
    %1847 = vmatprep.subr.bf16.mxu0 %v1477
    %1848 = vmatpush1.bf16.msra.mxu0 %v1426
    %1849 = vmatprep.subr.bf16.mxu0 %v1478
    %1850 = vmatpush1.bf16.msra.mxu0 %v1427
    %1851 = vmatprep.subr.bf16.mxu0 %v1479
    %1852 = vmatpush1.bf16.msra.mxu0 %v1428
    %1853 = vmatprep.subr.bf16.mxu0 %v1480
    %1854 = vmatpush1.bf16.msra.mxu0 %v1429
    %1855 = vmatprep.subr.bf16.mxu0 %v1481
    %1856 = vmatpush1.bf16.msra.mxu0 %v1430
    %1857 = vmatprep.subr.bf16.mxu0 %v1482
    %1858 = vmatpush1.bf16.msra.mxu0 %v1431
    %1859 = vmatprep.mubr.bf16.mxu0 %v1820
    %1860 = vmatmul.mubr.bf16.gmra.mrb[0].mxu0 %v1819
    %v1861 = vpop.f32.mrb[0].mxu0
    %v1862 = vadd.f32 0.0, %v1861
    %v1863 = vpop.f32.mrb[0].mxu0
    %v1864 = vadd.f32 0.0, %v1863
    %v1865 = vpop.f32.mrb[0].mxu0
    %v1866 = vadd.f32 0.0, %v1865
    %v1867 = vpop.f32.mrb[0].mxu0
    %v1868 = vadd.f32 0.0, %v1867
    %1869 = vdwg.mxu0
    %1870 = vmatprep.subr.bf16.mxu0 %v1434
    %1871 = vmatpush1.bf16.msra.mxu0 %v1434
    %1872 = vmatprep.subr.bf16.mxu0 %v1434
    %1873 = vmatpush1.bf16.msra.mxu0 %v1434
    %1874 = vmatprep.subr.bf16.mxu0 %v1434
    %1875 = vmatpush1.bf16.msra.mxu0 %v1434
    %1876 = vmatprep.subr.bf16.mxu0 %v1434
    %1877 = vmatpush1.bf16.msra.mxu0 %v1434
    %1878 = vmatprep.subr.bf16.mxu0 %v1434
    %1879 = vmatpush1.bf16.msra.mxu0 %v1434
    %1880 = vmatprep.subr.bf16.mxu0 %v1434
    %1881 = vmatpush1.bf16.msra.mxu0 %v1434
    %1882 = vmatprep.subr.bf16.mxu0 %v1434
    %1883 = vmatpush1.bf16.msra.mxu0 %v1434
    %1884 = vmatprep.subr.bf16.mxu0 %v1434
    %1885 = vmatpush1.bf16.msra.mxu0 %v1434
    %1886 = vmatprep.subr.bf16.mxu0 %v1434
    %1887 = vmatpush1.bf16.msra.mxu0 %v1434
    %1888 = vmatprep.subr.bf16.mxu0 %v1434
    %1889 = vmatpush1.bf16.msra.mxu0 %v1434
    %1890 = vmatprep.subr.bf16.mxu0 %v1434
    %1891 = vmatpush1.bf16.msra.mxu0 %v1434
    %1892 = vmatprep.subr.bf16.mxu0 %v1434
    %1893 = vmatpush1.bf16.msra.mxu0 %v1434
    %1894 = vmatprep.subr.bf16.mxu0 %v1434
    %1895 = vmatpush1.bf16.msra.mxu0 %v1434
    %1896 = vmatprep.subr.bf16.mxu0 %v1434
    %1897 = vmatpush1.bf16.msra.mxu0 %v1434
    %1898 = vmatprep.subr.bf16.mxu0 %v1434
    %1899 = vmatpush1.bf16.msra.mxu0 %v1434
    %1900 = vmatprep.subr.bf16.mxu0 %v1434
    %1901 = vmatpush1.bf16.msra.mxu0 %v1434
    %1902 = vmatprep.mubr.bf16.mxu0 %v1822
    %1903 = vmatmul.mubr.bf16.gmra.mrb[0].mxu0 %v1821
    %v1904 = vpop.f32.mrb[0].mxu0
    %v1905 = vadd.f32 %v1862, %v1904
    %v1906 = vpop.f32.mrb[0].mxu0
    %v1907 = vadd.f32 %v1864, %v1906
    %v1908 = vpop.f32.mrb[0].mxu0
    %v1909 = vadd.f32 %v1866, %v1908
    %v1910 = vpop.f32.mrb[0].mxu0
    %v1911 = vadd.f32 %v1868, %v1910
    %1912 = vdwg.mxu0
    %1913 = vmatprep.subr.bf16.mxu0 0
    %1914 = vmatpush1.bf16.msra.mxu0 %v1515
    %1915 = vmatprep.subr.bf16.mxu0 0
    %1916 = vmatpush1.bf16.msra.mxu0 %v1516
    %1917 = vmatprep.subr.bf16.mxu0 0
    %1918 = vmatpush1.bf16.msra.mxu0 %v1517
    %1919 = vmatprep.subr.bf16.mxu0 0
    %1920 = vmatpush1.bf16.msra.mxu0 %v1518
    %1921 = vmatprep.subr.bf16.mxu0 0
    %1922 = vmatpush1.bf16.msra.mxu0 %v1519
    %1923 = vmatprep.subr.bf16.mxu0 0
    %1924 = vmatpush1.bf16.msra.mxu0 %v1520
    %1925 = vmatprep.subr.bf16.mxu0 0
    %1926 = vmatpush1.bf16.msra.mxu0 %v1521
    %1927 = vmatprep.subr.bf16.mxu0 0
    %1928 = vmatpush1.bf16.msra.mxu0 %v1522
    %1929 = vmatprep.subr.bf16.mxu0 0
    %1930 = vmatpush1.bf16.msra.mxu0 %v1523
    %1931 = vmatprep.subr.bf16.mxu0 0
    %1932 = vmatpush1.bf16.msra.mxu0 %v1524
    %1933 = vmatprep.subr.bf16.mxu0 0
    %1934 = vmatpush1.bf16.msra.mxu0 %v1525
    %1935 = vmatprep.subr.bf16.mxu0 0
    %1936 = vmatpush1.bf16.msra.mxu0 %v1526
    %1937 = vmatprep.subr.bf16.mxu0 0
    %1938 = vmatpush1.bf16.msra.mxu0 %v1527
    %1939 = vmatprep.subr.bf16.mxu0 0
    %1940 = vmatpush1.bf16.msra.mxu0 %v1528
    %1941 = vmatprep.subr.bf16.mxu0 0
    %1942 = vmatpush1.bf16.msra.mxu0 %v1529
    %1943 = vmatprep.subr.bf16.mxu0 0
    %1944 = vmatpush1.bf16.msra.mxu0 %v1530
    %1945 = vmatprep.mubr.bf16.mxu0 %v1820
    %1946 = vmatmul.mubr.bf16.gmra.mrb[0].mxu0 %v1819
    %v1947 = vpop.f32.mrb[0].mxu0
    %v1948 = vadd.f32 0.0, %v1947
    %v1949 = vpop.f32.mrb[0].mxu0
    %v1950 = vpop.f32.mrb[0].mxu0
    %v1951 = vadd.f32 0.0, %v1950
    %v1952 = vpop.f32.mrb[0].mxu0
    %1953 = vdwg.mxu0
    %1954 = vmatprep.subr.bf16.mxu0 0
    %1955 = vmatpush1.bf16.msra.mxu0 %v1434
    %1956 = vmatprep.subr.bf16.mxu0 0
    %1957 = vmatpush1.bf16.msra.mxu0 %v1434
    %1958 = vmatprep.subr.bf16.mxu0 0
    %1959 = vmatpush1.bf16.msra.mxu0 %v1434
    %1960 = vmatprep.subr.bf16.mxu0 0
    %1961 = vmatpush1.bf16.msra.mxu0 %v1434
    %1962 = vmatprep.subr.bf16.mxu0 0
    %1963 = vmatpush1.bf16.msra.mxu0 %v1434
    %1964 = vmatprep.subr.bf16.mxu0 0
    %1965 = vmatpush1.bf16.msra.mxu0 %v1434
    %1966 = vmatprep.subr.bf16.mxu0 0
    %1967 = vmatpush1.bf16.msra.mxu0 %v1434
    %1968 = vmatprep.subr.bf16.mxu0 0
    %1969 = vmatpush1.bf16.msra.mxu0 %v1434
    %1970 = vmatprep.subr.bf16.mxu0 0
    %1971 = vmatpush1.bf16.msra.mxu0 %v1434
    %1972 = vmatprep.subr.bf16.mxu0 0
    %1973 = vmatpush1.bf16.msra.mxu0 %v1434
    %1974 = vmatprep.subr.bf16.mxu0 0
    %1975 = vmatpush1.bf16.msra.mxu0 %v1434
    %1976 = vmatprep.subr.bf16.mxu0 0
    %1977 = vmatpush1.bf16.msra.mxu0 %v1434
    %1978 = vmatprep.subr.bf16.mxu0 0
    %1979 = vmatpush1.bf16.msra.mxu0 %v1434
    %1980 = vmatprep.subr.bf16.mxu0 0
    %1981 = vmatpush1.bf16.msra.mxu0 %v1434
    %1982 = vmatprep.subr.bf16.mxu0 0
    %1983 = vmatpush1.bf16.msra.mxu0 %v1434
    %1984 = vmatprep.subr.bf16.mxu0 0
    %1985 = vmatpush1.bf16.msra.mxu0 %v1434
    %1986 = vmatprep.mubr.bf16.mxu0 %v1822
    %1987 = vmatmul.mubr.bf16.gmra.mrb[0].mxu0 %v1821
    %v1988 = vpop.f32.mrb[0].mxu0
    %v1989 = vadd.f32 %v1948, %v1988
    %v1990 = vpop.f32.mrb[0].mxu0
    %v1991 = vpop.f32.mrb[0].mxu0
    %v1992 = vadd.f32 %v1951, %v1991
    %v1993 = vpop.f32.mrb[0].mxu0
    %1994 = vdwg.mxu0
    %v1995 = vxor.u32 %v1793, 2147483648
    %v1996 = vxor.u32 %v1796, 2147483648
    %v1997 = vmul.f32 %v1995, 1.442695
    %v1998 = vpow.pop %v1997
    %v1999 = vmul.f32 %v1996, 1.442695
    %v2000 = vpow.pop %v1999
    %v2001 = vadd.f32 %v1998, 1.0
    %v2002 = vadd.f32 %v2000, 1.0
    %v2003 = vrcp.pop %v2001
    %v2004 = vmul.f32 1.0, %v2003
    %v2005 = vrcp.pop %v2002
    %v2006 = vmul.f32 1.0, %v2005
    %v2007 = vxor.u32 %v1801, 2147483648
    %v2008 = vxor.u32 %v1804, 2147483648
    %v2009 = vmul.f32 %v2007, 1.442695
    %v2010 = vpow.pop %v2009
    %v2011 = vmul.f32 %v2008, 1.442695
    %v2012 = vpow.pop %v2011
    %v2013 = vadd.f32 %v2010, 1.0
    %v2014 = vadd.f32 %v2012, 1.0
    %v2015 = vrcp.pop %v2013
    %v2016 = vmul.f32 1.0, %v2015
    %v2017 = vrcp.pop %v2014
    %v2018 = vmul.f32 1.0, %v2017
    %v2019 = vmul.f32 %v2016, %v1905
    %v2020 = vmul.f32 %v2018, %v1909
    %v2021 = vmul.f32 %v2016, %v1907
    %v2022 = vmul.f32 %v2018, %v1911
    %v2023 = vmul.f32 %v2016, %v1989
    %v2024 = vmul.f32 %v2018, %v1992
    %s2025 = scalar_lea.vmem [#allocation2], 128
    %v2026 = vld [vmem:[%s2025] sm:$0xff]
    %v2027 = vld [vmem:[%s2025 + $0x8] sm:$0xff]
    %v2028 = vld [vmem:[%s2025 + $0x10] sm:$0xff]
    %v2029 = vld [vmem:[%s2025 + $0x18] sm:$0xff]
    %v2030 = vld [vmem:[%s2025 + $0x20] sm:$0xff]
    %v2031 = vld [vmem:[%s2025 + $0x28] sm:$0xff]
    %v2032 = vld [vmem:[%s2025 + $0x30] sm:$0xff]
    %v2033 = vld [vmem:[%s2025 + $0x38] sm:$0xff]
    %v2034 = vld [vmem:[%s2025 + $0x40] sm:$0xff]
    %v2035 = vld [vmem:[%s2025 + $0x48] sm:$0xff]
    %v2036 = vld [vmem:[%s2025 + $0x50] sm:$0xff]
    %v2037 = vld [vmem:[%s2025 + $0x58] sm:$0xff]
    %v2038 = vld [vmem:[%s2025 + $0x60] sm:$0xff]
    %v2039 = vld [vmem:[%s2025 + $0x68] sm:$0xff]
    %v2040 = vld [vmem:[%s2025 + $0x70] sm:$0xff]
    %v2041 = vld [vmem:[%s2025 + $0x78] sm:$0xff]
    %s2042 = scalar_lea.vmem %s5, 32
    %v2043 = vld [vmem:[%s2042] sm:$0xff]
    %v2044 = vld [vmem:[%s2042 + $0x8] sm:$0xff]
    %v2045 = vld [vmem:[%s2042 + $0x10] sm:$0xff]
    %v2046 = vld [vmem:[%s2042 + $0x18] sm:$0xff]
    %v2047 = vpack.c.bf16 %v2006, %v2004
    %v2048 = vpack.c.bf16 %v2020, %v2019
    %v2049 = vpack.c.bf16 %v2022, %v2021
    %v2050 = vpack.c.bf16 %v2024, %v2023
    %2051 = vmatprep.subr.bf16.mxu0 0
    %2052 = vmatpush1.bf16.msra.mxu0 %v969
    %2053 = vmatprep.subr.bf16.mxu0 0
    %2054 = vmatpush1.bf16.msra.mxu0 %v970
    %2055 = vmatprep.subr.bf16.mxu0 0
    %2056 = vmatpush1.bf16.msra.mxu0 %v971
    %2057 = vmatprep.subr.bf16.mxu0 0
    %2058 = vmatpush1.bf16.msra.mxu0 %v972
    %2059 = vmatprep.subr.bf16.mxu0 0
    %2060 = vmatpush1.bf16.msra.mxu0 %v973
    %2061 = vmatprep.subr.bf16.mxu0 0
    %2062 = vmatpush1.bf16.msra.mxu0 %v974
    %2063 = vmatprep.subr.bf16.mxu0 0
    %2064 = vmatpush1.bf16.msra.mxu0 %v975
    %2065 = vmatprep.subr.bf16.mxu0 0
    %2066 = vmatpush1.bf16.msra.mxu0 %v976
    %2067 = vmatprep.subr.bf16.mxu0 0
    %2068 = vmatpush1.bf16.msra.mxu0 0
    %2069 = vmatprep.subr.bf16.mxu0 0
    %2070 = vmatpush1.bf16.msra.mxu0 0
    %2071 = vmatprep.subr.bf16.mxu0 0
    %2072 = vmatpush1.bf16.msra.mxu0 0
    %2073 = vmatprep.subr.bf16.mxu0 0
    %2074 = vmatpush1.bf16.msra.mxu0 0
    %2075 = vmatprep.subr.bf16.mxu0 0
    %2076 = vmatpush1.bf16.msra.mxu0 0
    %2077 = vmatprep.subr.bf16.mxu0 0
    %2078 = vmatpush1.bf16.msra.mxu0 0
    %2079 = vmatprep.subr.bf16.mxu0 0
    %2080 = vmatpush1.bf16.msra.mxu0 0
    %2081 = vmatprep.subr.bf16.mxu0 0
    %2082 = vmatpush1.bf16.msra.mxu0 0
    %2083 = vmatprep.mubr.bf16.mxu0 0
    %2084 = vmatmul.mubr.bf16.gmra.mrb[0].mxu0 %v2047
    %v2085 = vpop.f32.mrb[0].mxu0
    %v2086 = vadd.f32 0.0, %v2085
    %v2087 = vpop.f32.mrb[0].mxu0
    %v2088 = vpop.f32.mrb[0].mxu0
    %v2089 = vadd.f32 0.0, %v2088
    %v2090 = vpop.f32.mrb[0].mxu0
    %2091 = vmatprep.mubr.bf16.mxu0 0
    %2092 = vmatmul.mubr.bf16.gmra.mrb[0].mxu0 %v2048
    %v2093 = vpop.f32.mrb[0].mxu0
    %v2094 = vadd.f32 0.0, %v2093
    %v2095 = vpop.f32.mrb[0].mxu0
    %v2096 = vpop.f32.mrb[0].mxu0
    %v2097 = vadd.f32 0.0, %v2096
    %v2098 = vpop.f32.mrb[0].mxu0
    %2099 = vmatprep.mubr.bf16.mxu0 0
    %2100 = vmatmul.mubr.bf16.gmra.mrb[0].mxu0 %v2049
    %v2101 = vpop.f32.mrb[0].mxu0
    %v2102 = vadd.f32 0.0, %v2101
    %v2103 = vpop.f32.mrb[0].mxu0
    %v2104 = vpop.f32.mrb[0].mxu0
    %v2105 = vadd.f32 0.0, %v2104
    %v2106 = vpop.f32.mrb[0].mxu0
    %2107 = vmatprep.mubr.bf16.mxu0 0
    %2108 = vmatmul.mubr.bf16.gmra.mrb[0].mxu0 %v2050
    %v2109 = vpop.f32.mrb[0].mxu0
    %v2110 = vadd.f32 0.0, %v2109
    %v2111 = vpop.f32.mrb[0].mxu0
    %v2112 = vpop.f32.mrb[0].mxu0
    %v2113 = vadd.f32 0.0, %v2112
    %v2114 = vpop.f32.mrb[0].mxu0
    %2115 = vdwg.mxu0
    %v2118 = vcombine.high %v2004, %v2004
    %v2120 = vunpack.c.l.s4 1966171168
    %v2121 = vunpack.c.0.s8 %v2120
    %v2122 = vlaneseq
    %v2123 = vshrl.u32 %v2122, 7
    %v2124 = vsub.s32 %v2121, %v2123
    %v2125 = vrot.slane %v2004, %v2124
    %v2127 = vunpack.c.l.s4 1966171168
    %v2128 = vunpack.c.0.s8 %v2127
    %v2129 = vlaneseq
    %v2130 = vshrl.u32 %v2129, 7
    %v2131 = vsub.s32 %v2128, %v2130
    %v2132 = vrot.slane %v2118, %v2131
    %v2133 = vcombine.high %v2125, %v2125
    %v2134 = vcombine.high %v2132, %v2132
    %v2136 = vunpack.c.l.s4 1966171168
    %v2137 = vunpack.c.0.s8 %v2136
    %v2138 = vlaneseq
    %v2139 = vshrl.u32 %v2138, 7
    %v2140 = vsub.s32 %v2137, %v2139
    %v2141 = vrot.slane %v2125, %v2140
    %v2143 = vunpack.c.l.s4 1966171168
    %v2144 = vunpack.c.0.s8 %v2143
    %v2145 = vlaneseq
    %v2146 = vshrl.u32 %v2145, 7
    %v2147 = vsub.s32 %v2144, %v2146
    %v2148 = vrot.slane %v2132, %v2147
    %v2150 = vunpack.c.l.s4 1966171168
    %v2151 = vunpack.c.0.s8 %v2150
    %v2152 = vlaneseq
    %v2153 = vshrl.u32 %v2152, 7
    %v2154 = vsub.s32 %v2151, %v2153
    %v2155 = vrot.slane %v2133, %v2154
    %v2157 = vunpack.c.l.s4 1966171168
    %v2158 = vunpack.c.0.s8 %v2157
    %v2159 = vlaneseq
    %v2160 = vshrl.u32 %v2159, 7
    %v2161 = vsub.s32 %v2158, %v2160
    %v2162 = vrot.slane %v2134, %v2161
    %v2163 = vcombine.high %v2141, %v2141
    %v2164 = vcombine.high %v2148, %v2148
    %v2165 = vcombine.high %v2155, %v2155
    %v2166 = vcombine.high %v2162, %v2162
    %v2167 = vcombine.high %v2006, %v2006
    %v2169 = vunpack.c.l.s4 1966171168
    %v2170 = vunpack.c.0.s8 %v2169
    %v2171 = vlaneseq
    %v2172 = vshrl.u32 %v2171, 7
    %v2173 = vsub.s32 %v2170, %v2172
    %v2174 = vrot.slane %v2006, %v2173
    %v2176 = vunpack.c.l.s4 1966171168
    %v2177 = vunpack.c.0.s8 %v2176
    %v2178 = vlaneseq
    %v2179 = vshrl.u32 %v2178, 7
    %v2180 = vsub.s32 %v2177, %v2179
    %v2181 = vrot.slane %v2167, %v2180
    %v2182 = vcombine.high %v2174, %v2174
    %v2183 = vcombine.high %v2181, %v2181
    %v2185 = vunpack.c.l.s4 1966171168
    %v2186 = vunpack.c.0.s8 %v2185
    %v2187 = vlaneseq
    %v2188 = vshrl.u32 %v2187, 7
    %v2189 = vsub.s32 %v2186, %v2188
    %v2190 = vrot.slane %v2174, %v2189
    %v2192 = vunpack.c.l.s4 1966171168
    %v2193 = vunpack.c.0.s8 %v2192
    %v2194 = vlaneseq
    %v2195 = vshrl.u32 %v2194, 7
    %v2196 = vsub.s32 %v2193, %v2195
    %v2197 = vrot.slane %v2181, %v2196
    %v2199 = vunpack.c.l.s4 1966171168
    %v2200 = vunpack.c.0.s8 %v2199
    %v2201 = vlaneseq
    %v2202 = vshrl.u32 %v2201, 7
    %v2203 = vsub.s32 %v2200, %v2202
    %v2204 = vrot.slane %v2182, %v2203
    %v2206 = vunpack.c.l.s4 1966171168
    %v2207 = vunpack.c.0.s8 %v2206
    %v2208 = vlaneseq
    %v2209 = vshrl.u32 %v2208, 7
    %v2210 = vsub.s32 %v2207, %v2209
    %v2211 = vrot.slane %v2183, %v2210
    %v2212 = vcombine.high %v2190, %v2190
    %v2213 = vcombine.high %v2197, %v2197
    %v2214 = vcombine.high %v2204, %v2204
    %v2215 = vcombine.high %v2211, %v2211
    %v2216 = vlaneseq
    %v2217 = vshrl.u32 %v2216, 7
    %v2218 = vsub.s32 0, %v2217
    %v2219 = vrot.slane %v2141, %v2218
    %v2220 = vlaneseq
    %v2221 = vshrl.u32 %v2220, 7
    %v2222 = vsub.s32 0, %v2221
    %v2223 = vrot.slane %v2155, %v2222
    %v2224 = vlaneseq
    %v2225 = vshrl.u32 %v2224, 7
    %v2226 = vsub.s32 0, %v2225
    %v2227 = vrot.slane %v2163, %v2226
    %v2228 = vlaneseq
    %v2229 = vshrl.u32 %v2228, 7
    %v2230 = vsub.s32 0, %v2229
    %v2231 = vrot.slane %v2165, %v2230
    %v2232 = vlaneseq
    %v2233 = vshrl.u32 %v2232, 7
    %v2234 = vsub.s32 0, %v2233
    %v2235 = vrot.slane %v2148, %v2234
    %v2236 = vlaneseq
    %v2237 = vshrl.u32 %v2236, 7
    %v2238 = vsub.s32 0, %v2237
    %v2239 = vrot.slane %v2162, %v2238
    %v2240 = vlaneseq
    %v2241 = vshrl.u32 %v2240, 7
    %v2242 = vsub.s32 0, %v2241
    %v2243 = vrot.slane %v2164, %v2242
    %v2244 = vlaneseq
    %v2245 = vshrl.u32 %v2244, 7
    %v2246 = vsub.s32 0, %v2245
    %v2247 = vrot.slane %v2166, %v2246
    %v2248 = vlaneseq
    %v2249 = vshrl.u32 %v2248, 7
    %v2250 = vsub.s32 0, %v2249
    %v2251 = vrot.slane %v2190, %v2250
    %v2252 = vlaneseq
    %v2253 = vshrl.u32 %v2252, 7
    %v2254 = vsub.s32 0, %v2253
    %v2255 = vrot.slane %v2204, %v2254
    %v2256 = vlaneseq
    %v2257 = vshrl.u32 %v2256, 7
    %v2258 = vsub.s32 0, %v2257
    %v2259 = vrot.slane %v2212, %v2258
    %v2260 = vlaneseq
    %v2261 = vshrl.u32 %v2260, 7
    %v2262 = vsub.s32 0, %v2261
    %v2263 = vrot.slane %v2214, %v2262
    %v2264 = vlaneseq
    %v2265 = vshrl.u32 %v2264, 7
    %v2266 = vsub.s32 0, %v2265
    %v2267 = vrot.slane %v2197, %v2266
    %v2268 = vlaneseq
    %v2269 = vshrl.u32 %v2268, 7
    %v2270 = vsub.s32 0, %v2269
    %v2271 = vrot.slane %v2211, %v2270
    %v2272 = vlaneseq
    %v2273 = vshrl.u32 %v2272, 7
    %v2274 = vsub.s32 0, %v2273
    %v2275 = vrot.slane %v2213, %v2274
    %v2276 = vlaneseq
    %v2277 = vshrl.u32 %v2276, 7
    %v2278 = vsub.s32 0, %v2277
    %v2279 = vrot.slane %v2215, %v2278
    %v2296 = vmul.f32 %v2219, %v2086
    %v2297 = vmul.f32 %v2219, %v2089
    %v2298 = vmul.f32 %v2223, %v2086
    %v2299 = vmul.f32 %v2223, %v2089
    %v2300 = vmul.f32 %v2227, %v2086
    %v2301 = vmul.f32 %v2227, %v2089
    %v2302 = vmul.f32 %v2231, %v2086
    %v2303 = vmul.f32 %v2231, %v2089
    %v2304 = vmul.f32 %v2235, %v2086
    %v2305 = vmul.f32 %v2235, %v2089
    %v2306 = vmul.f32 %v2239, %v2086
    %v2307 = vmul.f32 %v2239, %v2089
    %v2308 = vmul.f32 %v2243, %v2086
    %v2309 = vmul.f32 %v2243, %v2089
    %v2310 = vmul.f32 %v2247, %v2086
    %v2311 = vmul.f32 %v2247, %v2089
    %v2312 = vmul.f32 %v2251, %v2086
    %v2313 = vmul.f32 %v2251, %v2089
    %v2314 = vmul.f32 %v2255, %v2086
    %v2315 = vmul.f32 %v2255, %v2089
    %v2316 = vmul.f32 %v2259, %v2086
    %v2317 = vmul.f32 %v2259, %v2089
    %v2318 = vmul.f32 %v2263, %v2086
    %v2319 = vmul.f32 %v2263, %v2089
    %v2320 = vmul.f32 %v2267, %v2086
    %v2321 = vmul.f32 %v2267, %v2089
    %v2322 = vmul.f32 %v2271, %v2086
    %v2323 = vmul.f32 %v2271, %v2089
    %v2324 = vmul.f32 %v2275, %v2086
    %v2325 = vmul.f32 %v2275, %v2089
    %v2326 = vmul.f32 %v2279, %v2086
    %v2327 = vmul.f32 %v2279, %v2089
    %v2328 = vpack.c.bf16 %v2297, %v2296
    %v2329 = vpack.c.bf16 %v2299, %v2298
    %v2330 = vpack.c.bf16 %v2301, %v2300
    %v2331 = vpack.c.bf16 %v2303, %v2302
    %v2332 = vpack.c.bf16 %v2305, %v2304
    %v2333 = vpack.c.bf16 %v2307, %v2306
    %v2334 = vpack.c.bf16 %v2309, %v2308
    %v2335 = vpack.c.bf16 %v2311, %v2310
    %v2336 = vpack.c.bf16 %v2313, %v2312
    %v2337 = vpack.c.bf16 %v2315, %v2314
    %v2338 = vpack.c.bf16 %v2317, %v2316
    %v2339 = vpack.c.bf16 %v2319, %v2318
    %v2340 = vpack.c.bf16 %v2321, %v2320
    %v2341 = vpack.c.bf16 %v2323, %v2322
    %v2342 = vpack.c.bf16 %v2325, %v2324
    %v2343 = vpack.c.bf16 %v2327, %v2326
    %v2346 = vcombine.high %v2019, %v2019
    %v2348 = vunpack.c.l.s4 1966171168
    %v2349 = vunpack.c.0.s8 %v2348
    %v2350 = vlaneseq
    %v2351 = vshrl.u32 %v2350, 7
    %v2352 = vsub.s32 %v2349, %v2351
    %v2353 = vrot.slane %v2019, %v2352
    %v2355 = vunpack.c.l.s4 1966171168
    %v2356 = vunpack.c.0.s8 %v2355
    %v2357 = vlaneseq
    %v2358 = vshrl.u32 %v2357, 7
    %v2359 = vsub.s32 %v2356, %v2358
    %v2360 = vrot.slane %v2346, %v2359
    %v2361 = vcombine.high %v2353, %v2353
    %v2362 = vcombine.high %v2360, %v2360
    %v2364 = vunpack.c.l.s4 1966171168
    %v2365 = vunpack.c.0.s8 %v2364
    %v2366 = vlaneseq
    %v2367 = vshrl.u32 %v2366, 7
    %v2368 = vsub.s32 %v2365, %v2367
    %v2369 = vrot.slane %v2353, %v2368
    %v2371 = vunpack.c.l.s4 1966171168
    %v2372 = vunpack.c.0.s8 %v2371
    %v2373 = vlaneseq
    %v2374 = vshrl.u32 %v2373, 7
    %v2375 = vsub.s32 %v2372, %v2374
    %v2376 = vrot.slane %v2360, %v2375
    %v2378 = vunpack.c.l.s4 1966171168
    %v2379 = vunpack.c.0.s8 %v2378
    %v2380 = vlaneseq
    %v2381 = vshrl.u32 %v2380, 7
    %v2382 = vsub.s32 %v2379, %v2381
    %v2383 = vrot.slane %v2361, %v2382
    %v2385 = vunpack.c.l.s4 1966171168
    %v2386 = vunpack.c.0.s8 %v2385
    %v2387 = vlaneseq
    %v2388 = vshrl.u32 %v2387, 7
    %v2389 = vsub.s32 %v2386, %v2388
    %v2390 = vrot.slane %v2362, %v2389
    %v2391 = vcombine.high %v2369, %v2369
    %v2392 = vcombine.high %v2376, %v2376
    %v2393 = vcombine.high %v2383, %v2383
    %v2394 = vcombine.high %v2390, %v2390
    %v2395 = vcombine.high %v2020, %v2020
    %v2397 = vunpack.c.l.s4 1966171168
    %v2398 = vunpack.c.0.s8 %v2397
    %v2399 = vlaneseq
    %v2400 = vshrl.u32 %v2399, 7
    %v2401 = vsub.s32 %v2398, %v2400
    %v2402 = vrot.slane %v2020, %v2401
    %v2404 = vunpack.c.l.s4 1966171168
    %v2405 = vunpack.c.0.s8 %v2404
    %v2406 = vlaneseq
    %v2407 = vshrl.u32 %v2406, 7
    %v2408 = vsub.s32 %v2405, %v2407
    %v2409 = vrot.slane %v2395, %v2408
    %v2410 = vcombine.high %v2402, %v2402
    %v2411 = vcombine.high %v2409, %v2409
    %v2413 = vunpack.c.l.s4 1966171168
    %v2414 = vunpack.c.0.s8 %v2413
    %v2415 = vlaneseq
    %v2416 = vshrl.u32 %v2415, 7
    %v2417 = vsub.s32 %v2414, %v2416
    %v2418 = vrot.slane %v2402, %v2417
    %v2420 = vunpack.c.l.s4 1966171168
    %v2421 = vunpack.c.0.s8 %v2420
    %v2422 = vlaneseq
    %v2423 = vshrl.u32 %v2422, 7
    %v2424 = vsub.s32 %v2421, %v2423
    %v2425 = vrot.slane %v2409, %v2424
    %v2427 = vunpack.c.l.s4 1966171168
    %v2428 = vunpack.c.0.s8 %v2427
    %v2429 = vlaneseq
    %v2430 = vshrl.u32 %v2429, 7
    %v2431 = vsub.s32 %v2428, %v2430
    %v2432 = vrot.slane %v2410, %v2431
    %v2434 = vunpack.c.l.s4 1966171168
    %v2435 = vunpack.c.0.s8 %v2434
    %v2436 = vlaneseq
    %v2437 = vshrl.u32 %v2436, 7
    %v2438 = vsub.s32 %v2435, %v2437
    %v2439 = vrot.slane %v2411, %v2438
    %v2440 = vcombine.high %v2418, %v2418
    %v2441 = vcombine.high %v2425, %v2425
    %v2442 = vcombine.high %v2432, %v2432
    %v2443 = vcombine.high %v2439, %v2439
    %v2444 = vlaneseq
    %v2445 = vshrl.u32 %v2444, 7
    %v2446 = vsub.s32 0, %v2445
    %v2447 = vrot.slane %v2369, %v2446
    %v2448 = vlaneseq
    %v2449 = vshrl.u32 %v2448, 7
    %v2450 = vsub.s32 0, %v2449
    %v2451 = vrot.slane %v2383, %v2450
    %v2452 = vlaneseq
    %v2453 = vshrl.u32 %v2452, 7
    %v2454 = vsub.s32 0, %v2453
    %v2455 = vrot.slane %v2391, %v2454
    %v2456 = vlaneseq
    %v2457 = vshrl.u32 %v2456, 7
    %v2458 = vsub.s32 0, %v2457
    %v2459 = vrot.slane %v2393, %v2458
    %v2460 = vlaneseq
    %v2461 = vshrl.u32 %v2460, 7
    %v2462 = vsub.s32 0, %v2461
    %v2463 = vrot.slane %v2376, %v2462
    %v2464 = vlaneseq
    %v2465 = vshrl.u32 %v2464, 7
    %v2466 = vsub.s32 0, %v2465
    %v2467 = vrot.slane %v2390, %v2466
    %v2468 = vlaneseq
    %v2469 = vshrl.u32 %v2468, 7
    %v2470 = vsub.s32 0, %v2469
    %v2471 = vrot.slane %v2392, %v2470
    %v2472 = vlaneseq
    %v2473 = vshrl.u32 %v2472, 7
    %v2474 = vsub.s32 0, %v2473
    %v2475 = vrot.slane %v2394, %v2474
    %v2476 = vlaneseq
    %v2477 = vshrl.u32 %v2476, 7
    %v2478 = vsub.s32 0, %v2477
    %v2479 = vrot.slane %v2418, %v2478
    %v2480 = vlaneseq
    %v2481 = vshrl.u32 %v2480, 7
    %v2482 = vsub.s32 0, %v2481
    %v2483 = vrot.slane %v2432, %v2482
    %v2484 = vlaneseq
    %v2485 = vshrl.u32 %v2484, 7
    %v2486 = vsub.s32 0, %v2485
    %v2487 = vrot.slane %v2440, %v2486
    %v2488 = vlaneseq
    %v2489 = vshrl.u32 %v2488, 7
    %v2490 = vsub.s32 0, %v2489
    %v2491 = vrot.slane %v2442, %v2490
    %v2492 = vlaneseq
    %v2493 = vshrl.u32 %v2492, 7
    %v2494 = vsub.s32 0, %v2493
    %v2495 = vrot.slane %v2425, %v2494
    %v2496 = vlaneseq
    %v2497 = vshrl.u32 %v2496, 7
    %v2498 = vsub.s32 0, %v2497
    %v2499 = vrot.slane %v2439, %v2498
    %v2500 = vlaneseq
    %v2501 = vshrl.u32 %v2500, 7
    %v2502 = vsub.s32 0, %v2501
    %v2503 = vrot.slane %v2441, %v2502
    %v2504 = vlaneseq
    %v2505 = vshrl.u32 %v2504, 7
    %v2506 = vsub.s32 0, %v2505
    %v2507 = vrot.slane %v2443, %v2506
    %v2524 = vmul.f32 %v2447, %v2094
    %v2525 = vmul.f32 %v2447, %v2097
    %v2526 = vmul.f32 %v2451, %v2094
    %v2527 = vmul.f32 %v2451, %v2097
    %v2528 = vmul.f32 %v2455, %v2094
    %v2529 = vmul.f32 %v2455, %v2097
    %v2530 = vmul.f32 %v2459, %v2094
    %v2531 = vmul.f32 %v2459, %v2097
    %v2532 = vmul.f32 %v2463, %v2094
    %v2533 = vmul.f32 %v2463, %v2097
    %v2534 = vmul.f32 %v2467, %v2094
    %v2535 = vmul.f32 %v2467, %v2097
    %v2536 = vmul.f32 %v2471, %v2094
    %v2537 = vmul.f32 %v2471, %v2097
    %v2538 = vmul.f32 %v2475, %v2094
    %v2539 = vmul.f32 %v2475, %v2097
    %v2540 = vmul.f32 %v2479, %v2094
    %v2541 = vmul.f32 %v2479, %v2097
    %v2542 = vmul.f32 %v2483, %v2094
    %v2543 = vmul.f32 %v2483, %v2097
    %v2544 = vmul.f32 %v2487, %v2094
    %v2545 = vmul.f32 %v2487, %v2097
    %v2546 = vmul.f32 %v2491, %v2094
    %v2547 = vmul.f32 %v2491, %v2097
    %v2548 = vmul.f32 %v2495, %v2094
    %v2549 = vmul.f32 %v2495, %v2097
    %v2550 = vmul.f32 %v2499, %v2094
    %v2551 = vmul.f32 %v2499, %v2097
    %v2552 = vmul.f32 %v2503, %v2094
    %v2553 = vmul.f32 %v2503, %v2097
    %v2554 = vmul.f32 %v2507, %v2094
    %v2555 = vmul.f32 %v2507, %v2097
    %v2556 = vpack.c.bf16 %v2525, %v2524
    %v2557 = vpack.c.bf16 %v2527, %v2526
    %v2558 = vpack.c.bf16 %v2529, %v2528
    %v2559 = vpack.c.bf16 %v2531, %v2530
    %v2560 = vpack.c.bf16 %v2533, %v2532
    %v2561 = vpack.c.bf16 %v2535, %v2534
    %v2562 = vpack.c.bf16 %v2537, %v2536
    %v2563 = vpack.c.bf16 %v2539, %v2538
    %v2564 = vpack.c.bf16 %v2541, %v2540
    %v2565 = vpack.c.bf16 %v2543, %v2542
    %v2566 = vpack.c.bf16 %v2545, %v2544
    %v2567 = vpack.c.bf16 %v2547, %v2546
    %v2568 = vpack.c.bf16 %v2549, %v2548
    %v2569 = vpack.c.bf16 %v2551, %v2550
    %v2570 = vpack.c.bf16 %v2553, %v2552
    %v2571 = vpack.c.bf16 %v2555, %v2554
    %v2574 = vcombine.high %v2021, %v2021
    %v2576 = vunpack.c.l.s4 1966171168
    %v2577 = vunpack.c.0.s8 %v2576
    %v2578 = vlaneseq
    %v2579 = vshrl.u32 %v2578, 7
    %v2580 = vsub.s32 %v2577, %v2579
    %v2581 = vrot.slane %v2021, %v2580
    %v2583 = vunpack.c.l.s4 1966171168
    %v2584 = vunpack.c.0.s8 %v2583
    %v2585 = vlaneseq
    %v2586 = vshrl.u32 %v2585, 7
    %v2587 = vsub.s32 %v2584, %v2586
    %v2588 = vrot.slane %v2574, %v2587
    %v2589 = vcombine.high %v2581, %v2581
    %v2590 = vcombine.high %v2588, %v2588
    %v2592 = vunpack.c.l.s4 1966171168
    %v2593 = vunpack.c.0.s8 %v2592
    %v2594 = vlaneseq
    %v2595 = vshrl.u32 %v2594, 7
    %v2596 = vsub.s32 %v2593, %v2595
    %v2597 = vrot.slane %v2581, %v2596
    %v2599 = vunpack.c.l.s4 1966171168
    %v2600 = vunpack.c.0.s8 %v2599
    %v2601 = vlaneseq
    %v2602 = vshrl.u32 %v2601, 7
    %v2603 = vsub.s32 %v2600, %v2602
    %v2604 = vrot.slane %v2588, %v2603
    %v2606 = vunpack.c.l.s4 1966171168
    %v2607 = vunpack.c.0.s8 %v2606
    %v2608 = vlaneseq
    %v2609 = vshrl.u32 %v2608, 7
    %v2610 = vsub.s32 %v2607, %v2609
    %v2611 = vrot.slane %v2589, %v2610
    %v2613 = vunpack.c.l.s4 1966171168
    %v2614 = vunpack.c.0.s8 %v2613
    %v2615 = vlaneseq
    %v2616 = vshrl.u32 %v2615, 7
    %v2617 = vsub.s32 %v2614, %v2616
    %v2618 = vrot.slane %v2590, %v2617
    %v2619 = vcombine.high %v2597, %v2597
    %v2620 = vcombine.high %v2604, %v2604
    %v2621 = vcombine.high %v2611, %v2611
    %v2622 = vcombine.high %v2618, %v2618
    %v2623 = vcombine.high %v2022, %v2022
    %v2625 = vunpack.c.l.s4 1966171168
    %v2626 = vunpack.c.0.s8 %v2625
    %v2627 = vlaneseq
    %v2628 = vshrl.u32 %v2627, 7
    %v2629 = vsub.s32 %v2626, %v2628
    %v2630 = vrot.slane %v2022, %v2629
    %v2632 = vunpack.c.l.s4 1966171168
    %v2633 = vunpack.c.0.s8 %v2632
    %v2634 = vlaneseq
    %v2635 = vshrl.u32 %v2634, 7
    %v2636 = vsub.s32 %v2633, %v2635
    %v2637 = vrot.slane %v2623, %v2636
    %v2638 = vcombine.high %v2630, %v2630
    %v2639 = vcombine.high %v2637, %v2637
    %v2641 = vunpack.c.l.s4 1966171168
    %v2642 = vunpack.c.0.s8 %v2641
    %v2643 = vlaneseq
    %v2644 = vshrl.u32 %v2643, 7
    %v2645 = vsub.s32 %v2642, %v2644
    %v2646 = vrot.slane %v2630, %v2645
    %v2648 = vunpack.c.l.s4 1966171168
    %v2649 = vunpack.c.0.s8 %v2648
    %v2650 = vlaneseq
    %v2651 = vshrl.u32 %v2650, 7
    %v2652 = vsub.s32 %v2649, %v2651
    %v2653 = vrot.slane %v2637, %v2652
    %v2655 = vunpack.c.l.s4 1966171168
    %v2656 = vunpack.c.0.s8 %v2655
    %v2657 = vlaneseq
    %v2658 = vshrl.u32 %v2657, 7
    %v2659 = vsub.s32 %v2656, %v2658
    %v2660 = vrot.slane %v2638, %v2659
    %v2662 = vunpack.c.l.s4 1966171168
    %v2663 = vunpack.c.0.s8 %v2662
    %v2664 = vlaneseq
    %v2665 = vshrl.u32 %v2664, 7
    %v2666 = vsub.s32 %v2663, %v2665
    %v2667 = vrot.slane %v2639, %v2666
    %v2668 = vcombine.high %v2646, %v2646
    %v2669 = vcombine.high %v2653, %v2653
    %v2670 = vcombine.high %v2660, %v2660
    %v2671 = vcombine.high %v2667, %v2667
    %v2672 = vlaneseq
    %v2673 = vshrl.u32 %v2672, 7
    %v2674 = vsub.s32 0, %v2673
    %v2675 = vrot.slane %v2597, %v2674
    %v2676 = vlaneseq
    %v2677 = vshrl.u32 %v2676, 7
    %v2678 = vsub.s32 0, %v2677
    %v2679 = vrot.slane %v2611, %v2678
    %v2680 = vlaneseq
    %v2681 = vshrl.u32 %v2680, 7
    %v2682 = vsub.s32 0, %v2681
    %v2683 = vrot.slane %v2619, %v2682
    %v2684 = vlaneseq
    %v2685 = vshrl.u32 %v2684, 7
    %v2686 = vsub.s32 0, %v2685
    %v2687 = vrot.slane %v2621, %v2686
    %v2688 = vlaneseq
    %v2689 = vshrl.u32 %v2688, 7
    %v2690 = vsub.s32 0, %v2689
    %v2691 = vrot.slane %v2604, %v2690
    %v2692 = vlaneseq
    %v2693 = vshrl.u32 %v2692, 7
    %v2694 = vsub.s32 0, %v2693
    %v2695 = vrot.slane %v2618, %v2694
    %v2696 = vlaneseq
    %v2697 = vshrl.u32 %v2696, 7
    %v2698 = vsub.s32 0, %v2697
    %v2699 = vrot.slane %v2620, %v2698
    %v2700 = vlaneseq
    %v2701 = vshrl.u32 %v2700, 7
    %v2702 = vsub.s32 0, %v2701
    %v2703 = vrot.slane %v2622, %v2702
    %v2704 = vlaneseq
    %v2705 = vshrl.u32 %v2704, 7
    %v2706 = vsub.s32 0, %v2705
    %v2707 = vrot.slane %v2646, %v2706
    %v2708 = vlaneseq
    %v2709 = vshrl.u32 %v2708, 7
    %v2710 = vsub.s32 0, %v2709
    %v2711 = vrot.slane %v2660, %v2710
    %v2712 = vlaneseq
    %v2713 = vshrl.u32 %v2712, 7
    %v2714 = vsub.s32 0, %v2713
    %v2715 = vrot.slane %v2668, %v2714
    %v2716 = vlaneseq
    %v2717 = vshrl.u32 %v2716, 7
    %v2718 = vsub.s32 0, %v2717
    %v2719 = vrot.slane %v2670, %v2718
    %v2720 = vlaneseq
    %v2721 = vshrl.u32 %v2720, 7
    %v2722 = vsub.s32 0, %v2721
    %v2723 = vrot.slane %v2653, %v2722
    %v2724 = vlaneseq
    %v2725 = vshrl.u32 %v2724, 7
    %v2726 = vsub.s32 0, %v2725
    %v2727 = vrot.slane %v2667, %v2726
    %v2728 = vlaneseq
    %v2729 = vshrl.u32 %v2728, 7
    %v2730 = vsub.s32 0, %v2729
    %v2731 = vrot.slane %v2669, %v2730
    %v2732 = vlaneseq
    %v2733 = vshrl.u32 %v2732, 7
    %v2734 = vsub.s32 0, %v2733
    %v2735 = vrot.slane %v2671, %v2734
    %v2752 = vmul.f32 %v2675, %v2102
    %v2753 = vmul.f32 %v2675, %v2105
    %v2754 = vmul.f32 %v2679, %v2102
    %v2755 = vmul.f32 %v2679, %v2105
    %v2756 = vmul.f32 %v2683, %v2102
    %v2757 = vmul.f32 %v2683, %v2105
    %v2758 = vmul.f32 %v2687, %v2102
    %v2759 = vmul.f32 %v2687, %v2105
    %v2760 = vmul.f32 %v2691, %v2102
    %v2761 = vmul.f32 %v2691, %v2105
    %v2762 = vmul.f32 %v2695, %v2102
    %v2763 = vmul.f32 %v2695, %v2105
    %v2764 = vmul.f32 %v2699, %v2102
    %v2765 = vmul.f32 %v2699, %v2105
    %v2766 = vmul.f32 %v2703, %v2102
    %v2767 = vmul.f32 %v2703, %v2105
    %v2768 = vmul.f32 %v2707, %v2102
    %v2769 = vmul.f32 %v2707, %v2105
    %v2770 = vmul.f32 %v2711, %v2102
    %v2771 = vmul.f32 %v2711, %v2105
    %v2772 = vmul.f32 %v2715, %v2102
    %v2773 = vmul.f32 %v2715, %v2105
    %v2774 = vmul.f32 %v2719, %v2102
    %v2775 = vmul.f32 %v2719, %v2105
    %v2776 = vmul.f32 %v2723, %v2102
    %v2777 = vmul.f32 %v2723, %v2105
    %v2778 = vmul.f32 %v2727, %v2102
    %v2779 = vmul.f32 %v2727, %v2105
    %v2780 = vmul.f32 %v2731, %v2102
    %v2781 = vmul.f32 %v2731, %v2105
    %v2782 = vmul.f32 %v2735, %v2102
    %v2783 = vmul.f32 %v2735, %v2105
    %v2784 = vpack.c.bf16 %v2753, %v2752
    %v2785 = vpack.c.bf16 %v2755, %v2754
    %v2786 = vpack.c.bf16 %v2757, %v2756
    %v2787 = vpack.c.bf16 %v2759, %v2758
    %v2788 = vpack.c.bf16 %v2761, %v2760
    %v2789 = vpack.c.bf16 %v2763, %v2762
    %v2790 = vpack.c.bf16 %v2765, %v2764
    %v2791 = vpack.c.bf16 %v2767, %v2766
    %v2792 = vpack.c.bf16 %v2769, %v2768
    %v2793 = vpack.c.bf16 %v2771, %v2770
    %v2794 = vpack.c.bf16 %v2773, %v2772
    %v2795 = vpack.c.bf16 %v2775, %v2774
    %v2796 = vpack.c.bf16 %v2777, %v2776
    %v2797 = vpack.c.bf16 %v2779, %v2778
    %v2798 = vpack.c.bf16 %v2781, %v2780
    %v2799 = vpack.c.bf16 %v2783, %v2782
    %v2802 = vcombine.high %v2023, %v2023
    %v2804 = vunpack.c.l.s4 1966171168
    %v2805 = vunpack.c.0.s8 %v2804
    %v2806 = vlaneseq
    %v2807 = vshrl.u32 %v2806, 7
    %v2808 = vsub.s32 %v2805, %v2807
    %v2809 = vrot.slane %v2023, %v2808
    %v2811 = vunpack.c.l.s4 1966171168
    %v2812 = vunpack.c.0.s8 %v2811
    %v2813 = vlaneseq
    %v2814 = vshrl.u32 %v2813, 7
    %v2815 = vsub.s32 %v2812, %v2814
    %v2816 = vrot.slane %v2802, %v2815
    %v2817 = vcombine.high %v2809, %v2809
    %v2818 = vcombine.high %v2816, %v2816
    %v2820 = vunpack.c.l.s4 1966171168
    %v2821 = vunpack.c.0.s8 %v2820
    %v2822 = vlaneseq
    %v2823 = vshrl.u32 %v2822, 7
    %v2824 = vsub.s32 %v2821, %v2823
    %v2825 = vrot.slane %v2809, %v2824
    %v2827 = vunpack.c.l.s4 1966171168
    %v2828 = vunpack.c.0.s8 %v2827
    %v2829 = vlaneseq
    %v2830 = vshrl.u32 %v2829, 7
    %v2831 = vsub.s32 %v2828, %v2830
    %v2832 = vrot.slane %v2816, %v2831
    %v2834 = vunpack.c.l.s4 1966171168
    %v2835 = vunpack.c.0.s8 %v2834
    %v2836 = vlaneseq
    %v2837 = vshrl.u32 %v2836, 7
    %v2838 = vsub.s32 %v2835, %v2837
    %v2839 = vrot.slane %v2817, %v2838
    %v2841 = vunpack.c.l.s4 1966171168
    %v2842 = vunpack.c.0.s8 %v2841
    %v2843 = vlaneseq
    %v2844 = vshrl.u32 %v2843, 7
    %v2845 = vsub.s32 %v2842, %v2844
    %v2846 = vrot.slane %v2818, %v2845
    %v2847 = vcombine.high %v2825, %v2825
    %v2848 = vcombine.high %v2832, %v2832
    %v2849 = vcombine.high %v2839, %v2839
    %v2850 = vcombine.high %v2846, %v2846
    %v2851 = vcombine.high %v2024, %v2024
    %v2853 = vunpack.c.l.s4 1966171168
    %v2854 = vunpack.c.0.s8 %v2853
    %v2855 = vlaneseq
    %v2856 = vshrl.u32 %v2855, 7
    %v2857 = vsub.s32 %v2854, %v2856
    %v2858 = vrot.slane %v2024, %v2857
    %v2860 = vunpack.c.l.s4 1966171168
    %v2861 = vunpack.c.0.s8 %v2860
    %v2862 = vlaneseq
    %v2863 = vshrl.u32 %v2862, 7
    %v2864 = vsub.s32 %v2861, %v2863
    %v2865 = vrot.slane %v2851, %v2864
    %v2866 = vcombine.high %v2858, %v2858
    %v2867 = vcombine.high %v2865, %v2865
    %v2869 = vunpack.c.l.s4 1966171168
    %v2870 = vunpack.c.0.s8 %v2869
    %v2871 = vlaneseq
    %v2872 = vshrl.u32 %v2871, 7
    %v2873 = vsub.s32 %v2870, %v2872
    %v2874 = vrot.slane %v2858, %v2873
    %v2876 = vunpack.c.l.s4 1966171168
    %v2877 = vunpack.c.0.s8 %v2876
    %v2878 = vlaneseq
    %v2879 = vshrl.u32 %v2878, 7
    %v2880 = vsub.s32 %v2877, %v2879
    %v2881 = vrot.slane %v2865, %v2880
    %v2883 = vunpack.c.l.s4 1966171168
    %v2884 = vunpack.c.0.s8 %v2883
    %v2885 = vlaneseq
    %v2886 = vshrl.u32 %v2885, 7
    %v2887 = vsub.s32 %v2884, %v2886
    %v2888 = vrot.slane %v2866, %v2887
    %v2890 = vunpack.c.l.s4 1966171168
    %v2891 = vunpack.c.0.s8 %v2890
    %v2892 = vlaneseq
    %v2893 = vshrl.u32 %v2892, 7
    %v2894 = vsub.s32 %v2891, %v2893
    %v2895 = vrot.slane %v2867, %v2894
    %v2896 = vcombine.high %v2874, %v2874
    %v2897 = vcombine.high %v2881, %v2881
    %v2898 = vcombine.high %v2888, %v2888
    %v2899 = vcombine.high %v2895, %v2895
    %v2900 = vlaneseq
    %v2901 = vshrl.u32 %v2900, 7
    %v2902 = vsub.s32 0, %v2901
    %v2903 = vrot.slane %v2825, %v2902
    %v2904 = vlaneseq
    %v2905 = vshrl.u32 %v2904, 7
    %v2906 = vsub.s32 0, %v2905
    %v2907 = vrot.slane %v2839, %v2906
    %v2908 = vlaneseq
    %v2909 = vshrl.u32 %v2908, 7
    %v2910 = vsub.s32 0, %v2909
    %v2911 = vrot.slane %v2847, %v2910
    %v2912 = vlaneseq
    %v2913 = vshrl.u32 %v2912, 7
    %v2914 = vsub.s32 0, %v2913
    %v2915 = vrot.slane %v2849, %v2914
    %v2916 = vlaneseq
    %v2917 = vshrl.u32 %v2916, 7
    %v2918 = vsub.s32 0, %v2917
    %v2919 = vrot.slane %v2832, %v2918
    %v2920 = vlaneseq
    %v2921 = vshrl.u32 %v2920, 7
    %v2922 = vsub.s32 0, %v2921
    %v2923 = vrot.slane %v2846, %v2922
    %v2924 = vlaneseq
    %v2925 = vshrl.u32 %v2924, 7
    %v2926 = vsub.s32 0, %v2925
    %v2927 = vrot.slane %v2848, %v2926
    %v2928 = vlaneseq
    %v2929 = vshrl.u32 %v2928, 7
    %v2930 = vsub.s32 0, %v2929
    %v2931 = vrot.slane %v2850, %v2930
    %v2932 = vlaneseq
    %v2933 = vshrl.u32 %v2932, 7
    %v2934 = vsub.s32 0, %v2933
    %v2935 = vrot.slane %v2874, %v2934
    %v2936 = vlaneseq
    %v2937 = vshrl.u32 %v2936, 7
    %v2938 = vsub.s32 0, %v2937
    %v2939 = vrot.slane %v2888, %v2938
    %v2940 = vlaneseq
    %v2941 = vshrl.u32 %v2940, 7
    %v2942 = vsub.s32 0, %v2941
    %v2943 = vrot.slane %v2896, %v2942
    %v2944 = vlaneseq
    %v2945 = vshrl.u32 %v2944, 7
    %v2946 = vsub.s32 0, %v2945
    %v2947 = vrot.slane %v2898, %v2946
    %v2948 = vlaneseq
    %v2949 = vshrl.u32 %v2948, 7
    %v2950 = vsub.s32 0, %v2949
    %v2951 = vrot.slane %v2881, %v2950
    %v2952 = vlaneseq
    %v2953 = vshrl.u32 %v2952, 7
    %v2954 = vsub.s32 0, %v2953
    %v2955 = vrot.slane %v2895, %v2954
    %v2956 = vlaneseq
    %v2957 = vshrl.u32 %v2956, 7
    %v2958 = vsub.s32 0, %v2957
    %v2959 = vrot.slane %v2897, %v2958
    %v2960 = vlaneseq
    %v2961 = vshrl.u32 %v2960, 7
    %v2962 = vsub.s32 0, %v2961
    %v2963 = vrot.slane %v2899, %v2962
    %v2980 = vmul.f32 %v2903, %v2110
    %v2981 = vmul.f32 %v2903, %v2113
    %v2982 = vmul.f32 %v2907, %v2110
    %v2983 = vmul.f32 %v2907, %v2113
    %v2984 = vmul.f32 %v2911, %v2110
    %v2985 = vmul.f32 %v2911, %v2113
    %v2986 = vmul.f32 %v2915, %v2110
    %v2987 = vmul.f32 %v2915, %v2113
    %v2988 = vmul.f32 %v2919, %v2110
    %v2989 = vmul.f32 %v2919, %v2113
    %v2990 = vmul.f32 %v2923, %v2110
    %v2991 = vmul.f32 %v2923, %v2113
    %v2992 = vmul.f32 %v2927, %v2110
    %v2993 = vmul.f32 %v2927, %v2113
    %v2994 = vmul.f32 %v2931, %v2110
    %v2995 = vmul.f32 %v2931, %v2113
    %v2996 = vmul.f32 %v2935, %v2110
    %v2997 = vmul.f32 %v2935, %v2113
    %v2998 = vmul.f32 %v2939, %v2110
    %v2999 = vmul.f32 %v2939, %v2113
    %v3000 = vmul.f32 %v2943, %v2110
    %v3001 = vmul.f32 %v2943, %v2113
    %v3002 = vmul.f32 %v2947, %v2110
    %v3003 = vmul.f32 %v2947, %v2113
    %v3004 = vmul.f32 %v2951, %v2110
    %v3005 = vmul.f32 %v2951, %v2113
    %v3006 = vmul.f32 %v2955, %v2110
    %v3007 = vmul.f32 %v2955, %v2113
    %v3008 = vmul.f32 %v2959, %v2110
    %v3009 = vmul.f32 %v2959, %v2113
    %v3010 = vmul.f32 %v2963, %v2110
    %v3011 = vmul.f32 %v2963, %v2113
    %v3012 = vpack.c.bf16 %v2981, %v2980
    %v3013 = vpack.c.bf16 %v2983, %v2982
    %v3014 = vpack.c.bf16 %v2985, %v2984
    %v3015 = vpack.c.bf16 %v2987, %v2986
    %v3016 = vpack.c.bf16 %v2989, %v2988
    %v3017 = vpack.c.bf16 %v2991, %v2990
    %v3018 = vpack.c.bf16 %v2993, %v2992
    %v3019 = vpack.c.bf16 %v2995, %v2994
    %v3020 = vpack.c.bf16 %v2997, %v2996
    %v3021 = vpack.c.bf16 %v2999, %v2998
    %v3022 = vpack.c.bf16 %v3001, %v3000
    %v3023 = vpack.c.bf16 %v3003, %v3002
    %v3024 = vpack.c.bf16 %v3005, %v3004
    %v3025 = vpack.c.bf16 %v3007, %v3006
    %v3026 = vpack.c.bf16 %v3009, %v3008
    %v3027 = vpack.c.bf16 %v3011, %v3010
    %v3028 = vmul.f32 %v2219, %v2094
    %v3029 = vmul.f32 %v2219, %v2097
    %v3030 = vmul.f32 %v2223, %v2094
    %v3031 = vmul.f32 %v2223, %v2097
    %v3032 = vmul.f32 %v2227, %v2094
    %v3033 = vmul.f32 %v2227, %v2097
    %v3034 = vmul.f32 %v2231, %v2094
    %v3035 = vmul.f32 %v2231, %v2097
    %v3036 = vmul.f32 %v2235, %v2094
    %v3037 = vmul.f32 %v2235, %v2097
    %v3038 = vmul.f32 %v2239, %v2094
    %v3039 = vmul.f32 %v2239, %v2097
    %v3040 = vmul.f32 %v2243, %v2094
    %v3041 = vmul.f32 %v2243, %v2097
    %v3042 = vmul.f32 %v2247, %v2094
    %v3043 = vmul.f32 %v2247, %v2097
    %v3044 = vmul.f32 %v2251, %v2094
    %v3045 = vmul.f32 %v2251, %v2097
    %v3046 = vmul.f32 %v2255, %v2094
    %v3047 = vmul.f32 %v2255, %v2097
    %v3048 = vmul.f32 %v2259, %v2094
    %v3049 = vmul.f32 %v2259, %v2097
    %v3050 = vmul.f32 %v2263, %v2094
    %v3051 = vmul.f32 %v2263, %v2097
    %v3052 = vmul.f32 %v2267, %v2094
    %v3053 = vmul.f32 %v2267, %v2097
    %v3054 = vmul.f32 %v2271, %v2094
    %v3055 = vmul.f32 %v2271, %v2097
    %v3056 = vmul.f32 %v2275, %v2094
    %v3057 = vmul.f32 %v2275, %v2097
    %v3058 = vmul.f32 %v2279, %v2094
    %v3059 = vmul.f32 %v2279, %v2097
    %v3060 = vpack.c.bf16 %v3029, %v3028
    %v3061 = vpack.c.bf16 %v3031, %v3030
    %v3062 = vpack.c.bf16 %v3033, %v3032
    %v3063 = vpack.c.bf16 %v3035, %v3034
    %v3064 = vpack.c.bf16 %v3037, %v3036
    %v3065 = vpack.c.bf16 %v3039, %v3038
    %v3066 = vpack.c.bf16 %v3041, %v3040
    %v3067 = vpack.c.bf16 %v3043, %v3042
    %v3068 = vpack.c.bf16 %v3045, %v3044
    %v3069 = vpack.c.bf16 %v3047, %v3046
    %v3070 = vpack.c.bf16 %v3049, %v3048
    %v3071 = vpack.c.bf16 %v3051, %v3050
    %v3072 = vpack.c.bf16 %v3053, %v3052
    %v3073 = vpack.c.bf16 %v3055, %v3054
    %v3074 = vpack.c.bf16 %v3057, %v3056
    %v3075 = vpack.c.bf16 %v3059, %v3058
    %v3076 = vmul.f32 %v2447, %v2086
    %v3077 = vmul.f32 %v2447, %v2089
    %v3078 = vmul.f32 %v2451, %v2086
    %v3079 = vmul.f32 %v2451, %v2089
    %v3080 = vmul.f32 %v2455, %v2086
    %v3081 = vmul.f32 %v2455, %v2089
    %v3082 = vmul.f32 %v2459, %v2086
    %v3083 = vmul.f32 %v2459, %v2089
    %v3084 = vmul.f32 %v2463, %v2086
    %v3085 = vmul.f32 %v2463, %v2089
    %v3086 = vmul.f32 %v2467, %v2086
    %v3087 = vmul.f32 %v2467, %v2089
    %v3088 = vmul.f32 %v2471, %v2086
    %v3089 = vmul.f32 %v2471, %v2089
    %v3090 = vmul.f32 %v2475, %v2086
    %v3091 = vmul.f32 %v2475, %v2089
    %v3092 = vmul.f32 %v2479, %v2086
    %v3093 = vmul.f32 %v2479, %v2089
    %v3094 = vmul.f32 %v2483, %v2086
    %v3095 = vmul.f32 %v2483, %v2089
    %v3096 = vmul.f32 %v2487, %v2086
    %v3097 = vmul.f32 %v2487, %v2089
    %v3098 = vmul.f32 %v2491, %v2086
    %v3099 = vmul.f32 %v2491, %v2089
    %v3100 = vmul.f32 %v2495, %v2086
    %v3101 = vmul.f32 %v2495, %v2089
    %v3102 = vmul.f32 %v2499, %v2086
    %v3103 = vmul.f32 %v2499, %v2089
    %v3104 = vmul.f32 %v2503, %v2086
    %v3105 = vmul.f32 %v2503, %v2089
    %v3106 = vmul.f32 %v2507, %v2086
    %v3107 = vmul.f32 %v2507, %v2089
    %v3108 = vpack.c.bf16 %v3077, %v3076
    %v3109 = vpack.c.bf16 %v3079, %v3078
    %v3110 = vpack.c.bf16 %v3081, %v3080
    %v3111 = vpack.c.bf16 %v3083, %v3082
    %v3112 = vpack.c.bf16 %v3085, %v3084
    %v3113 = vpack.c.bf16 %v3087, %v3086
    %v3114 = vpack.c.bf16 %v3089, %v3088
    %v3115 = vpack.c.bf16 %v3091, %v3090
    %v3116 = vpack.c.bf16 %v3093, %v3092
    %v3117 = vpack.c.bf16 %v3095, %v3094
    %v3118 = vpack.c.bf16 %v3097, %v3096
    %v3119 = vpack.c.bf16 %v3099, %v3098
    %v3120 = vpack.c.bf16 %v3101, %v3100
    %v3121 = vpack.c.bf16 %v3103, %v3102
    %v3122 = vpack.c.bf16 %v3105, %v3104
    %v3123 = vpack.c.bf16 %v3107, %v3106
    %v3124 = vmul.f32 %v2219, %v2102
    %v3125 = vmul.f32 %v2219, %v2105
    %v3126 = vmul.f32 %v2223, %v2102
    %v3127 = vmul.f32 %v2223, %v2105
    %v3128 = vmul.f32 %v2227, %v2102
    %v3129 = vmul.f32 %v2227, %v2105
    %v3130 = vmul.f32 %v2231, %v2102
    %v3131 = vmul.f32 %v2231, %v2105
    %v3132 = vmul.f32 %v2235, %v2102
    %v3133 = vmul.f32 %v2235, %v2105
    %v3134 = vmul.f32 %v2239, %v2102
    %v3135 = vmul.f32 %v2239, %v2105
    %v3136 = vmul.f32 %v2243, %v2102
    %v3137 = vmul.f32 %v2243, %v2105
    %v3138 = vmul.f32 %v2247, %v2102
    %v3139 = vmul.f32 %v2247, %v2105
    %v3140 = vmul.f32 %v2251, %v2102
    %v3141 = vmul.f32 %v2251, %v2105
    %v3142 = vmul.f32 %v2255, %v2102
    %v3143 = vmul.f32 %v2255, %v2105
    %v3144 = vmul.f32 %v2259, %v2102
    %v3145 = vmul.f32 %v2259, %v2105
    %v3146 = vmul.f32 %v2263, %v2102
    %v3147 = vmul.f32 %v2263, %v2105
    %v3148 = vmul.f32 %v2267, %v2102
    %v3149 = vmul.f32 %v2267, %v2105
    %v3150 = vmul.f32 %v2271, %v2102
    %v3151 = vmul.f32 %v2271, %v2105
    %v3152 = vmul.f32 %v2275, %v2102
    %v3153 = vmul.f32 %v2275, %v2105
    %v3154 = vmul.f32 %v2279, %v2102
    %v3155 = vmul.f32 %v2279, %v2105
    %v3156 = vpack.c.bf16 %v3125, %v3124
    %v3157 = vpack.c.bf16 %v3127, %v3126
    %v3158 = vpack.c.bf16 %v3129, %v3128
    %v3159 = vpack.c.bf16 %v3131, %v3130
    %v3160 = vpack.c.bf16 %v3133, %v3132
    %v3161 = vpack.c.bf16 %v3135, %v3134
    %v3162 = vpack.c.bf16 %v3137, %v3136
    %v3163 = vpack.c.bf16 %v3139, %v3138
    %v3164 = vpack.c.bf16 %v3141, %v3140
    %v3165 = vpack.c.bf16 %v3143, %v3142
    %v3166 = vpack.c.bf16 %v3145, %v3144
    %v3167 = vpack.c.bf16 %v3147, %v3146
    %v3168 = vpack.c.bf16 %v3149, %v3148
    %v3169 = vpack.c.bf16 %v3151, %v3150
    %v3170 = vpack.c.bf16 %v3153, %v3152
    %v3171 = vpack.c.bf16 %v3155, %v3154
    %v3172 = vmul.f32 %v2675, %v2086
    %v3173 = vmul.f32 %v2675, %v2089
    %v3174 = vmul.f32 %v2679, %v2086
    %v3175 = vmul.f32 %v2679, %v2089
    %v3176 = vmul.f32 %v2683, %v2086
    %v3177 = vmul.f32 %v2683, %v2089
    %v3178 = vmul.f32 %v2687, %v2086
    %v3179 = vmul.f32 %v2687, %v2089
    %v3180 = vmul.f32 %v2691, %v2086
    %v3181 = vmul.f32 %v2691, %v2089
    %v3182 = vmul.f32 %v2695, %v2086
    %v3183 = vmul.f32 %v2695, %v2089
    %v3184 = vmul.f32 %v2699, %v2086
    %v3185 = vmul.f32 %v2699, %v2089
    %v3186 = vmul.f32 %v2703, %v2086
    %v3187 = vmul.f32 %v2703, %v2089
    %v3188 = vmul.f32 %v2707, %v2086
    %v3189 = vmul.f32 %v2707, %v2089
    %v3190 = vmul.f32 %v2711, %v2086
    %v3191 = vmul.f32 %v2711, %v2089
    %v3192 = vmul.f32 %v2715, %v2086
    %v3193 = vmul.f32 %v2715, %v2089
    %v3194 = vmul.f32 %v2719, %v2086
    %v3195 = vmul.f32 %v2719, %v2089
    %v3196 = vmul.f32 %v2723, %v2086
    %v3197 = vmul.f32 %v2723, %v2089
    %v3198 = vmul.f32 %v2727, %v2086
    %v3199 = vmul.f32 %v2727, %v2089
    %v3200 = vmul.f32 %v2731, %v2086
    %v3201 = vmul.f32 %v2731, %v2089
    %v3202 = vmul.f32 %v2735, %v2086
    %v3203 = vmul.f32 %v2735, %v2089
    %v3204 = vpack.c.bf16 %v3173, %v3172
    %v3205 = vpack.c.bf16 %v3175, %v3174
    %v3206 = vpack.c.bf16 %v3177, %v3176
    %v3207 = vpack.c.bf16 %v3179, %v3178
    %v3208 = vpack.c.bf16 %v3181, %v3180
    %v3209 = vpack.c.bf16 %v3183, %v3182
    %v3210 = vpack.c.bf16 %v3185, %v3184
    %v3211 = vpack.c.bf16 %v3187, %v3186
    %v3212 = vpack.c.bf16 %v3189, %v3188
    %v3213 = vpack.c.bf16 %v3191, %v3190
    %v3214 = vpack.c.bf16 %v3193, %v3192
    %v3215 = vpack.c.bf16 %v3195, %v3194
    %v3216 = vpack.c.bf16 %v3197, %v3196
    %v3217 = vpack.c.bf16 %v3199, %v3198
    %v3218 = vpack.c.bf16 %v3201, %v3200
    %v3219 = vpack.c.bf16 %v3203, %v3202
    %v3220 = vmul.f32 %v2219, %v2110
    %v3221 = vmul.f32 %v2219, %v2113
    %v3222 = vmul.f32 %v2223, %v2110
    %v3223 = vmul.f32 %v2223, %v2113
    %v3224 = vmul.f32 %v2227, %v2110
    %v3225 = vmul.f32 %v2227, %v2113
    %v3226 = vmul.f32 %v2231, %v2110
    %v3227 = vmul.f32 %v2231, %v2113
    %v3228 = vmul.f32 %v2235, %v2110
    %v3229 = vmul.f32 %v2235, %v2113
    %v3230 = vmul.f32 %v2239, %v2110
    %v3231 = vmul.f32 %v2239, %v2113
    %v3232 = vmul.f32 %v2243, %v2110
    %v3233 = vmul.f32 %v2243, %v2113
    %v3234 = vmul.f32 %v2247, %v2110
    %v3235 = vmul.f32 %v2247, %v2113
    %v3236 = vmul.f32 %v2251, %v2110
    %v3237 = vmul.f32 %v2251, %v2113
    %v3238 = vmul.f32 %v2255, %v2110
    %v3239 = vmul.f32 %v2255, %v2113
    %v3240 = vmul.f32 %v2259, %v2110
    %v3241 = vmul.f32 %v2259, %v2113
    %v3242 = vmul.f32 %v2263, %v2110
    %v3243 = vmul.f32 %v2263, %v2113
    %v3244 = vmul.f32 %v2267, %v2110
    %v3245 = vmul.f32 %v2267, %v2113
    %v3246 = vmul.f32 %v2271, %v2110
    %v3247 = vmul.f32 %v2271, %v2113
    %v3248 = vmul.f32 %v2275, %v2110
    %v3249 = vmul.f32 %v2275, %v2113
    %v3250 = vmul.f32 %v2279, %v2110
    %v3251 = vmul.f32 %v2279, %v2113
    %v3252 = vpack.c.bf16 %v3221, %v3220
    %v3253 = vpack.c.bf16 %v3223, %v3222
    %v3254 = vpack.c.bf16 %v3225, %v3224
    %v3255 = vpack.c.bf16 %v3227, %v3226
    %v3256 = vpack.c.bf16 %v3229, %v3228
    %v3257 = vpack.c.bf16 %v3231, %v3230
    %v3258 = vpack.c.bf16 %v3233, %v3232
    %v3259 = vpack.c.bf16 %v3235, %v3234
    %v3260 = vpack.c.bf16 %v3237, %v3236
    %v3261 = vpack.c.bf16 %v3239, %v3238
    %v3262 = vpack.c.bf16 %v3241, %v3240
    %v3263 = vpack.c.bf16 %v3243, %v3242
    %v3264 = vpack.c.bf16 %v3245, %v3244
    %v3265 = vpack.c.bf16 %v3247, %v3246
    %v3266 = vpack.c.bf16 %v3249, %v3248
    %v3267 = vpack.c.bf16 %v3251, %v3250
    %v3268 = vmul.f32 %v2903, %v2086
    %v3269 = vmul.f32 %v2903, %v2089
    %v3270 = vmul.f32 %v2907, %v2086
    %v3271 = vmul.f32 %v2907, %v2089
    %v3272 = vmul.f32 %v2911, %v2086
    %v3273 = vmul.f32 %v2911, %v2089
    %v3274 = vmul.f32 %v2915, %v2086
    %v3275 = vmul.f32 %v2915, %v2089
    %v3276 = vmul.f32 %v2919, %v2086
    %v3277 = vmul.f32 %v2919, %v2089
    %v3278 = vmul.f32 %v2923, %v2086
    %v3279 = vmul.f32 %v2923, %v2089
    %v3280 = vmul.f32 %v2927, %v2086
    %v3281 = vmul.f32 %v2927, %v2089
    %v3282 = vmul.f32 %v2931, %v2086
    %v3283 = vmul.f32 %v2931, %v2089
    %v3284 = vmul.f32 %v2935, %v2086
    %v3285 = vmul.f32 %v2935, %v2089
    %v3286 = vmul.f32 %v2939, %v2086
    %v3287 = vmul.f32 %v2939, %v2089
    %v3288 = vmul.f32 %v2943, %v2086
    %v3289 = vmul.f32 %v2943, %v2089
    %v3290 = vmul.f32 %v2947, %v2086
    %v3291 = vmul.f32 %v2947, %v2089
    %v3292 = vmul.f32 %v2951, %v2086
    %v3293 = vmul.f32 %v2951, %v2089
    %v3294 = vmul.f32 %v2955, %v2086
    %v3295 = vmul.f32 %v2955, %v2089
    %v3296 = vmul.f32 %v2959, %v2086
    %v3297 = vmul.f32 %v2959, %v2089
    %v3298 = vmul.f32 %v2963, %v2086
    %v3299 = vmul.f32 %v2963, %v2089
    %v3300 = vpack.c.bf16 %v3269, %v3268
    %v3301 = vpack.c.bf16 %v3271, %v3270
    %v3302 = vpack.c.bf16 %v3273, %v3272
    %v3303 = vpack.c.bf16 %v3275, %v3274
    %v3304 = vpack.c.bf16 %v3277, %v3276
    %v3305 = vpack.c.bf16 %v3279, %v3278
    %v3306 = vpack.c.bf16 %v3281, %v3280
    %v3307 = vpack.c.bf16 %v3283, %v3282
    %v3308 = vpack.c.bf16 %v3285, %v3284
    %v3309 = vpack.c.bf16 %v3287, %v3286
    %v3310 = vpack.c.bf16 %v3289, %v3288
    %v3311 = vpack.c.bf16 %v3291, %v3290
    %v3312 = vpack.c.bf16 %v3293, %v3292
    %v3313 = vpack.c.bf16 %v3295, %v3294
    %v3314 = vpack.c.bf16 %v3297, %v3296
    %v3315 = vpack.c.bf16 %v3299, %v3298
    %v3332 = vunpack.c.l.b16 %v2026
    %v3333 = vunpack.c.h.b16 %v2026
    %v3334 = vunpack.c.l.b16 %v2027
    %v3335 = vunpack.c.h.b16 %v2027
    %v3336 = vunpack.c.l.b16 %v2028
    %v3337 = vunpack.c.h.b16 %v2028
    %v3338 = vunpack.c.l.b16 %v2029
    %v3339 = vunpack.c.h.b16 %v2029
    %v3340 = vunpack.c.l.b16 %v2030
    %v3341 = vunpack.c.h.b16 %v2030
    %v3342 = vunpack.c.l.b16 %v2031
    %v3343 = vunpack.c.h.b16 %v2031
    %v3344 = vunpack.c.l.b16 %v2032
    %v3345 = vunpack.c.h.b16 %v2032
    %v3346 = vunpack.c.l.b16 %v2033
    %v3347 = vunpack.c.h.b16 %v2033
    %v3348 = vunpack.c.l.b16 %v2034
    %v3349 = vunpack.c.h.b16 %v2034
    %v3350 = vunpack.c.l.b16 %v2035
    %v3351 = vunpack.c.h.b16 %v2035
    %v3352 = vunpack.c.l.b16 %v2036
    %v3353 = vunpack.c.h.b16 %v2036
    %v3354 = vunpack.c.l.b16 %v2037
    %v3355 = vunpack.c.h.b16 %v2037
    %v3356 = vunpack.c.l.b16 %v2038
    %v3357 = vunpack.c.h.b16 %v2038
    %v3358 = vunpack.c.l.b16 %v2039
    %v3359 = vunpack.c.h.b16 %v2039
    %v3360 = vunpack.c.l.b16 %v2040
    %v3361 = vunpack.c.h.b16 %v2040
    %v3362 = vunpack.c.l.b16 %v2041
    %v3363 = vunpack.c.h.b16 %v2041
    %v3364 = vpack.c.b16 %v3340, %v3332
    %v3365 = vpack.c.b16 %v3341, %v3333
    %v3366 = vpack.c.b16 %v3342, %v3334
    %v3367 = vpack.c.b16 %v3343, %v3335
    %v3368 = vpack.c.b16 %v3344, %v3336
    %v3369 = vpack.c.b16 %v3345, %v3337
    %v3370 = vpack.c.b16 %v3346, %v3338
    %v3371 = vpack.c.b16 %v3347, %v3339
    %v3372 = vpack.c.b16 %v3356, %v3348
    %v3373 = vpack.c.b16 %v3357, %v3349
    %v3374 = vpack.c.b16 %v3358, %v3350
    %v3375 = vpack.c.b16 %v3359, %v3351
    %v3376 = vpack.c.b16 %v3360, %v3352
    %v3377 = vpack.c.b16 %v3361, %v3353
    %v3378 = vpack.c.b16 %v3362, %v3354
    %v3379 = vpack.c.b16 %v3363, %v3355
    %3396 = vmatprep.subr.bf16.mxu0 0
    %3397 = vmatpush1.bf16.msra.mxu0 %v2328
    %3398 = vmatprep.subr.bf16.mxu0 0
    %3399 = vmatpush1.bf16.msra.mxu0 %v2329
    %3400 = vmatprep.subr.bf16.mxu0 0
    %3401 = vmatpush1.bf16.msra.mxu0 %v2330
    %3402 = vmatprep.subr.bf16.mxu0 0
    %3403 = vmatpush1.bf16.msra.mxu0 %v2331
    %3404 = vmatprep.subr.bf16.mxu0 0
    %3405 = vmatpush1.bf16.msra.mxu0 %v2332
    %3406 = vmatprep.subr.bf16.mxu0 0
    %3407 = vmatpush1.bf16.msra.mxu0 %v2333
    %3408 = vmatprep.subr.bf16.mxu0 0
    %3409 = vmatpush1.bf16.msra.mxu0 %v2334
    %3410 = vmatprep.subr.bf16.mxu0 0
    %3411 = vmatpush1.bf16.msra.mxu0 %v2335
    %3412 = vmatprep.subr.bf16.mxu0 0
    %3413 = vmatpush1.bf16.msra.mxu0 %v2336
    %3414 = vmatprep.subr.bf16.mxu0 0
    %3415 = vmatpush1.bf16.msra.mxu0 %v2337
    %3416 = vmatprep.subr.bf16.mxu0 0
    %3417 = vmatpush1.bf16.msra.mxu0 %v2338
    %3418 = vmatprep.subr.bf16.mxu0 0
    %3419 = vmatpush1.bf16.msra.mxu0 %v2339
    %3420 = vmatprep.subr.bf16.mxu0 0
    %3421 = vmatpush1.bf16.msra.mxu0 %v2340
    %3422 = vmatprep.subr.bf16.mxu0 0
    %3423 = vmatpush1.bf16.msra.mxu0 %v2341
    %3424 = vmatprep.subr.bf16.mxu0 0
    %3425 = vmatpush1.bf16.msra.mxu0 %v2342
    %3426 = vmatprep.subr.bf16.mxu0 0
    %3427 = vmatpush1.bf16.msra.mxu0 %v2343
    %3428 = vmatprep.mubr.bf16.mxu0 %v3365
    %3429 = vmatmul.mubr.bf16.gmra.mrb[0].mxu0 %v3364
    %v3430 = vpop.f32.mrb[0].mxu0
    %v3431 = vadd.f32 0.0, %v3430
    %v3432 = vpop.f32.mrb[0].mxu0
    %v3433 = vpop.f32.mrb[0].mxu0
    %v3434 = vadd.f32 0.0, %v3433
    %v3435 = vpop.f32.mrb[0].mxu0
    %3436 = vmatprep.mubr.bf16.mxu0 %v3373
    %3437 = vmatmul.mubr.bf16.gmra.mrb[0].mxu0 %v3372
    %v3438 = vpop.f32.mrb[0].mxu0
    %v3439 = vadd.f32 0.0, %v3438
    %v3440 = vpop.f32.mrb[0].mxu0
    %v3441 = vpop.f32.mrb[0].mxu0
    %v3442 = vadd.f32 0.0, %v3441
    %v3443 = vpop.f32.mrb[0].mxu0
    %3444 = vdwg.mxu0
    %3445 = vmatprep.subr.bf16.mxu0 0
    %3446 = vmatpush1.bf16.msra.mxu0 %v2556
    %3447 = vmatprep.subr.bf16.mxu0 0
    %3448 = vmatpush1.bf16.msra.mxu0 %v2557
    %3449 = vmatprep.subr.bf16.mxu0 0
    %3450 = vmatpush1.bf16.msra.mxu0 %v2558
    %3451 = vmatprep.subr.bf16.mxu0 0
    %3452 = vmatpush1.bf16.msra.mxu0 %v2559
    %3453 = vmatprep.subr.bf16.mxu0 0
    %3454 = vmatpush1.bf16.msra.mxu0 %v2560
    %3455 = vmatprep.subr.bf16.mxu0 0
    %3456 = vmatpush1.bf16.msra.mxu0 %v2561
    %3457 = vmatprep.subr.bf16.mxu0 0
    %3458 = vmatpush1.bf16.msra.mxu0 %v2562
    %3459 = vmatprep.subr.bf16.mxu0 0
    %3460 = vmatpush1.bf16.msra.mxu0 %v2563
    %3461 = vmatprep.subr.bf16.mxu0 0
    %3462 = vmatpush1.bf16.msra.mxu0 %v2564
    %3463 = vmatprep.subr.bf16.mxu0 0
    %3464 = vmatpush1.bf16.msra.mxu0 %v2565
    %3465 = vmatprep.subr.bf16.mxu0 0
    %3466 = vmatpush1.bf16.msra.mxu0 %v2566
    %3467 = vmatprep.subr.bf16.mxu0 0
    %3468 = vmatpush1.bf16.msra.mxu0 %v2567
    %3469 = vmatprep.subr.bf16.mxu0 0
    %3470 = vmatpush1.bf16.msra.mxu0 %v2568
    %3471 = vmatprep.subr.bf16.mxu0 0
    %3472 = vmatpush1.bf16.msra.mxu0 %v2569
    %3473 = vmatprep.subr.bf16.mxu0 0
    %3474 = vmatpush1.bf16.msra.mxu0 %v2570
    %3475 = vmatprep.subr.bf16.mxu0 0
    %3476 = vmatpush1.bf16.msra.mxu0 %v2571
    %3477 = vmatprep.mubr.bf16.mxu0 %v3367
    %3478 = vmatmul.mubr.bf16.gmra.mrb[0].mxu0 %v3366
    %v3479 = vpop.f32.mrb[0].mxu0
    %v3480 = vadd.f32 %v3431, %v3479
    %v3481 = vpop.f32.mrb[0].mxu0
    %v3482 = vpop.f32.mrb[0].mxu0
    %v3483 = vadd.f32 %v3434, %v3482
    %v3484 = vpop.f32.mrb[0].mxu0
    %3485 = vmatprep.mubr.bf16.mxu0 %v3375
    %3486 = vmatmul.mubr.bf16.gmra.mrb[0].mxu0 %v3374
    %v3487 = vpop.f32.mrb[0].mxu0
    %v3488 = vadd.f32 %v3439, %v3487
    %v3489 = vpop.f32.mrb[0].mxu0
    %v3490 = vpop.f32.mrb[0].mxu0
    %v3491 = vadd.f32 %v3442, %v3490
    %v3492 = vpop.f32.mrb[0].mxu0
    %3493 = vdwg.mxu0
    %3494 = vmatprep.subr.bf16.mxu0 0
    %3495 = vmatpush1.bf16.msra.mxu0 %v2784
    %3496 = vmatprep.subr.bf16.mxu0 0
    %3497 = vmatpush1.bf16.msra.mxu0 %v2785
    %3498 = vmatprep.subr.bf16.mxu0 0
    %3499 = vmatpush1.bf16.msra.mxu0 %v2786
    %3500 = vmatprep.subr.bf16.mxu0 0
    %3501 = vmatpush1.bf16.msra.mxu0 %v2787
    %3502 = vmatprep.subr.bf16.mxu0 0
    %3503 = vmatpush1.bf16.msra.mxu0 %v2788
    %3504 = vmatprep.subr.bf16.mxu0 0
    %3505 = vmatpush1.bf16.msra.mxu0 %v2789
    %3506 = vmatprep.subr.bf16.mxu0 0
    %3507 = vmatpush1.bf16.msra.mxu0 %v2790
    %3508 = vmatprep.subr.bf16.mxu0 0
    %3509 = vmatpush1.bf16.msra.mxu0 %v2791
    %3510 = vmatprep.subr.bf16.mxu0 0
    %3511 = vmatpush1.bf16.msra.mxu0 %v2792
    %3512 = vmatprep.subr.bf16.mxu0 0
    %3513 = vmatpush1.bf16.msra.mxu0 %v2793
    %3514 = vmatprep.subr.bf16.mxu0 0
    %3515 = vmatpush1.bf16.msra.mxu0 %v2794
    %3516 = vmatprep.subr.bf16.mxu0 0
    %3517 = vmatpush1.bf16.msra.mxu0 %v2795
    %3518 = vmatprep.subr.bf16.mxu0 0
    %3519 = vmatpush1.bf16.msra.mxu0 %v2796
    %3520 = vmatprep.subr.bf16.mxu0 0
    %3521 = vmatpush1.bf16.msra.mxu0 %v2797
    %3522 = vmatprep.subr.bf16.mxu0 0
    %3523 = vmatpush1.bf16.msra.mxu0 %v2798
    %3524 = vmatprep.subr.bf16.mxu0 0
    %3525 = vmatpush1.bf16.msra.mxu0 %v2799
    %3526 = vmatprep.mubr.bf16.mxu0 %v3369
    %3527 = vmatmul.mubr.bf16.gmra.mrb[0].mxu0 %v3368
    %v3528 = vpop.f32.mrb[0].mxu0
    %v3529 = vadd.f32 %v3480, %v3528
    %v3530 = vpop.f32.mrb[0].mxu0
    %v3531 = vpop.f32.mrb[0].mxu0
    %v3532 = vadd.f32 %v3483, %v3531
    %v3533 = vpop.f32.mrb[0].mxu0
    %3534 = vmatprep.mubr.bf16.mxu0 %v3377
    %3535 = vmatmul.mubr.bf16.gmra.mrb[0].mxu0 %v3376
    %v3536 = vpop.f32.mrb[0].mxu0
    %v3537 = vadd.f32 %v3488, %v3536
    %v3538 = vpop.f32.mrb[0].mxu0
    %v3539 = vpop.f32.mrb[0].mxu0
    %v3540 = vadd.f32 %v3491, %v3539
    %v3541 = vpop.f32.mrb[0].mxu0
    %3542 = vdwg.mxu0
    %3543 = vmatprep.subr.bf16.mxu0 0
    %3544 = vmatpush1.bf16.msra.mxu0 %v3012
    %3545 = vmatprep.subr.bf16.mxu0 0
    %3546 = vmatpush1.bf16.msra.mxu0 %v3013
    %3547 = vmatprep.subr.bf16.mxu0 0
    %3548 = vmatpush1.bf16.msra.mxu0 %v3014
    %3549 = vmatprep.subr.bf16.mxu0 0
    %3550 = vmatpush1.bf16.msra.mxu0 %v3015
    %3551 = vmatprep.subr.bf16.mxu0 0
    %3552 = vmatpush1.bf16.msra.mxu0 %v3016
    %3553 = vmatprep.subr.bf16.mxu0 0
    %3554 = vmatpush1.bf16.msra.mxu0 %v3017
    %3555 = vmatprep.subr.bf16.mxu0 0
    %3556 = vmatpush1.bf16.msra.mxu0 %v3018
    %3557 = vmatprep.subr.bf16.mxu0 0
    %3558 = vmatpush1.bf16.msra.mxu0 %v3019
    %3559 = vmatprep.subr.bf16.mxu0 0
    %3560 = vmatpush1.bf16.msra.mxu0 %v3020
    %3561 = vmatprep.subr.bf16.mxu0 0
    %3562 = vmatpush1.bf16.msra.mxu0 %v3021
    %3563 = vmatprep.subr.bf16.mxu0 0
    %3564 = vmatpush1.bf16.msra.mxu0 %v3022
    %3565 = vmatprep.subr.bf16.mxu0 0
    %3566 = vmatpush1.bf16.msra.mxu0 %v3023
    %3567 = vmatprep.subr.bf16.mxu0 0
    %3568 = vmatpush1.bf16.msra.mxu0 %v3024
    %3569 = vmatprep.subr.bf16.mxu0 0
    %3570 = vmatpush1.bf16.msra.mxu0 %v3025
    %3571 = vmatprep.subr.bf16.mxu0 0
    %3572 = vmatpush1.bf16.msra.mxu0 %v3026
    %3573 = vmatprep.subr.bf16.mxu0 0
    %3574 = vmatpush1.bf16.msra.mxu0 %v3027
    %3575 = vmatprep.mubr.bf16.mxu0 %v3371
    %3576 = vmatmul.mubr.bf16.gmra.mrb[0].mxu0 %v3370
    %v3577 = vpop.f32.mrb[0].mxu0
    %v3578 = vadd.f32 %v3529, %v3577
    %v3579 = vpop.f32.mrb[0].mxu0
    %v3580 = vpop.f32.mrb[0].mxu0
    %v3581 = vadd.f32 %v3532, %v3580
    %v3582 = vpop.f32.mrb[0].mxu0
    %3583 = vmatprep.mubr.bf16.mxu0 %v3379
    %3584 = vmatmul.mubr.bf16.gmra.mrb[0].mxu0 %v3378
    %v3585 = vpop.f32.mrb[0].mxu0
    %v3586 = vadd.f32 %v3537, %v3585
    %v3587 = vpop.f32.mrb[0].mxu0
    %v3588 = vpop.f32.mrb[0].mxu0
    %v3589 = vadd.f32 %v3540, %v3588
    %v3590 = vpop.f32.mrb[0].mxu0
    %3591 = vdwg.mxu0
    %v3596 = vunpack.c.l.b16 %v2043
    %v3597 = vunpack.c.h.b16 %v2043
    %v3598 = vunpack.c.l.b16 %v2044
    %v3599 = vunpack.c.h.b16 %v2044
    %v3600 = vunpack.c.l.b16 %v2045
    %v3601 = vunpack.c.h.b16 %v2045
    %v3602 = vunpack.c.l.b16 %v2046
    %v3603 = vunpack.c.h.b16 %v2046
    %v3604 = vpack.c.b16 %v3600, %v3596
    %v3605 = vpack.c.b16 %v3601, %v3597
    %v3606 = vpack.c.b16 %v3602, %v3598
    %v3607 = vpack.c.b16 %v3603, %v3599
    %3612 = vmatprep.subr.bf16.mxu0 %v3156
    %3613 = vmatpush1.bf16.msra.mxu0 %v3060
    %3614 = vmatprep.subr.bf16.mxu0 %v3157
    %3615 = vmatpush1.bf16.msra.mxu0 %v3061
    %3616 = vmatprep.subr.bf16.mxu0 %v3158
    %3617 = vmatpush1.bf16.msra.mxu0 %v3062
    %3618 = vmatprep.subr.bf16.mxu0 %v3159
    %3619 = vmatpush1.bf16.msra.mxu0 %v3063
    %3620 = vmatprep.subr.bf16.mxu0 %v3160
    %3621 = vmatpush1.bf16.msra.mxu0 %v3064
    %3622 = vmatprep.subr.bf16.mxu0 %v3161
    %3623 = vmatpush1.bf16.msra.mxu0 %v3065
    %3624 = vmatprep.subr.bf16.mxu0 %v3162
    %3625 = vmatpush1.bf16.msra.mxu0 %v3066
    %3626 = vmatprep.subr.bf16.mxu0 %v3163
    %3627 = vmatpush1.bf16.msra.mxu0 %v3067
    %3628 = vmatprep.subr.bf16.mxu0 %v3164
    %3629 = vmatpush1.bf16.msra.mxu0 %v3068
    %3630 = vmatprep.subr.bf16.mxu0 %v3165
    %3631 = vmatpush1.bf16.msra.mxu0 %v3069
    %3632 = vmatprep.subr.bf16.mxu0 %v3166
    %3633 = vmatpush1.bf16.msra.mxu0 %v3070
    %3634 = vmatprep.subr.bf16.mxu0 %v3167
    %3635 = vmatpush1.bf16.msra.mxu0 %v3071
    %3636 = vmatprep.subr.bf16.mxu0 %v3168
    %3637 = vmatpush1.bf16.msra.mxu0 %v3072
    %3638 = vmatprep.subr.bf16.mxu0 %v3169
    %3639 = vmatpush1.bf16.msra.mxu0 %v3073
    %3640 = vmatprep.subr.bf16.mxu0 %v3170
    %3641 = vmatpush1.bf16.msra.mxu0 %v3074
    %3642 = vmatprep.subr.bf16.mxu0 %v3171
    %3643 = vmatpush1.bf16.msra.mxu0 %v3075
    %3644 = vmatprep.mubr.bf16.mxu0 %v3605
    %3645 = vmatmul.mubr.bf16.gmra.mrb[0].mxu0 %v3604
    %v3646 = vpop.f32.mrb[0].mxu0
    %v3647 = vadd.f32 0.0, %v3646
    %v3648 = vpop.f32.mrb[0].mxu0
    %v3649 = vadd.f32 0.0, %v3648
    %v3650 = vpop.f32.mrb[0].mxu0
    %v3651 = vadd.f32 0.0, %v3650
    %v3652 = vpop.f32.mrb[0].mxu0
    %v3653 = vadd.f32 0.0, %v3652
    %3654 = vdwg.mxu0
    %3655 = vmatprep.subr.bf16.mxu0 %v3204
    %3656 = vmatpush1.bf16.msra.mxu0 %v3108
    %3657 = vmatprep.subr.bf16.mxu0 %v3205
    %3658 = vmatpush1.bf16.msra.mxu0 %v3109
    %3659 = vmatprep.subr.bf16.mxu0 %v3206
    %3660 = vmatpush1.bf16.msra.mxu0 %v3110
    %3661 = vmatprep.subr.bf16.mxu0 %v3207
    %3662 = vmatpush1.bf16.msra.mxu0 %v3111
    %3663 = vmatprep.subr.bf16.mxu0 %v3208
    %3664 = vmatpush1.bf16.msra.mxu0 %v3112
    %3665 = vmatprep.subr.bf16.mxu0 %v3209
    %3666 = vmatpush1.bf16.msra.mxu0 %v3113
    %3667 = vmatprep.subr.bf16.mxu0 %v3210
    %3668 = vmatpush1.bf16.msra.mxu0 %v3114
    %3669 = vmatprep.subr.bf16.mxu0 %v3211
    %3670 = vmatpush1.bf16.msra.mxu0 %v3115
    %3671 = vmatprep.subr.bf16.mxu0 %v3212
    %3672 = vmatpush1.bf16.msra.mxu0 %v3116
    %3673 = vmatprep.subr.bf16.mxu0 %v3213
    %3674 = vmatpush1.bf16.msra.mxu0 %v3117
    %3675 = vmatprep.subr.bf16.mxu0 %v3214
    %3676 = vmatpush1.bf16.msra.mxu0 %v3118
    %3677 = vmatprep.subr.bf16.mxu0 %v3215
    %3678 = vmatpush1.bf16.msra.mxu0 %v3119
    %3679 = vmatprep.subr.bf16.mxu0 %v3216
    %3680 = vmatpush1.bf16.msra.mxu0 %v3120
    %3681 = vmatprep.subr.bf16.mxu0 %v3217
    %3682 = vmatpush1.bf16.msra.mxu0 %v3121
    %3683 = vmatprep.subr.bf16.mxu0 %v3218
    %3684 = vmatpush1.bf16.msra.mxu0 %v3122
    %3685 = vmatprep.subr.bf16.mxu0 %v3219
    %3686 = vmatpush1.bf16.msra.mxu0 %v3123
    %3687 = vmatprep.mubr.bf16.mxu0 %v3607
    %3688 = vmatmul.mubr.bf16.gmra.mrb[0].mxu0 %v3606
    %v3689 = vpop.f32.mrb[0].mxu0
    %v3690 = vadd.f32 %v3647, %v3689
    %v3691 = vpop.f32.mrb[0].mxu0
    %v3692 = vadd.f32 %v3649, %v3691
    %v3693 = vpop.f32.mrb[0].mxu0
    %v3694 = vadd.f32 %v3651, %v3693
    %v3695 = vpop.f32.mrb[0].mxu0
    %v3696 = vadd.f32 %v3653, %v3695
    %3697 = vdwg.mxu0
    %3698 = vmatprep.subr.bf16.mxu0 0
    %3699 = vmatpush1.bf16.msra.mxu0 %v3252
    %3700 = vmatprep.subr.bf16.mxu0 0
    %3701 = vmatpush1.bf16.msra.mxu0 %v3253
    %3702 = vmatprep.subr.bf16.mxu0 0
    %3703 = vmatpush1.bf16.msra.mxu0 %v3254
    %3704 = vmatprep.subr.bf16.mxu0 0
    %3705 = vmatpush1.bf16.msra.mxu0 %v3255
    %3706 = vmatprep.subr.bf16.mxu0 0
    %3707 = vmatpush1.bf16.msra.mxu0 %v3256
    %3708 = vmatprep.subr.bf16.mxu0 0
    %3709 = vmatpush1.bf16.msra.mxu0 %v3257
    %3710 = vmatprep.subr.bf16.mxu0 0
    %3711 = vmatpush1.bf16.msra.mxu0 %v3258
    %3712 = vmatprep.subr.bf16.mxu0 0
    %3713 = vmatpush1.bf16.msra.mxu0 %v3259
    %3714 = vmatprep.subr.bf16.mxu0 0
    %3715 = vmatpush1.bf16.msra.mxu0 %v3260
    %3716 = vmatprep.subr.bf16.mxu0 0
    %3717 = vmatpush1.bf16.msra.mxu0 %v3261
    %3718 = vmatprep.subr.bf16.mxu0 0
    %3719 = vmatpush1.bf16.msra.mxu0 %v3262
    %3720 = vmatprep.subr.bf16.mxu0 0
    %3721 = vmatpush1.bf16.msra.mxu0 %v3263
    %3722 = vmatprep.subr.bf16.mxu0 0
    %3723 = vmatpush1.bf16.msra.mxu0 %v3264
    %3724 = vmatprep.subr.bf16.mxu0 0
    %3725 = vmatpush1.bf16.msra.mxu0 %v3265
    %3726 = vmatprep.subr.bf16.mxu0 0
    %3727 = vmatpush1.bf16.msra.mxu0 %v3266
    %3728 = vmatprep.subr.bf16.mxu0 0
    %3729 = vmatpush1.bf16.msra.mxu0 %v3267
    %3730 = vmatprep.mubr.bf16.mxu0 %v3605
    %3731 = vmatmul.mubr.bf16.gmra.mrb[0].mxu0 %v3604
    %v3732 = vpop.f32.mrb[0].mxu0
    %v3733 = vadd.f32 0.0, %v3732
    %v3734 = vpop.f32.mrb[0].mxu0
    %v3735 = vpop.f32.mrb[0].mxu0
    %v3736 = vadd.f32 0.0, %v3735
    %v3737 = vpop.f32.mrb[0].mxu0
    %3738 = vdwg.mxu0
    %3739 = vmatprep.subr.bf16.mxu0 0
    %3740 = vmatpush1.bf16.msra.mxu0 %v3300
    %3741 = vmatprep.subr.bf16.mxu0 0
    %3742 = vmatpush1.bf16.msra.mxu0 %v3301
    %3743 = vmatprep.subr.bf16.mxu0 0
    %3744 = vmatpush1.bf16.msra.mxu0 %v3302
    %3745 = vmatprep.subr.bf16.mxu0 0
    %3746 = vmatpush1.bf16.msra.mxu0 %v3303
    %3747 = vmatprep.subr.bf16.mxu0 0
    %3748 = vmatpush1.bf16.msra.mxu0 %v3304
    %3749 = vmatprep.subr.bf16.mxu0 0
    %3750 = vmatpush1.bf16.msra.mxu0 %v3305
    %3751 = vmatprep.subr.bf16.mxu0 0
    %3752 = vmatpush1.bf16.msra.mxu0 %v3306
    %3753 = vmatprep.subr.bf16.mxu0 0
    %3754 = vmatpush1.bf16.msra.mxu0 %v3307
    %3755 = vmatprep.subr.bf16.mxu0 0
    %3756 = vmatpush1.bf16.msra.mxu0 %v3308
    %3757 = vmatprep.subr.bf16.mxu0 0
    %3758 = vmatpush1.bf16.msra.mxu0 %v3309
    %3759 = vmatprep.subr.bf16.mxu0 0
    %3760 = vmatpush1.bf16.msra.mxu0 %v3310
    %3761 = vmatprep.subr.bf16.mxu0 0
    %3762 = vmatpush1.bf16.msra.mxu0 %v3311
    %3763 = vmatprep.subr.bf16.mxu0 0
    %3764 = vmatpush1.bf16.msra.mxu0 %v3312
    %3765 = vmatprep.subr.bf16.mxu0 0
    %3766 = vmatpush1.bf16.msra.mxu0 %v3313
    %3767 = vmatprep.subr.bf16.mxu0 0
    %3768 = vmatpush1.bf16.msra.mxu0 %v3314
    %3769 = vmatprep.subr.bf16.mxu0 0
    %3770 = vmatpush1.bf16.msra.mxu0 %v3315
    %3771 = vmatprep.mubr.bf16.mxu0 %v3607
    %3772 = vmatmul.mubr.bf16.gmra.mrb[0].mxu0 %v3606
    %v3773 = vpop.f32.mrb[0].mxu0
    %v3774 = vadd.f32 %v3733, %v3773
    %v3775 = vpop.f32.mrb[0].mxu0
    %v3776 = vpop.f32.mrb[0].mxu0
    %v3777 = vadd.f32 %v3736, %v3776
    %v3778 = vpop.f32.mrb[0].mxu0
    %3779 = vdwg.mxu0
    %v3780 = vxor.u32 %v3578, 2147483648
    %v3781 = vxor.u32 %v3581, 2147483648
    %v3782 = vmul.f32 %v3780, 1.442695
    %v3783 = vpow.pop %v3782
    %v3784 = vmul.f32 %v3781, 1.442695
    %v3785 = vpow.pop %v3784
    %v3786 = vadd.f32 %v3783, 1.0
    %v3787 = vadd.f32 %v3785, 1.0
    %v3788 = vrcp.pop %v3786
    %v3789 = vmul.f32 1.0, %v3788
    %v3790 = vrcp.pop %v3787
    %v3791 = vmul.f32 1.0, %v3790
    %v3792 = vxor.u32 %v3586, 2147483648
    %v3793 = vxor.u32 %v3589, 2147483648
    %v3794 = vmul.f32 %v3792, 1.442695
    %v3795 = vpow.pop %v3794
    %v3796 = vmul.f32 %v3793, 1.442695
    %v3797 = vpow.pop %v3796
    %v3798 = vadd.f32 %v3795, 1.0
    %v3799 = vadd.f32 %v3797, 1.0
    %v3800 = vrcp.pop %v3798
    %v3801 = vmul.f32 1.0, %v3800
    %v3802 = vrcp.pop %v3799
    %v3803 = vmul.f32 1.0, %v3802
    %v3804 = vmul.f32 %v3801, %v3690
    %v3805 = vmul.f32 %v3803, %v3694
    %v3806 = vmul.f32 %v3801, %v3692
    %v3807 = vmul.f32 %v3803, %v3696
    %v3808 = vmul.f32 %v3801, %v3774
    %v3809 = vmul.f32 %v3803, %v3777
    %s3810 = scalar_lea.vmem [#allocation2], 256
    %v3811 = vld [vmem:[%s3810] sm:$0xff]
    %v3812 = vld [vmem:[%s3810 + $0x8] sm:$0xff]
    %v3813 = vld [vmem:[%s3810 + $0x10] sm:$0xff]
    %v3814 = vld [vmem:[%s3810 + $0x18] sm:$0xff]
    %v3815 = vld [vmem:[%s3810 + $0x20] sm:$0xff]
    %v3816 = vld [vmem:[%s3810 + $0x28] sm:$0xff]
    %v3817 = vld [vmem:[%s3810 + $0x30] sm:$0xff]
    %v3818 = vld [vmem:[%s3810 + $0x38] sm:$0xff]
    %v3819 = vld [vmem:[%s3810 + $0x40] sm:$0xff]
    %v3820 = vld [vmem:[%s3810 + $0x48] sm:$0xff]
    %v3821 = vld [vmem:[%s3810 + $0x50] sm:$0xff]
    %v3822 = vld [vmem:[%s3810 + $0x58] sm:$0xff]
    %v3823 = vld [vmem:[%s3810 + $0x60] sm:$0xff]
    %v3824 = vld [vmem:[%s3810 + $0x68] sm:$0xff]
    %v3825 = vld [vmem:[%s3810 + $0x70] sm:$0xff]
    %v3826 = vld [vmem:[%s3810 + $0x78] sm:$0xff]
    %v3827 = vpack.c.bf16 %v3791, %v3789
    %v3828 = vpack.c.bf16 %v3805, %v3804
    %v3829 = vpack.c.bf16 %v3807, %v3806
    %v3830 = vpack.c.bf16 %v3809, %v3808
    %3831 = vmatprep.subr.bf16.mxu0 0
    %3832 = vmatpush1.bf16.msra.mxu0 %v969
    %3833 = vmatprep.subr.bf16.mxu0 0
    %3834 = vmatpush1.bf16.msra.mxu0 %v970
    %3835 = vmatprep.subr.bf16.mxu0 0
    %3836 = vmatpush1.bf16.msra.mxu0 %v971
    %3837 = vmatprep.subr.bf16.mxu0 0
    %3838 = vmatpush1.bf16.msra.mxu0 %v972
    %3839 = vmatprep.subr.bf16.mxu0 0
    %3840 = vmatpush1.bf16.msra.mxu0 %v973
    %3841 = vmatprep.subr.bf16.mxu0 0
    %3842 = vmatpush1.bf16.msra.mxu0 %v974
    %3843 = vmatprep.subr.bf16.mxu0 0
    %3844 = vmatpush1.bf16.msra.mxu0 %v975
    %3845 = vmatprep.subr.bf16.mxu0 0
    %3846 = vmatpush1.bf16.msra.mxu0 %v976
    %3847 = vmatprep.subr.bf16.mxu0 0
    %3848 = vmatpush1.bf16.msra.mxu0 0
    %3849 = vmatprep.subr.bf16.mxu0 0
    %3850 = vmatpush1.bf16.msra.mxu0 0
    %3851 = vmatprep.subr.bf16.mxu0 0
    %3852 = vmatpush1.bf16.msra.mxu0 0
    %3853 = vmatprep.subr.bf16.mxu0 0
    %3854 = vmatpush1.bf16.msra.mxu0 0
    %3855 = vmatprep.subr.bf16.mxu0 0
    %3856 = vmatpush1.bf16.msra.mxu0 0
    %3857 = vmatprep.subr.bf16.mxu0 0
    %3858 = vmatpush1.bf16.msra.mxu0 0
    %3859 = vmatprep.subr.bf16.mxu0 0
    %3860 = vmatpush1.bf16.msra.mxu0 0
    %3861 = vmatprep.subr.bf16.mxu0 0
    %3862 = vmatpush1.bf16.msra.mxu0 0
    %3863 = vmatprep.mubr.bf16.mxu0 0
    %3864 = vmatmul.mubr.bf16.gmra.mrb[0].mxu0 %v3827
    %v3865 = vpop.f32.mrb[0].mxu0
    %v3866 = vadd.f32 0.0, %v3865
    %v3867 = vpop.f32.mrb[0].mxu0
    %v3868 = vpop.f32.mrb[0].mxu0
    %v3869 = vadd.f32 0.0, %v3868
    %v3870 = vpop.f32.mrb[0].mxu0
    %3871 = vmatprep.mubr.bf16.mxu0 0
    %3872 = vmatmul.mubr.bf16.gmra.mrb[0].mxu0 %v3828
    %v3873 = vpop.f32.mrb[0].mxu0
    %v3874 = vadd.f32 0.0, %v3873
    %v3875 = vpop.f32.mrb[0].mxu0
    %v3876 = vpop.f32.mrb[0].mxu0
    %v3877 = vadd.f32 0.0, %v3876
    %v3878 = vpop.f32.mrb[0].mxu0
    %3879 = vmatprep.mubr.bf16.mxu0 0
    %3880 = vmatmul.mubr.bf16.gmra.mrb[0].mxu0 %v3829
    %v3881 = vpop.f32.mrb[0].mxu0
    %v3882 = vadd.f32 0.0, %v3881
    %v3883 = vpop.f32.mrb[0].mxu0
    %v3884 = vpop.f32.mrb[0].mxu0
    %v3885 = vadd.f32 0.0, %v3884
    %v3886 = vpop.f32.mrb[0].mxu0
    %3887 = vmatprep.mubr.bf16.mxu0 0
    %3888 = vmatmul.mubr.bf16.gmra.mrb[0].mxu0 %v3830
    %v3889 = vpop.f32.mrb[0].mxu0
    %v3890 = vadd.f32 0.0, %v3889
    %v3891 = vpop.f32.mrb[0].mxu0
    %v3892 = vpop.f32.mrb[0].mxu0
    %v3893 = vadd.f32 0.0, %v3892
    %v3894 = vpop.f32.mrb[0].mxu0
    %3895 = vdwg.mxu0
    %v3898 = vcombine.high %v3789, %v3789
    %v3900 = vunpack.c.l.s4 1966171168
    %v3901 = vunpack.c.0.s8 %v3900
    %v3902 = vlaneseq
    %v3903 = vshrl.u32 %v3902, 7
    %v3904 = vsub.s32 %v3901, %v3903
    %v3905 = vrot.slane %v3789, %v3904
    %v3907 = vunpack.c.l.s4 1966171168
    %v3908 = vunpack.c.0.s8 %v3907
    %v3909 = vlaneseq
    %v3910 = vshrl.u32 %v3909, 7
    %v3911 = vsub.s32 %v3908, %v3910
    %v3912 = vrot.slane %v3898, %v3911
    %v3913 = vcombine.high %v3905, %v3905
    %v3914 = vcombine.high %v3912, %v3912
    %v3916 = vunpack.c.l.s4 1966171168
    %v3917 = vunpack.c.0.s8 %v3916
    %v3918 = vlaneseq
    %v3919 = vshrl.u32 %v3918, 7
    %v3920 = vsub.s32 %v3917, %v3919
    %v3921 = vrot.slane %v3905, %v3920
    %v3923 = vunpack.c.l.s4 1966171168
    %v3924 = vunpack.c.0.s8 %v3923
    %v3925 = vlaneseq
    %v3926 = vshrl.u32 %v3925, 7
    %v3927 = vsub.s32 %v3924, %v3926
    %v3928 = vrot.slane %v3912, %v3927
    %v3930 = vunpack.c.l.s4 1966171168
    %v3931 = vunpack.c.0.s8 %v3930
    %v3932 = vlaneseq
    %v3933 = vshrl.u32 %v3932, 7
    %v3934 = vsub.s32 %v3931, %v3933
    %v3935 = vrot.slane %v3913, %v3934
    %v3937 = vunpack.c.l.s4 1966171168
    %v3938 = vunpack.c.0.s8 %v3937
    %v3939 = vlaneseq
    %v3940 = vshrl.u32 %v3939, 7
    %v3941 = vsub.s32 %v3938, %v3940
    %v3942 = vrot.slane %v3914, %v3941
    %v3943 = vcombine.high %v3921, %v3921
    %v3944 = vcombine.high %v3928, %v3928
    %v3945 = vcombine.high %v3935, %v3935
    %v3946 = vcombine.high %v3942, %v3942
    %v3947 = vcombine.high %v3791, %v3791
    %v3949 = vunpack.c.l.s4 1966171168
    %v3950 = vunpack.c.0.s8 %v3949
    %v3951 = vlaneseq
    %v3952 = vshrl.u32 %v3951, 7
    %v3953 = vsub.s32 %v3950, %v3952
    %v3954 = vrot.slane %v3791, %v3953
    %v3956 = vunpack.c.l.s4 1966171168
    %v3957 = vunpack.c.0.s8 %v3956
    %v3958 = vlaneseq
    %v3959 = vshrl.u32 %v3958, 7
    %v3960 = vsub.s32 %v3957, %v3959
    %v3961 = vrot.slane %v3947, %v3960
    %v3962 = vcombine.high %v3954, %v3954
    %v3963 = vcombine.high %v3961, %v3961
    %v3965 = vunpack.c.l.s4 1966171168
    %v3966 = vunpack.c.0.s8 %v3965
    %v3967 = vlaneseq
    %v3968 = vshrl.u32 %v3967, 7
    %v3969 = vsub.s32 %v3966, %v3968
    %v3970 = vrot.slane %v3954, %v3969
    %v3972 = vunpack.c.l.s4 1966171168
    %v3973 = vunpack.c.0.s8 %v3972
    %v3974 = vlaneseq
    %v3975 = vshrl.u32 %v3974, 7
    %v3976 = vsub.s32 %v3973, %v3975
    %v3977 = vrot.slane %v3961, %v3976
    %v3979 = vunpack.c.l.s4 1966171168
    %v3980 = vunpack.c.0.s8 %v3979
    %v3981 = vlaneseq
    %v3982 = vshrl.u32 %v3981, 7
    %v3983 = vsub.s32 %v3980, %v3982
    %v3984 = vrot.slane %v3962, %v3983
    %v3986 = vunpack.c.l.s4 1966171168
    %v3987 = vunpack.c.0.s8 %v3986
    %v3988 = vlaneseq
    %v3989 = vshrl.u32 %v3988, 7
    %v3990 = vsub.s32 %v3987, %v3989
    %v3991 = vrot.slane %v3963, %v3990
    %v3992 = vcombine.high %v3970, %v3970
    %v3993 = vcombine.high %v3977, %v3977
    %v3994 = vcombine.high %v3984, %v3984
    %v3995 = vcombine.high %v3991, %v3991
    %v3996 = vlaneseq
    %v3997 = vshrl.u32 %v3996, 7
    %v3998 = vsub.s32 0, %v3997
    %v3999 = vrot.slane %v3921, %v3998
    %v4000 = vlaneseq
    %v4001 = vshrl.u32 %v4000, 7
    %v4002 = vsub.s32 0, %v4001
    %v4003 = vrot.slane %v3935, %v4002
    %v4004 = vlaneseq
    %v4005 = vshrl.u32 %v4004, 7
    %v4006 = vsub.s32 0, %v4005
    %v4007 = vrot.slane %v3943, %v4006
    %v4008 = vlaneseq
    %v4009 = vshrl.u32 %v4008, 7
    %v4010 = vsub.s32 0, %v4009
    %v4011 = vrot.slane %v3945, %v4010
    %v4012 = vlaneseq
    %v4013 = vshrl.u32 %v4012, 7
    %v4014 = vsub.s32 0, %v4013
    %v4015 = vrot.slane %v3928, %v4014
    %v4016 = vlaneseq
    %v4017 = vshrl.u32 %v4016, 7
    %v4018 = vsub.s32 0, %v4017
    %v4019 = vrot.slane %v3942, %v4018
    %v4020 = vlaneseq
    %v4021 = vshrl.u32 %v4020, 7
    %v4022 = vsub.s32 0, %v4021
    %v4023 = vrot.slane %v3944, %v4022
    %v4024 = vlaneseq
    %v4025 = vshrl.u32 %v4024, 7
    %v4026 = vsub.s32 0, %v4025
    %v4027 = vrot.slane %v3946, %v4026
    %v4028 = vlaneseq
    %v4029 = vshrl.u32 %v4028, 7
    %v4030 = vsub.s32 0, %v4029
    %v4031 = vrot.slane %v3970, %v4030
    %v4032 = vlaneseq
    %v4033 = vshrl.u32 %v4032, 7
    %v4034 = vsub.s32 0, %v4033
    %v4035 = vrot.slane %v3984, %v4034
    %v4036 = vlaneseq
    %v4037 = vshrl.u32 %v4036, 7
    %v4038 = vsub.s32 0, %v4037
    %v4039 = vrot.slane %v3992, %v4038
    %v4040 = vlaneseq
    %v4041 = vshrl.u32 %v4040, 7
    %v4042 = vsub.s32 0, %v4041
    %v4043 = vrot.slane %v3994, %v4042
    %v4044 = vlaneseq
    %v4045 = vshrl.u32 %v4044, 7
    %v4046 = vsub.s32 0, %v4045
    %v4047 = vrot.slane %v3977, %v4046
    %v4048 = vlaneseq
    %v4049 = vshrl.u32 %v4048, 7
    %v4050 = vsub.s32 0, %v4049
    %v4051 = vrot.slane %v3991, %v4050
    %v4052 = vlaneseq
    %v4053 = vshrl.u32 %v4052, 7
    %v4054 = vsub.s32 0, %v4053
    %v4055 = vrot.slane %v3993, %v4054
    %v4056 = vlaneseq
    %v4057 = vshrl.u32 %v4056, 7
    %v4058 = vsub.s32 0, %v4057
    %v4059 = vrot.slane %v3995, %v4058
    %v4076 = vmul.f32 %v3999, %v3866
    %v4077 = vmul.f32 %v3999, %v3869
    %v4078 = vmul.f32 %v4003, %v3866
    %v4079 = vmul.f32 %v4003, %v3869
    %v4080 = vmul.f32 %v4007, %v3866
    %v4081 = vmul.f32 %v4007, %v3869
    %v4082 = vmul.f32 %v4011, %v3866
    %v4083 = vmul.f32 %v4011, %v3869
    %v4084 = vmul.f32 %v4015, %v3866
    %v4085 = vmul.f32 %v4015, %v3869
    %v4086 = vmul.f32 %v4019, %v3866
    %v4087 = vmul.f32 %v4019, %v3869
    %v4088 = vmul.f32 %v4023, %v3866
    %v4089 = vmul.f32 %v4023, %v3869
    %v4090 = vmul.f32 %v4027, %v3866
    %v4091 = vmul.f32 %v4027, %v3869
    %v4092 = vmul.f32 %v4031, %v3866
    %v4093 = vmul.f32 %v4031, %v3869
    %v4094 = vmul.f32 %v4035, %v3866
    %v4095 = vmul.f32 %v4035, %v3869
    %v4096 = vmul.f32 %v4039, %v3866
    %v4097 = vmul.f32 %v4039, %v3869
    %v4098 = vmul.f32 %v4043, %v3866
    %v4099 = vmul.f32 %v4043, %v3869
    %v4100 = vmul.f32 %v4047, %v3866
    %v4101 = vmul.f32 %v4047, %v3869
    %v4102 = vmul.f32 %v4051, %v3866
    %v4103 = vmul.f32 %v4051, %v3869
    %v4104 = vmul.f32 %v4055, %v3866
    %v4105 = vmul.f32 %v4055, %v3869
    %v4106 = vmul.f32 %v4059, %v3866
    %v4107 = vmul.f32 %v4059, %v3869
    %v4108 = vpack.c.bf16 %v4077, %v4076
    %v4109 = vpack.c.bf16 %v4079, %v4078
    %v4110 = vpack.c.bf16 %v4081, %v4080
    %v4111 = vpack.c.bf16 %v4083, %v4082
    %v4112 = vpack.c.bf16 %v4085, %v4084
    %v4113 = vpack.c.bf16 %v4087, %v4086
    %v4114 = vpack.c.bf16 %v4089, %v4088
    %v4115 = vpack.c.bf16 %v4091, %v4090
    %v4116 = vpack.c.bf16 %v4093, %v4092
    %v4117 = vpack.c.bf16 %v4095, %v4094
    %v4118 = vpack.c.bf16 %v4097, %v4096
    %v4119 = vpack.c.bf16 %v4099, %v4098
    %v4120 = vpack.c.bf16 %v4101, %v4100
    %v4121 = vpack.c.bf16 %v4103, %v4102
    %v4122 = vpack.c.bf16 %v4105, %v4104
    %v4123 = vpack.c.bf16 %v4107, %v4106
    %v4126 = vcombine.high %v3804, %v3804
    %v4128 = vunpack.c.l.s4 1966171168
    %v4129 = vunpack.c.0.s8 %v4128
    %v4130 = vlaneseq
    %v4131 = vshrl.u32 %v4130, 7
    %v4132 = vsub.s32 %v4129, %v4131
    %v4133 = vrot.slane %v3804, %v4132
    %v4135 = vunpack.c.l.s4 1966171168
    %v4136 = vunpack.c.0.s8 %v4135
    %v4137 = vlaneseq
    %v4138 = vshrl.u32 %v4137, 7
    %v4139 = vsub.s32 %v4136, %v4138
    %v4140 = vrot.slane %v4126, %v4139
    %v4141 = vcombine.high %v4133, %v4133
    %v4142 = vcombine.high %v4140, %v4140
    %v4144 = vunpack.c.l.s4 1966171168
    %v4145 = vunpack.c.0.s8 %v4144
    %v4146 = vlaneseq
    %v4147 = vshrl.u32 %v4146, 7
    %v4148 = vsub.s32 %v4145, %v4147
    %v4149 = vrot.slane %v4133, %v4148
    %v4151 = vunpack.c.l.s4 1966171168
    %v4152 = vunpack.c.0.s8 %v4151
    %v4153 = vlaneseq
    %v4154 = vshrl.u32 %v4153, 7
    %v4155 = vsub.s32 %v4152, %v4154
    %v4156 = vrot.slane %v4140, %v4155
    %v4158 = vunpack.c.l.s4 1966171168
    %v4159 = vunpack.c.0.s8 %v4158
    %v4160 = vlaneseq
    %v4161 = vshrl.u32 %v4160, 7
    %v4162 = vsub.s32 %v4159, %v4161
    %v4163 = vrot.slane %v4141, %v4162
    %v4165 = vunpack.c.l.s4 1966171168
    %v4166 = vunpack.c.0.s8 %v4165
    %v4167 = vlaneseq
    %v4168 = vshrl.u32 %v4167, 7
    %v4169 = vsub.s32 %v4166, %v4168
    %v4170 = vrot.slane %v4142, %v4169
    %v4171 = vcombine.high %v4149, %v4149
    %v4172 = vcombine.high %v4156, %v4156
    %v4173 = vcombine.high %v4163, %v4163
    %v4174 = vcombine.high %v4170, %v4170
    %v4175 = vcombine.high %v3805, %v3805
    %v4177 = vunpack.c.l.s4 1966171168
    %v4178 = vunpack.c.0.s8 %v4177
    %v4179 = vlaneseq
    %v4180 = vshrl.u32 %v4179, 7
    %v4181 = vsub.s32 %v4178, %v4180
    %v4182 = vrot.slane %v3805, %v4181
    %v4184 = vunpack.c.l.s4 1966171168
    %v4185 = vunpack.c.0.s8 %v4184
    %v4186 = vlaneseq
    %v4187 = vshrl.u32 %v4186, 7
    %v4188 = vsub.s32 %v4185, %v4187
    %v4189 = vrot.slane %v4175, %v4188
    %v4190 = vcombine.high %v4182, %v4182
    %v4191 = vcombine.high %v4189, %v4189
    %v4193 = vunpack.c.l.s4 1966171168
    %v4194 = vunpack.c.0.s8 %v4193
    %v4195 = vlaneseq
    %v4196 = vshrl.u32 %v4195, 7
    %v4197 = vsub.s32 %v4194, %v4196
    %v4198 = vrot.slane %v4182, %v4197
    %v4200 = vunpack.c.l.s4 1966171168
    %v4201 = vunpack.c.0.s8 %v4200
    %v4202 = vlaneseq
    %v4203 = vshrl.u32 %v4202, 7
    %v4204 = vsub.s32 %v4201, %v4203
    %v4205 = vrot.slane %v4189, %v4204
    %v4207 = vunpack.c.l.s4 1966171168
    %v4208 = vunpack.c.0.s8 %v4207
    %v4209 = vlaneseq
    %v4210 = vshrl.u32 %v4209, 7
    %v4211 = vsub.s32 %v4208, %v4210
    %v4212 = vrot.slane %v4190, %v4211
    %v4214 = vunpack.c.l.s4 1966171168
    %v4215 = vunpack.c.0.s8 %v4214
    %v4216 = vlaneseq
    %v4217 = vshrl.u32 %v4216, 7
    %v4218 = vsub.s32 %v4215, %v4217
    %v4219 = vrot.slane %v4191, %v4218
    %v4220 = vcombine.high %v4198, %v4198
    %v4221 = vcombine.high %v4205, %v4205
    %v4222 = vcombine.high %v4212, %v4212
    %v4223 = vcombine.high %v4219, %v4219
    %v4224 = vlaneseq
    %v4225 = vshrl.u32 %v4224, 7
    %v4226 = vsub.s32 0, %v4225
    %v4227 = vrot.slane %v4149, %v4226
    %v4228 = vlaneseq
    %v4229 = vshrl.u32 %v4228, 7
    %v4230 = vsub.s32 0, %v4229
    %v4231 = vrot.slane %v4163, %v4230
    %v4232 = vlaneseq
    %v4233 = vshrl.u32 %v4232, 7
    %v4234 = vsub.s32 0, %v4233
    %v4235 = vrot.slane %v4171, %v4234
    %v4236 = vlaneseq
    %v4237 = vshrl.u32 %v4236, 7
    %v4238 = vsub.s32 0, %v4237
    %v4239 = vrot.slane %v4173, %v4238
    %v4240 = vlaneseq
    %v4241 = vshrl.u32 %v4240, 7
    %v4242 = vsub.s32 0, %v4241
    %v4243 = vrot.slane %v4156, %v4242
    %v4244 = vlaneseq
    %v4245 = vshrl.u32 %v4244, 7
    %v4246 = vsub.s32 0, %v4245
    %v4247 = vrot.slane %v4170, %v4246
    %v4248 = vlaneseq
    %v4249 = vshrl.u32 %v4248, 7
    %v4250 = vsub.s32 0, %v4249
    %v4251 = vrot.slane %v4172, %v4250
    %v4252 = vlaneseq
    %v4253 = vshrl.u32 %v4252, 7
    %v4254 = vsub.s32 0, %v4253
    %v4255 = vrot.slane %v4174, %v4254
    %v4256 = vlaneseq
    %v4257 = vshrl.u32 %v4256, 7
    %v4258 = vsub.s32 0, %v4257
    %v4259 = vrot.slane %v4198, %v4258
    %v4260 = vlaneseq
    %v4261 = vshrl.u32 %v4260, 7
    %v4262 = vsub.s32 0, %v4261
    %v4263 = vrot.slane %v4212, %v4262
    %v4264 = vlaneseq
    %v4265 = vshrl.u32 %v4264, 7
    %v4266 = vsub.s32 0, %v4265
    %v4267 = vrot.slane %v4220, %v4266
    %v4268 = vlaneseq
    %v4269 = vshrl.u32 %v4268, 7
    %v4270 = vsub.s32 0, %v4269
    %v4271 = vrot.slane %v4222, %v4270
    %v4272 = vlaneseq
    %v4273 = vshrl.u32 %v4272, 7
    %v4274 = vsub.s32 0, %v4273
    %v4275 = vrot.slane %v4205, %v4274
    %v4276 = vlaneseq
    %v4277 = vshrl.u32 %v4276, 7
    %v4278 = vsub.s32 0, %v4277
    %v4279 = vrot.slane %v4219, %v4278
    %v4280 = vlaneseq
    %v4281 = vshrl.u32 %v4280, 7
    %v4282 = vsub.s32 0, %v4281
    %v4283 = vrot.slane %v4221, %v4282
    %v4284 = vlaneseq
    %v4285 = vshrl.u32 %v4284, 7
    %v4286 = vsub.s32 0, %v4285
    %v4287 = vrot.slane %v4223, %v4286
    %v4304 = vmul.f32 %v4227, %v3874
    %v4305 = vmul.f32 %v4227, %v3877
    %v4306 = vmul.f32 %v4231, %v3874
    %v4307 = vmul.f32 %v4231, %v3877
    %v4308 = vmul.f32 %v4235, %v3874
    %v4309 = vmul.f32 %v4235, %v3877
    %v4310 = vmul.f32 %v4239, %v3874
    %v4311 = vmul.f32 %v4239, %v3877
    %v4312 = vmul.f32 %v4243, %v3874
    %v4313 = vmul.f32 %v4243, %v3877
    %v4314 = vmul.f32 %v4247, %v3874
    %v4315 = vmul.f32 %v4247, %v3877
    %v4316 = vmul.f32 %v4251, %v3874
    %v4317 = vmul.f32 %v4251, %v3877
    %v4318 = vmul.f32 %v4255, %v3874
    %v4319 = vmul.f32 %v4255, %v3877
    %v4320 = vmul.f32 %v4259, %v3874
    %v4321 = vmul.f32 %v4259, %v3877
    %v4322 = vmul.f32 %v4263, %v3874
    %v4323 = vmul.f32 %v4263, %v3877
    %v4324 = vmul.f32 %v4267, %v3874
    %v4325 = vmul.f32 %v4267, %v3877
    %v4326 = vmul.f32 %v4271, %v3874
    %v4327 = vmul.f32 %v4271, %v3877
    %v4328 = vmul.f32 %v4275, %v3874
    %v4329 = vmul.f32 %v4275, %v3877
    %v4330 = vmul.f32 %v4279, %v3874
    %v4331 = vmul.f32 %v4279, %v3877
    %v4332 = vmul.f32 %v4283, %v3874
    %v4333 = vmul.f32 %v4283, %v3877
    %v4334 = vmul.f32 %v4287, %v3874
    %v4335 = vmul.f32 %v4287, %v3877
    %v4336 = vpack.c.bf16 %v4305, %v4304
    %v4337 = vpack.c.bf16 %v4307, %v4306
    %v4338 = vpack.c.bf16 %v4309, %v4308
    %v4339 = vpack.c.bf16 %v4311, %v4310
    %v4340 = vpack.c.bf16 %v4313, %v4312
    %v4341 = vpack.c.bf16 %v4315, %v4314
    %v4342 = vpack.c.bf16 %v4317, %v4316
    %v4343 = vpack.c.bf16 %v4319, %v4318
    %v4344 = vpack.c.bf16 %v4321, %v4320
    %v4345 = vpack.c.bf16 %v4323, %v4322
    %v4346 = vpack.c.bf16 %v4325, %v4324
    %v4347 = vpack.c.bf16 %v4327, %v4326
    %v4348 = vpack.c.bf16 %v4329, %v4328
    %v4349 = vpack.c.bf16 %v4331, %v4330
    %v4350 = vpack.c.bf16 %v4333, %v4332
    %v4351 = vpack.c.bf16 %v4335, %v4334
    %v4354 = vcombine.high %v3806, %v3806
    %v4356 = vunpack.c.l.s4 1966171168
    %v4357 = vunpack.c.0.s8 %v4356
    %v4358 = vlaneseq
    %v4359 = vshrl.u32 %v4358, 7
    %v4360 = vsub.s32 %v4357, %v4359
    %v4361 = vrot.slane %v3806, %v4360
    %v4363 = vunpack.c.l.s4 1966171168
    %v4364 = vunpack.c.0.s8 %v4363
    %v4365 = vlaneseq
    %v4366 = vshrl.u32 %v4365, 7
    %v4367 = vsub.s32 %v4364, %v4366
    %v4368 = vrot.slane %v4354, %v4367
    %v4369 = vcombine.high %v4361, %v4361
    %v4370 = vcombine.high %v4368, %v4368
    %v4372 = vunpack.c.l.s4 1966171168
    %v4373 = vunpack.c.0.s8 %v4372
    %v4374 = vlaneseq
    %v4375 = vshrl.u32 %v4374, 7
    %v4376 = vsub.s32 %v4373, %v4375
    %v4377 = vrot.slane %v4361, %v4376
    %v4379 = vunpack.c.l.s4 1966171168
    %v4380 = vunpack.c.0.s8 %v4379
    %v4381 = vlaneseq
    %v4382 = vshrl.u32 %v4381, 7
    %v4383 = vsub.s32 %v4380, %v4382
    %v4384 = vrot.slane %v4368, %v4383
    %v4386 = vunpack.c.l.s4 1966171168
    %v4387 = vunpack.c.0.s8 %v4386
    %v4388 = vlaneseq
    %v4389 = vshrl.u32 %v4388, 7
    %v4390 = vsub.s32 %v4387, %v4389
    %v4391 = vrot.slane %v4369, %v4390
    %v4393 = vunpack.c.l.s4 1966171168
    %v4394 = vunpack.c.0.s8 %v4393
    %v4395 = vlaneseq
    %v4396 = vshrl.u32 %v4395, 7
    %v4397 = vsub.s32 %v4394, %v4396
    %v4398 = vrot.slane %v4370, %v4397
    %v4399 = vcombine.high %v4377, %v4377
    %v4400 = vcombine.high %v4384, %v4384
    %v4401 = vcombine.high %v4391, %v4391
    %v4402 = vcombine.high %v4398, %v4398
    %v4403 = vcombine.high %v3807, %v3807
    %v4405 = vunpack.c.l.s4 1966171168
    %v4406 = vunpack.c.0.s8 %v4405
    %v4407 = vlaneseq
    %v4408 = vshrl.u32 %v4407, 7
    %v4409 = vsub.s32 %v4406, %v4408
    %v4410 = vrot.slane %v3807, %v4409
    %v4412 = vunpack.c.l.s4 1966171168
    %v4413 = vunpack.c.0.s8 %v4412
    %v4414 = vlaneseq
    %v4415 = vshrl.u32 %v4414, 7
    %v4416 = vsub.s32 %v4413, %v4415
    %v4417 = vrot.slane %v4403, %v4416
    %v4418 = vcombine.high %v4410, %v4410
    %v4419 = vcombine.high %v4417, %v4417
    %v4421 = vunpack.c.l.s4 1966171168
    %v4422 = vunpack.c.0.s8 %v4421
    %v4423 = vlaneseq
    %v4424 = vshrl.u32 %v4423, 7
    %v4425 = vsub.s32 %v4422, %v4424
    %v4426 = vrot.slane %v4410, %v4425
    %v4428 = vunpack.c.l.s4 1966171168
    %v4429 = vunpack.c.0.s8 %v4428
    %v4430 = vlaneseq
    %v4431 = vshrl.u32 %v4430, 7
    %v4432 = vsub.s32 %v4429, %v4431
    %v4433 = vrot.slane %v4417, %v4432
    %v4435 = vunpack.c.l.s4 1966171168
    %v4436 = vunpack.c.0.s8 %v4435
    %v4437 = vlaneseq
    %v4438 = vshrl.u32 %v4437, 7
    %v4439 = vsub.s32 %v4436, %v4438
    %v4440 = vrot.slane %v4418, %v4439
    %v4442 = vunpack.c.l.s4 1966171168
    %v4443 = vunpack.c.0.s8 %v4442
    %v4444 = vlaneseq
    %v4445 = vshrl.u32 %v4444, 7
    %v4446 = vsub.s32 %v4443, %v4445
    %v4447 = vrot.slane %v4419, %v4446
    %v4448 = vcombine.high %v4426, %v4426
    %v4449 = vcombine.high %v4433, %v4433
    %v4450 = vcombine.high %v4440, %v4440
    %v4451 = vcombine.high %v4447, %v4447
    %v4452 = vlaneseq
    %v4453 = vshrl.u32 %v4452, 7
    %v4454 = vsub.s32 0, %v4453
    %v4455 = vrot.slane %v4377, %v4454
    %v4456 = vlaneseq
    %v4457 = vshrl.u32 %v4456, 7
    %v4458 = vsub.s32 0, %v4457
    %v4459 = vrot.slane %v4391, %v4458
    %v4460 = vlaneseq
    %v4461 = vshrl.u32 %v4460, 7
    %v4462 = vsub.s32 0, %v4461
    %v4463 = vrot.slane %v4399, %v4462
    %v4464 = vlaneseq
    %v4465 = vshrl.u32 %v4464, 7
    %v4466 = vsub.s32 0, %v4465
    %v4467 = vrot.slane %v4401, %v4466
    %v4468 = vlaneseq
    %v4469 = vshrl.u32 %v4468, 7
    %v4470 = vsub.s32 0, %v4469
    %v4471 = vrot.slane %v4384, %v4470
    %v4472 = vlaneseq
    %v4473 = vshrl.u32 %v4472, 7
    %v4474 = vsub.s32 0, %v4473
    %v4475 = vrot.slane %v4398, %v4474
    %v4476 = vlaneseq
    %v4477 = vshrl.u32 %v4476, 7
    %v4478 = vsub.s32 0, %v4477
    %v4479 = vrot.slane %v4400, %v4478
    %v4480 = vlaneseq
    %v4481 = vshrl.u32 %v4480, 7
    %v4482 = vsub.s32 0, %v4481
    %v4483 = vrot.slane %v4402, %v4482
    %v4484 = vlaneseq
    %v4485 = vshrl.u32 %v4484, 7
    %v4486 = vsub.s32 0, %v4485
    %v4487 = vrot.slane %v4426, %v4486
    %v4488 = vlaneseq
    %v4489 = vshrl.u32 %v4488, 7
    %v4490 = vsub.s32 0, %v4489
    %v4491 = vrot.slane %v4440, %v4490
    %v4492 = vlaneseq
    %v4493 = vshrl.u32 %v4492, 7
    %v4494 = vsub.s32 0, %v4493
    %v4495 = vrot.slane %v4448, %v4494
    %v4496 = vlaneseq
    %v4497 = vshrl.u32 %v4496, 7
    %v4498 = vsub.s32 0, %v4497
    %v4499 = vrot.slane %v4450, %v4498
    %v4500 = vlaneseq
    %v4501 = vshrl.u32 %v4500, 7
    %v4502 = vsub.s32 0, %v4501
    %v4503 = vrot.slane %v4433, %v4502
    %v4504 = vlaneseq
    %v4505 = vshrl.u32 %v4504, 7
    %v4506 = vsub.s32 0, %v4505
    %v4507 = vrot.slane %v4447, %v4506
    %v4508 = vlaneseq
    %v4509 = vshrl.u32 %v4508, 7
    %v4510 = vsub.s32 0, %v4509
    %v4511 = vrot.slane %v4449, %v4510
    %v4512 = vlaneseq
    %v4513 = vshrl.u32 %v4512, 7
    %v4514 = vsub.s32 0, %v4513
    %v4515 = vrot.slane %v4451, %v4514
    %v4532 = vmul.f32 %v4455, %v3882
    %v4533 = vmul.f32 %v4455, %v3885
    %v4534 = vmul.f32 %v4459, %v3882
    %v4535 = vmul.f32 %v4459, %v3885
    %v4536 = vmul.f32 %v4463, %v3882
    %v4537 = vmul.f32 %v4463, %v3885
    %v4538 = vmul.f32 %v4467, %v3882
    %v4539 = vmul.f32 %v4467, %v3885
    %v4540 = vmul.f32 %v4471, %v3882
    %v4541 = vmul.f32 %v4471, %v3885
    %v4542 = vmul.f32 %v4475, %v3882
    %v4543 = vmul.f32 %v4475, %v3885
    %v4544 = vmul.f32 %v4479, %v3882
    %v4545 = vmul.f32 %v4479, %v3885
    %v4546 = vmul.f32 %v4483, %v3882
    %v4547 = vmul.f32 %v4483, %v3885
    %v4548 = vmul.f32 %v4487, %v3882
    %v4549 = vmul.f32 %v4487, %v3885
    %v4550 = vmul.f32 %v4491, %v3882
    %v4551 = vmul.f32 %v4491, %v3885
    %v4552 = vmul.f32 %v4495, %v3882
    %v4553 = vmul.f32 %v4495, %v3885
    %v4554 = vmul.f32 %v4499, %v3882
    %v4555 = vmul.f32 %v4499, %v3885
    %v4556 = vmul.f32 %v4503, %v3882
    %v4557 = vmul.f32 %v4503, %v3885
    %v4558 = vmul.f32 %v4507, %v3882
    %v4559 = vmul.f32 %v4507, %v3885
    %v4560 = vmul.f32 %v4511, %v3882
    %v4561 = vmul.f32 %v4511, %v3885
    %v4562 = vmul.f32 %v4515, %v3882
    %v4563 = vmul.f32 %v4515, %v3885
    %v4564 = vpack.c.bf16 %v4533, %v4532
    %v4565 = vpack.c.bf16 %v4535, %v4534
    %v4566 = vpack.c.bf16 %v4537, %v4536
    %v4567 = vpack.c.bf16 %v4539, %v4538
    %v4568 = vpack.c.bf16 %v4541, %v4540
    %v4569 = vpack.c.bf16 %v4543, %v4542
    %v4570 = vpack.c.bf16 %v4545, %v4544
    %v4571 = vpack.c.bf16 %v4547, %v4546
    %v4572 = vpack.c.bf16 %v4549, %v4548
    %v4573 = vpack.c.bf16 %v4551, %v4550
    %v4574 = vpack.c.bf16 %v4553, %v4552
    %v4575 = vpack.c.bf16 %v4555, %v4554
    %v4576 = vpack.c.bf16 %v4557, %v4556
    %v4577 = vpack.c.bf16 %v4559, %v4558
    %v4578 = vpack.c.bf16 %v4561, %v4560
    %v4579 = vpack.c.bf16 %v4563, %v4562
    %v4582 = vcombine.high %v3808, %v3808
    %v4584 = vunpack.c.l.s4 1966171168
    %v4585 = vunpack.c.0.s8 %v4584
    %v4586 = vlaneseq
    %v4587 = vshrl.u32 %v4586, 7
    %v4588 = vsub.s32 %v4585, %v4587
    %v4589 = vrot.slane %v3808, %v4588
    %v4591 = vunpack.c.l.s4 1966171168
    %v4592 = vunpack.c.0.s8 %v4591
    %v4593 = vlaneseq
    %v4594 = vshrl.u32 %v4593, 7
    %v4595 = vsub.s32 %v4592, %v4594
    %v4596 = vrot.slane %v4582, %v4595
    %v4597 = vcombine.high %v4589, %v4589
    %v4598 = vcombine.high %v4596, %v4596
    %v4600 = vunpack.c.l.s4 1966171168
    %v4601 = vunpack.c.0.s8 %v4600
    %v4602 = vlaneseq
    %v4603 = vshrl.u32 %v4602, 7
    %v4604 = vsub.s32 %v4601, %v4603
    %v4605 = vrot.slane %v4589, %v4604
    %v4607 = vunpack.c.l.s4 1966171168
    %v4608 = vunpack.c.0.s8 %v4607
    %v4609 = vlaneseq
    %v4610 = vshrl.u32 %v4609, 7
    %v4611 = vsub.s32 %v4608, %v4610
    %v4612 = vrot.slane %v4596, %v4611
    %v4614 = vunpack.c.l.s4 1966171168
    %v4615 = vunpack.c.0.s8 %v4614
    %v4616 = vlaneseq
    %v4617 = vshrl.u32 %v4616, 7
    %v4618 = vsub.s32 %v4615, %v4617
    %v4619 = vrot.slane %v4597, %v4618
    %v4621 = vunpack.c.l.s4 1966171168
    %v4622 = vunpack.c.0.s8 %v4621
    %v4623 = vlaneseq
    %v4624 = vshrl.u32 %v4623, 7
    %v4625 = vsub.s32 %v4622, %v4624
    %v4626 = vrot.slane %v4598, %v4625
    %v4627 = vcombine.high %v4605, %v4605
    %v4628 = vcombine.high %v4612, %v4612
    %v4629 = vcombine.high %v4619, %v4619
    %v4630 = vcombine.high %v4626, %v4626
    %v4631 = vcombine.high %v3809, %v3809
    %v4633 = vunpack.c.l.s4 1966171168
    %v4634 = vunpack.c.0.s8 %v4633
    %v4635 = vlaneseq
    %v4636 = vshrl.u32 %v4635, 7
    %v4637 = vsub.s32 %v4634, %v4636
    %v4638 = vrot.slane %v3809, %v4637
    %v4640 = vunpack.c.l.s4 1966171168
    %v4641 = vunpack.c.0.s8 %v4640
    %v4642 = vlaneseq
    %v4643 = vshrl.u32 %v4642, 7
    %v4644 = vsub.s32 %v4641, %v4643
    %v4645 = vrot.slane %v4631, %v4644
    %v4646 = vcombine.high %v4638, %v4638
    %v4647 = vcombine.high %v4645, %v4645
    %v4649 = vunpack.c.l.s4 1966171168
    %v4650 = vunpack.c.0.s8 %v4649
    %v4651 = vlaneseq
    %v4652 = vshrl.u32 %v4651, 7
    %v4653 = vsub.s32 %v4650, %v4652
    %v4654 = vrot.slane %v4638, %v4653
    %v4656 = vunpack.c.l.s4 1966171168
    %v4657 = vunpack.c.0.s8 %v4656
    %v4658 = vlaneseq
    %v4659 = vshrl.u32 %v4658, 7
    %v4660 = vsub.s32 %v4657, %v4659
    %v4661 = vrot.slane %v4645, %v4660
    %v4663 = vunpack.c.l.s4 1966171168
    %v4664 = vunpack.c.0.s8 %v4663
    %v4665 = vlaneseq
    %v4666 = vshrl.u32 %v4665, 7
    %v4667 = vsub.s32 %v4664, %v4666
    %v4668 = vrot.slane %v4646, %v4667
    %v4670 = vunpack.c.l.s4 1966171168
    %v4671 = vunpack.c.0.s8 %v4670
    %v4672 = vlaneseq
    %v4673 = vshrl.u32 %v4672, 7
    %v4674 = vsub.s32 %v4671, %v4673
    %v4675 = vrot.slane %v4647, %v4674
    %v4676 = vcombine.high %v4654, %v4654
    %v4677 = vcombine.high %v4661, %v4661
    %v4678 = vcombine.high %v4668, %v4668
    %v4679 = vcombine.high %v4675, %v4675
    %v4680 = vlaneseq
    %v4681 = vshrl.u32 %v4680, 7
    %v4682 = vsub.s32 0, %v4681
    %v4683 = vrot.slane %v4605, %v4682
    %v4684 = vlaneseq
    %v4685 = vshrl.u32 %v4684, 7
    %v4686 = vsub.s32 0, %v4685
    %v4687 = vrot.slane %v4619, %v4686
    %v4688 = vlaneseq
    %v4689 = vshrl.u32 %v4688, 7
    %v4690 = vsub.s32 0, %v4689
    %v4691 = vrot.slane %v4627, %v4690
    %v4692 = vlaneseq
    %v4693 = vshrl.u32 %v4692, 7
    %v4694 = vsub.s32 0, %v4693
    %v4695 = vrot.slane %v4629, %v4694
    %v4696 = vlaneseq
    %v4697 = vshrl.u32 %v4696, 7
    %v4698 = vsub.s32 0, %v4697
    %v4699 = vrot.slane %v4612, %v4698
    %v4700 = vlaneseq
    %v4701 = vshrl.u32 %v4700, 7
    %v4702 = vsub.s32 0, %v4701
    %v4703 = vrot.slane %v4626, %v4702
    %v4704 = vlaneseq
    %v4705 = vshrl.u32 %v4704, 7
    %v4706 = vsub.s32 0, %v4705
    %v4707 = vrot.slane %v4628, %v4706
    %v4708 = vlaneseq
    %v4709 = vshrl.u32 %v4708, 7
    %v4710 = vsub.s32 0, %v4709
    %v4711 = vrot.slane %v4630, %v4710
    %v4712 = vlaneseq
    %v4713 = vshrl.u32 %v4712, 7
    %v4714 = vsub.s32 0, %v4713
    %v4715 = vrot.slane %v4654, %v4714
    %v4716 = vlaneseq
    %v4717 = vshrl.u32 %v4716, 7
    %v4718 = vsub.s32 0, %v4717
    %v4719 = vrot.slane %v4668, %v4718
    %v4720 = vlaneseq
    %v4721 = vshrl.u32 %v4720, 7
    %v4722 = vsub.s32 0, %v4721
    %v4723 = vrot.slane %v4676, %v4722
    %v4724 = vlaneseq
    %v4725 = vshrl.u32 %v4724, 7
    %v4726 = vsub.s32 0, %v4725
    %v4727 = vrot.slane %v4678, %v4726
    %v4728 = vlaneseq
    %v4729 = vshrl.u32 %v4728, 7
    %v4730 = vsub.s32 0, %v4729
    %v4731 = vrot.slane %v4661, %v4730
    %v4732 = vlaneseq
    %v4733 = vshrl.u32 %v4732, 7
    %v4734 = vsub.s32 0, %v4733
    %v4735 = vrot.slane %v4675, %v4734
    %v4736 = vlaneseq
    %v4737 = vshrl.u32 %v4736, 7
    %v4738 = vsub.s32 0, %v4737
    %v4739 = vrot.slane %v4677, %v4738
    %v4740 = vlaneseq
    %v4741 = vshrl.u32 %v4740, 7
    %v4742 = vsub.s32 0, %v4741
    %v4743 = vrot.slane %v4679, %v4742
    %v4760 = vmul.f32 %v4683, %v3890
    %v4761 = vmul.f32 %v4683, %v3893
    %v4762 = vmul.f32 %v4687, %v3890
    %v4763 = vmul.f32 %v4687, %v3893
    %v4764 = vmul.f32 %v4691, %v3890
    %v4765 = vmul.f32 %v4691, %v3893
    %v4766 = vmul.f32 %v4695, %v3890
    %v4767 = vmul.f32 %v4695, %v3893
    %v4768 = vmul.f32 %v4699, %v3890
    %v4769 = vmul.f32 %v4699, %v3893
    %v4770 = vmul.f32 %v4703, %v3890
    %v4771 = vmul.f32 %v4703, %v3893
    %v4772 = vmul.f32 %v4707, %v3890
    %v4773 = vmul.f32 %v4707, %v3893
    %v4774 = vmul.f32 %v4711, %v3890
    %v4775 = vmul.f32 %v4711, %v3893
    %v4776 = vmul.f32 %v4715, %v3890
    %v4777 = vmul.f32 %v4715, %v3893
    %v4778 = vmul.f32 %v4719, %v3890
    %v4779 = vmul.f32 %v4719, %v3893
    %v4780 = vmul.f32 %v4723, %v3890
    %v4781 = vmul.f32 %v4723, %v3893
    %v4782 = vmul.f32 %v4727, %v3890
    %v4783 = vmul.f32 %v4727, %v3893
    %v4784 = vmul.f32 %v4731, %v3890
    %v4785 = vmul.f32 %v4731, %v3893
    %v4786 = vmul.f32 %v4735, %v3890
    %v4787 = vmul.f32 %v4735, %v3893
    %v4788 = vmul.f32 %v4739, %v3890
    %v4789 = vmul.f32 %v4739, %v3893
    %v4790 = vmul.f32 %v4743, %v3890
    %v4791 = vmul.f32 %v4743, %v3893
    %v4792 = vpack.c.bf16 %v4761, %v4760
    %v4793 = vpack.c.bf16 %v4763, %v4762
    %v4794 = vpack.c.bf16 %v4765, %v4764
    %v4795 = vpack.c.bf16 %v4767, %v4766
    %v4796 = vpack.c.bf16 %v4769, %v4768
    %v4797 = vpack.c.bf16 %v4771, %v4770
    %v4798 = vpack.c.bf16 %v4773, %v4772
    %v4799 = vpack.c.bf16 %v4775, %v4774
    %v4800 = vpack.c.bf16 %v4777, %v4776
    %v4801 = vpack.c.bf16 %v4779, %v4778
    %v4802 = vpack.c.bf16 %v4781, %v4780
    %v4803 = vpack.c.bf16 %v4783, %v4782
    %v4804 = vpack.c.bf16 %v4785, %v4784
    %v4805 = vpack.c.bf16 %v4787, %v4786
    %v4806 = vpack.c.bf16 %v4789, %v4788
    %v4807 = vpack.c.bf16 %v4791, %v4790
    %v4824 = vunpack.c.l.b16 %v3811
    %v4825 = vunpack.c.h.b16 %v3811
    %v4826 = vunpack.c.l.b16 %v3812
    %v4827 = vunpack.c.h.b16 %v3812
    %v4828 = vunpack.c.l.b16 %v3813
    %v4829 = vunpack.c.h.b16 %v3813
    %v4830 = vunpack.c.l.b16 %v3814
    %v4831 = vunpack.c.h.b16 %v3814
    %v4832 = vunpack.c.l.b16 %v3815
    %v4833 = vunpack.c.h.b16 %v3815
    %v4834 = vunpack.c.l.b16 %v3816
    %v4835 = vunpack.c.h.b16 %v3816
    %v4836 = vunpack.c.l.b16 %v3817
    %v4837 = vunpack.c.h.b16 %v3817
    %v4838 = vunpack.c.l.b16 %v3818
    %v4839 = vunpack.c.h.b16 %v3818
    %v4840 = vunpack.c.l.b16 %v3819
    %v4841 = vunpack.c.h.b16 %v3819
    %v4842 = vunpack.c.l.b16 %v3820
    %v4843 = vunpack.c.h.b16 %v3820
    %v4844 = vunpack.c.l.b16 %v3821
    %v4845 = vunpack.c.h.b16 %v3821
    %v4846 = vunpack.c.l.b16 %v3822
    %v4847 = vunpack.c.h.b16 %v3822
    %v4848 = vunpack.c.l.b16 %v3823
    %v4849 = vunpack.c.h.b16 %v3823
    %v4850 = vunpack.c.l.b16 %v3824
    %v4851 = vunpack.c.h.b16 %v3824
    %v4852 = vunpack.c.l.b16 %v3825
    %v4853 = vunpack.c.h.b16 %v3825
    %v4854 = vunpack.c.l.b16 %v3826
    %v4855 = vunpack.c.h.b16 %v3826
    %v4856 = vpack.c.b16 %v4832, %v4824
    %v4857 = vpack.c.b16 %v4833, %v4825
    %v4858 = vpack.c.b16 %v4834, %v4826
    %v4859 = vpack.c.b16 %v4835, %v4827
    %v4860 = vpack.c.b16 %v4836, %v4828
    %v4861 = vpack.c.b16 %v4837, %v4829
    %v4862 = vpack.c.b16 %v4838, %v4830
    %v4863 = vpack.c.b16 %v4839, %v4831
    %v4864 = vpack.c.b16 %v4848, %v4840
    %v4865 = vpack.c.b16 %v4849, %v4841
    %v4866 = vpack.c.b16 %v4850, %v4842
    %v4867 = vpack.c.b16 %v4851, %v4843
    %v4868 = vpack.c.b16 %v4852, %v4844
    %v4869 = vpack.c.b16 %v4853, %v4845
    %v4870 = vpack.c.b16 %v4854, %v4846
    %v4871 = vpack.c.b16 %v4855, %v4847
    %4888 = vmatprep.subr.bf16.mxu0 0
    %4889 = vmatpush1.bf16.msra.mxu0 %v4108
    %4890 = vmatprep.subr.bf16.mxu0 0
    %4891 = vmatpush1.bf16.msra.mxu0 %v4109
    %4892 = vmatprep.subr.bf16.mxu0 0
    %4893 = vmatpush1.bf16.msra.mxu0 %v4110
    %4894 = vmatprep.subr.bf16.mxu0 0
    %4895 = vmatpush1.bf16.msra.mxu0 %v4111
    %4896 = vmatprep.subr.bf16.mxu0 0
    %4897 = vmatpush1.bf16.msra.mxu0 %v4112
    %4898 = vmatprep.subr.bf16.mxu0 0
    %4899 = vmatpush1.bf16.msra.mxu0 %v4113
    %4900 = vmatprep.subr.bf16.mxu0 0
    %4901 = vmatpush1.bf16.msra.mxu0 %v4114
    %4902 = vmatprep.subr.bf16.mxu0 0
    %4903 = vmatpush1.bf16.msra.mxu0 %v4115
    %4904 = vmatprep.subr.bf16.mxu0 0
    %4905 = vmatpush1.bf16.msra.mxu0 %v4116
    %4906 = vmatprep.subr.bf16.mxu0 0
    %4907 = vmatpush1.bf16.msra.mxu0 %v4117
    %4908 = vmatprep.subr.bf16.mxu0 0
    %4909 = vmatpush1.bf16.msra.mxu0 %v4118
    %4910 = vmatprep.subr.bf16.mxu0 0
    %4911 = vmatpush1.bf16.msra.mxu0 %v4119
    %4912 = vmatprep.subr.bf16.mxu0 0
    %4913 = vmatpush1.bf16.msra.mxu0 %v4120
    %4914 = vmatprep.subr.bf16.mxu0 0
    %4915 = vmatpush1.bf16.msra.mxu0 %v4121
    %4916 = vmatprep.subr.bf16.mxu0 0
    %4917 = vmatpush1.bf16.msra.mxu0 %v4122
    %4918 = vmatprep.subr.bf16.mxu0 0
    %4919 = vmatpush1.bf16.msra.mxu0 %v4123
    %4920 = vmatprep.mubr.bf16.mxu0 %v4857
    %4921 = vmatmul.mubr.bf16.gmra.mrb[0].mxu0 %v4856
    %v4922 = vpop.f32.mrb[0].mxu0
    %v4923 = vadd.f32 0.0, %v4922
    %v4924 = vpop.f32.mrb[0].mxu0
    %v4925 = vpop.f32.mrb[0].mxu0
    %v4926 = vadd.f32 0.0, %v4925
    %v4927 = vpop.f32.mrb[0].mxu0
    %4928 = vmatprep.mubr.bf16.mxu0 %v4865
    %4929 = vmatmul.mubr.bf16.gmra.mrb[0].mxu0 %v4864
    %v4930 = vpop.f32.mrb[0].mxu0
    %v4931 = vpop.f32.mrb[0].mxu0
    %v4932 = vpop.f32.mrb[0].mxu0
    %v4933 = vpop.f32.mrb[0].mxu0
    %4934 = vdwg.mxu0
    %4935 = vmatprep.subr.bf16.mxu0 0
    %4936 = vmatpush1.bf16.msra.mxu0 %v4336
    %4937 = vmatprep.subr.bf16.mxu0 0
    %4938 = vmatpush1.bf16.msra.mxu0 %v4337
    %4939 = vmatprep.subr.bf16.mxu0 0
    %4940 = vmatpush1.bf16.msra.mxu0 %v4338
    %4941 = vmatprep.subr.bf16.mxu0 0
    %4942 = vmatpush1.bf16.msra.mxu0 %v4339
    %4943 = vmatprep.subr.bf16.mxu0 0
    %4944 = vmatpush1.bf16.msra.mxu0 %v4340
    %4945 = vmatprep.subr.bf16.mxu0 0
    %4946 = vmatpush1.bf16.msra.mxu0 %v4341
    %4947 = vmatprep.subr.bf16.mxu0 0
    %4948 = vmatpush1.bf16.msra.mxu0 %v4342
    %4949 = vmatprep.subr.bf16.mxu0 0
    %4950 = vmatpush1.bf16.msra.mxu0 %v4343
    %4951 = vmatprep.subr.bf16.mxu0 0
    %4952 = vmatpush1.bf16.msra.mxu0 %v4344
    %4953 = vmatprep.subr.bf16.mxu0 0
    %4954 = vmatpush1.bf16.msra.mxu0 %v4345
    %4955 = vmatprep.subr.bf16.mxu0 0
    %4956 = vmatpush1.bf16.msra.mxu0 %v4346
    %4957 = vmatprep.subr.bf16.mxu0 0
    %4958 = vmatpush1.bf16.msra.mxu0 %v4347
    %4959 = vmatprep.subr.bf16.mxu0 0
    %4960 = vmatpush1.bf16.msra.mxu0 %v4348
    %4961 = vmatprep.subr.bf16.mxu0 0
    %4962 = vmatpush1.bf16.msra.mxu0 %v4349
    %4963 = vmatprep.subr.bf16.mxu0 0
    %4964 = vmatpush1.bf16.msra.mxu0 %v4350
    %4965 = vmatprep.subr.bf16.mxu0 0
    %4966 = vmatpush1.bf16.msra.mxu0 %v4351
    %4967 = vmatprep.mubr.bf16.mxu0 %v4859
    %4968 = vmatmul.mubr.bf16.gmra.mrb[0].mxu0 %v4858
    %v4969 = vpop.f32.mrb[0].mxu0
    %v4970 = vadd.f32 %v4923, %v4969
    %v4971 = vpop.f32.mrb[0].mxu0
    %v4972 = vpop.f32.mrb[0].mxu0
    %v4973 = vadd.f32 %v4926, %v4972
    %v4974 = vpop.f32.mrb[0].mxu0
    %4975 = vmatprep.mubr.bf16.mxu0 %v4867
    %4976 = vmatmul.mubr.bf16.gmra.mrb[0].mxu0 %v4866
    %v4977 = vpop.f32.mrb[0].mxu0
    %v4978 = vpop.f32.mrb[0].mxu0
    %v4979 = vpop.f32.mrb[0].mxu0
    %v4980 = vpop.f32.mrb[0].mxu0
    %4981 = vdwg.mxu0
    %4982 = vmatprep.subr.bf16.mxu0 0
    %4983 = vmatpush1.bf16.msra.mxu0 %v4564
    %4984 = vmatprep.subr.bf16.mxu0 0
    %4985 = vmatpush1.bf16.msra.mxu0 %v4565
    %4986 = vmatprep.subr.bf16.mxu0 0
    %4987 = vmatpush1.bf16.msra.mxu0 %v4566
    %4988 = vmatprep.subr.bf16.mxu0 0
    %4989 = vmatpush1.bf16.msra.mxu0 %v4567
    %4990 = vmatprep.subr.bf16.mxu0 0
    %4991 = vmatpush1.bf16.msra.mxu0 %v4568
    %4992 = vmatprep.subr.bf16.mxu0 0
    %4993 = vmatpush1.bf16.msra.mxu0 %v4569
    %4994 = vmatprep.subr.bf16.mxu0 0
    %4995 = vmatpush1.bf16.msra.mxu0 %v4570
    %4996 = vmatprep.subr.bf16.mxu0 0
    %4997 = vmatpush1.bf16.msra.mxu0 %v4571
    %4998 = vmatprep.subr.bf16.mxu0 0
    %4999 = vmatpush1.bf16.msra.mxu0 %v4572
    %5000 = vmatprep.subr.bf16.mxu0 0
    %5001 = vmatpush1.bf16.msra.mxu0 %v4573
    %5002 = vmatprep.subr.bf16.mxu0 0
    %5003 = vmatpush1.bf16.msra.mxu0 %v4574
    %5004 = vmatprep.subr.bf16.mxu0 0
    %5005 = vmatpush1.bf16.msra.mxu0 %v4575
    %5006 = vmatprep.subr.bf16.mxu0 0
    %5007 = vmatpush1.bf16.msra.mxu0 %v4576
    %5008 = vmatprep.subr.bf16.mxu0 0
    %5009 = vmatpush1.bf16.msra.mxu0 %v4577
    %5010 = vmatprep.subr.bf16.mxu0 0
    %5011 = vmatpush1.bf16.msra.mxu0 %v4578
    %5012 = vmatprep.subr.bf16.mxu0 0
    %5013 = vmatpush1.bf16.msra.mxu0 %v4579
    %5014 = vmatprep.mubr.bf16.mxu0 %v4861
    %5015 = vmatmul.mubr.bf16.gmra.mrb[0].mxu0 %v4860
    %v5016 = vpop.f32.mrb[0].mxu0
    %v5017 = vadd.f32 %v4970, %v5016
    %v5018 = vpop.f32.mrb[0].mxu0
    %v5019 = vpop.f32.mrb[0].mxu0
    %v5020 = vadd.f32 %v4973, %v5019
    %v5021 = vpop.f32.mrb[0].mxu0
    %5022 = vmatprep.mubr.bf16.mxu0 %v4869
    %5023 = vmatmul.mubr.bf16.gmra.mrb[0].mxu0 %v4868
    %v5024 = vpop.f32.mrb[0].mxu0
    %v5025 = vpop.f32.mrb[0].mxu0
    %v5026 = vpop.f32.mrb[0].mxu0
    %v5027 = vpop.f32.mrb[0].mxu0
    %5028 = vdwg.mxu0
    %5029 = vmatprep.subr.bf16.mxu0 0
    %5030 = vmatpush1.bf16.msra.mxu0 %v4792
    %5031 = vmatprep.subr.bf16.mxu0 0
    %5032 = vmatpush1.bf16.msra.mxu0 %v4793
    %5033 = vmatprep.subr.bf16.mxu0 0
    %5034 = vmatpush1.bf16.msra.mxu0 %v4794
    %5035 = vmatprep.subr.bf16.mxu0 0
    %5036 = vmatpush1.bf16.msra.mxu0 %v4795
    %5037 = vmatprep.subr.bf16.mxu0 0
    %5038 = vmatpush1.bf16.msra.mxu0 %v4796
    %5039 = vmatprep.subr.bf16.mxu0 0
    %5040 = vmatpush1.bf16.msra.mxu0 %v4797
    %5041 = vmatprep.subr.bf16.mxu0 0
    %5042 = vmatpush1.bf16.msra.mxu0 %v4798
    %5043 = vmatprep.subr.bf16.mxu0 0
    %5044 = vmatpush1.bf16.msra.mxu0 %v4799
    %5045 = vmatprep.subr.bf16.mxu0 0
    %5046 = vmatpush1.bf16.msra.mxu0 %v4800
    %5047 = vmatprep.subr.bf16.mxu0 0
    %5048 = vmatpush1.bf16.msra.mxu0 %v4801
    %5049 = vmatprep.subr.bf16.mxu0 0
    %5050 = vmatpush1.bf16.msra.mxu0 %v4802
    %5051 = vmatprep.subr.bf16.mxu0 0
    %5052 = vmatpush1.bf16.msra.mxu0 %v4803
    %5053 = vmatprep.subr.bf16.mxu0 0
    %5054 = vmatpush1.bf16.msra.mxu0 %v4804
    %5055 = vmatprep.subr.bf16.mxu0 0
    %5056 = vmatpush1.bf16.msra.mxu0 %v4805
    %5057 = vmatprep.subr.bf16.mxu0 0
    %5058 = vmatpush1.bf16.msra.mxu0 %v4806
    %5059 = vmatprep.subr.bf16.mxu0 0
    %5060 = vmatpush1.bf16.msra.mxu0 %v4807
    %5061 = vmatprep.mubr.bf16.mxu0 %v4863
    %5062 = vmatmul.mubr.bf16.gmra.mrb[0].mxu0 %v4862
    %v5063 = vpop.f32.mrb[0].mxu0
    %v5064 = vadd.f32 %v5017, %v5063
    %v5065 = vpop.f32.mrb[0].mxu0
    %v5066 = vpop.f32.mrb[0].mxu0
    %v5067 = vadd.f32 %v5020, %v5066
    %v5068 = vpop.f32.mrb[0].mxu0
    %5069 = vmatprep.mubr.bf16.mxu0 %v4871
    %5070 = vmatmul.mubr.bf16.gmra.mrb[0].mxu0 %v4870
    %v5071 = vpop.f32.mrb[0].mxu0
    %v5072 = vpop.f32.mrb[0].mxu0
    %v5073 = vpop.f32.mrb[0].mxu0
    %v5074 = vpop.f32.mrb[0].mxu0
    %5075 = vdwg.mxu0
    %v5076 = vxor.u32 %v5064, 2147483648
    %v5077 = vxor.u32 %v5067, 2147483648
    %v5078 = vmul.f32 %v5076, 1.442695
    %v5079 = vpow.pop %v5078
    %v5080 = vmul.f32 %v5077, 1.442695
    %v5081 = vpow.pop %v5080
    %v5082 = vadd.f32 %v5079, 1.0
    %v5083 = vadd.f32 %v5081, 1.0
    %v5084 = vrcp.pop %v5082
    %v5085 = vmul.f32 1.0, %v5084
    %v5086 = vrcp.pop %v5083
    %v5087 = vmul.f32 1.0, %v5086
    %v5088 = vld [vmem:[%s6] sm:$0x1]
    %v5090 = vsel %vm979, %v5088, 0
    %5092 = vmatprep.subr.mxu0 0.0
    %5093 = vmatpush1.msra.mxu0 %v5085
    %5094 = vmatprep.subr.mxu0 0.0
    %5095 = vmatpush1.msra.mxu0 %v5087
    %5096 = vmatprep.subr.mxu0 0.0
    %5097 = vmatpush1.msra.mxu0 0.0
    %5098 = vmatprep.subr.mxu0 0.0
    %5099 = vmatpush1.msra.mxu0 0.0
    %5100 = vmatprep.subr.mxu0 0.0
    %5101 = vmatpush1.msra.mxu0 0.0
    %5102 = vmatprep.subr.mxu0 0.0
    %5103 = vmatpush1.msra.mxu0 0.0
    %5104 = vmatprep.subr.mxu0 0.0
    %5105 = vmatpush1.msra.mxu0 0.0
    %5106 = vmatprep.subr.mxu0 0.0
    %5107 = vmatpush1.msra.mxu0 0.0
    %5108 = vmatprep.subr.mxu0 0.0
    %5109 = vmatpush1.msra.mxu0 0.0
    %5110 = vmatprep.subr.mxu0 0.0
    %5111 = vmatpush1.msra.mxu0 0.0
    %5112 = vmatprep.subr.mxu0 0.0
    %5113 = vmatpush1.msra.mxu0 0.0
    %5114 = vmatprep.subr.mxu0 0.0
    %5115 = vmatpush1.msra.mxu0 0.0
    %5116 = vmatprep.subr.mxu0 0.0
    %5117 = vmatpush1.msra.mxu0 0.0
    %5118 = vmatprep.subr.mxu0 0.0
    %5119 = vmatpush1.msra.mxu0 0.0
    %5120 = vmatprep.subr.mxu0 0.0
    %5121 = vmatpush1.msra.mxu0 0.0
    %5122 = vmatprep.subr.mxu0 0.0
    %5123 = vmatpush1.msra.mxu0 0.0
    %5124 = vmatprep.subr.mxu0 0.0
    %5125 = vmatpush1.msra.mxu0 0.0
    %5126 = vmatprep.subr.mxu0 0.0
    %5127 = vmatpush1.msra.mxu0 0.0
    %5128 = vmatprep.subr.mxu0 0.0
    %5129 = vmatpush1.msra.mxu0 0.0
    %5130 = vmatprep.subr.mxu0 0.0
    %5131 = vmatpush1.msra.mxu0 0.0
    %5132 = vmatprep.subr.mxu0 0.0
    %5133 = vmatpush1.msra.mxu0 0.0
    %5134 = vmatprep.subr.mxu0 0.0
    %5135 = vmatpush1.msra.mxu0 0.0
    %5136 = vmatprep.subr.mxu0 0.0
    %5137 = vmatpush1.msra.mxu0 0.0
    %5138 = vmatprep.subr.mxu0 0.0
    %5139 = vmatpush1.msra.mxu0 0.0
    %5140 = vmatprep.subr.mxu0 0.0
    %5141 = vmatpush1.msra.mxu0 0.0
    %5142 = vmatprep.subr.mxu0 0.0
    %5143 = vmatpush1.msra.mxu0 0.0
    %5144 = vmatprep.subr.mxu0 0.0
    %5145 = vmatpush1.msra.mxu0 0.0
    %5146 = vmatprep.subr.mxu0 0.0
    %5147 = vmatpush1.msra.mxu0 0.0
    %5148 = vmatprep.subr.mxu0 0.0
    %5149 = vmatpush1.msra.mxu0 0.0
    %5150 = vmatprep.subr.mxu0 0.0
    %5151 = vmatpush1.msra.mxu0 0.0
    %5152 = vmatprep.subr.mxu0 0.0
    %5153 = vmatpush1.msra.mxu0 0.0
    %5154 = vmatprep.subr.mxu0 0.0
    %5155 = vmatpush1.msra.mxu0 0.0
    %5156 = vmatprep.mubr.f32.mxu0 0.0
    %5157 = vmatmul.mubr.f32.gmra.mrb[0].mxu0 %v5090
    %v5158 = vpop.f32.mrb[0].mxu0
    %v5159 = vadd.f32 0.0, %v5158
    %v5160 = vpop.f32.mrb[0].mxu0
    %5161 = vdwg.mxu0
    %5162 = vmatprep.subr.mxu0 0.0
    %5163 = vmatpush1.msra.mxu0 %v58
    %5164 = vmatprep.subr.mxu0 0.0
    %5165 = vmatpush1.msra.mxu0 %v59
    %5166 = vmatprep.subr.mxu0 0.0
    %5167 = vmatpush1.msra.mxu0 %v60
    %5168 = vmatprep.subr.mxu0 0.0
    %5169 = vmatpush1.msra.mxu0 %v61
    %5170 = vmatprep.subr.mxu0 0.0
    %5171 = vmatpush1.msra.mxu0 %v62
    %5172 = vmatprep.subr.mxu0 0.0
    %5173 = vmatpush1.msra.mxu0 %v63
    %5174 = vmatprep.subr.mxu0 0.0
    %5175 = vmatpush1.msra.mxu0 %v64
    %5176 = vmatprep.subr.mxu0 0.0
    %5177 = vmatpush1.msra.mxu0 %v65
    %5178 = vmatprep.subr.mxu0 0.0
    %5179 = vmatpush1.msra.mxu0 %v66
    %5180 = vmatprep.subr.mxu0 0.0
    %5181 = vmatpush1.msra.mxu0 %v67
    %5182 = vmatprep.subr.mxu0 0.0
    %5183 = vmatpush1.msra.mxu0 %v68
    %5184 = vmatprep.subr.mxu0 0.0
    %5185 = vmatpush1.msra.mxu0 %v69
    %5186 = vmatprep.subr.mxu0 0.0
    %5187 = vmatpush1.msra.mxu0 %v70
    %5188 = vmatprep.subr.mxu0 0.0
    %5189 = vmatpush1.msra.mxu0 %v71
    %5190 = vmatprep.subr.mxu0 0.0
    %5191 = vmatpush1.msra.mxu0 %v72
    %5192 = vmatprep.subr.mxu0 0.0
    %5193 = vmatpush1.msra.mxu0 %v73
    %5194 = vmatprep.subr.mxu0 0.0
    %5195 = vmatpush1.msra.mxu0 0.0
    %5196 = vmatprep.subr.mxu0 0.0
    %5197 = vmatpush1.msra.mxu0 0.0
    %5198 = vmatprep.subr.mxu0 0.0
    %5199 = vmatpush1.msra.mxu0 0.0
    %5200 = vmatprep.subr.mxu0 0.0
    %5201 = vmatpush1.msra.mxu0 0.0
    %5202 = vmatprep.subr.mxu0 0.0
    %5203 = vmatpush1.msra.mxu0 0.0
    %5204 = vmatprep.subr.mxu0 0.0
    %5205 = vmatpush1.msra.mxu0 0.0
    %5206 = vmatprep.subr.mxu0 0.0
    %5207 = vmatpush1.msra.mxu0 0.0
    %5208 = vmatprep.subr.mxu0 0.0
    %5209 = vmatpush1.msra.mxu0 0.0
    %5210 = vmatprep.subr.mxu0 0.0
    %5211 = vmatpush1.msra.mxu0 0.0
    %5212 = vmatprep.subr.mxu0 0.0
    %5213 = vmatpush1.msra.mxu0 0.0
    %5214 = vmatprep.subr.mxu0 0.0
    %5215 = vmatpush1.msra.mxu0 0.0
    %5216 = vmatprep.subr.mxu0 0.0
    %5217 = vmatpush1.msra.mxu0 0.0
    %5218 = vmatprep.subr.mxu0 0.0
    %5219 = vmatpush1.msra.mxu0 0.0
    %5220 = vmatprep.subr.mxu0 0.0
    %5221 = vmatpush1.msra.mxu0 0.0
    %5222 = vmatprep.subr.mxu0 0.0
    %5223 = vmatpush1.msra.mxu0 0.0
    %5224 = vmatprep.subr.mxu0 0.0
    %5225 = vmatpush1.msra.mxu0 0.0
    %5226 = vmatprep.mubr.f32.mxu0 0.0
    %5227 = vmatmul.mubr.f32.gmra.mrb[0].mxu0 %v5159
    %v5228 = vpop.f32.mrb[0].mxu0
    %v5229 = vadd.f32 0.0, %v5228
    %v5230 = vpop.f32.mrb[0].mxu0
    %5231 = vdwg.mxu0
    %vm5232 = vcmask 8192
    %5233 = vst.msk [vmem:[#allocation5] sm:$0x1] %vm5232, %v5229
    // Predicated region
    $region34: #{tpu_custom_call.1} parent=1 // pred_check
      _
    $region35: #{tpu_custom_call.1} parent=1 // pred_check_branch
      %5235 = sbr.rel (0) target = $region37
    $region36: #{tpu_custom_call.1} parent=1 // pred_region
      %s5237 = ssub.s32 16, 16
      %5238 = vsyncadd [#allocation4], %s5237
      %s5240 = sshll.u32 [#allocation5], 4
      %s5241 = int_to_ptr.vmem [resolvable:$true] %s5240
      %5243 = dma.vmem_to_hbm [thread:$0]  %s5241, 16, %s7, [#allocation4]
    $region37: #{tpu_custom_call.1} parent=1 // pred_fallthru
      _
    // Predicated region
    $region38: #{tpu_custom_call.1} parent=1 // pred_check
      _
    $region39: #{tpu_custom_call.1} parent=1 // pred_check_branch
      %5245 = sbr.rel (0) target = $region41
    $region40: #{tpu_custom_call.1} parent=1 // pred_region
      %5246 = dma.done [#allocation4], 16
    $region41: #{tpu_custom_call.1} parent=1 // pred_fallthru
      _
    %5247 = vsyncpa [#allocation3], 1
    %5248 = vsyncpa [#allocation4], 1

</llo_original>
